<compile_context>
chip_gen: v7x
topology: tpu7x:2x2x1
jax: 0.10.0
libtpu: 0.0.40
codegen_flags: <defaults>
</compile_context>

<pallas_src>
import functools
import math

import numpy as np
import jax
import jax.numpy as jnp
from jax.experimental import pallas as pl
from jax.experimental.pallas import tpu as pltpu


_LANE = 128
_SUBLANE = 16          # bf16 second-to-last-dim packing granularity
_MAX_BLOCK_G = 8       # g-axis block; powers of two <= 8 so any block divides padded g


# ---------------------------------------------------------------------------
# small helpers
# ---------------------------------------------------------------------------

def _round_up(n, m):
    return -(-n // m) * m


def _pad_to(a, axis, target):
    cur = a.shape[axis]
    if target <= cur:
        return a
    widths = [(0, 0)] * a.ndim
    widths[axis] = (0, target - cur)
    return jnp.pad(a, widths)


@functools.lru_cache(maxsize=1)
def _tpu_config():
    """Generation-aware tiling budgets.

    v5e / v6e: 128 MiB VMEM, 1 TensorCore -> big per-step budget, no min-step clamp.
    v7x-class:  64 MiB VMEM per TC, 2 TCs -> conservative budget, >= 4 grid steps
                so each core still overlaps DMA with compute.
    Unknown:    conservative settings that are safe on every generation.
    """
    vmem = 0
    try:
        info = pltpu.get_tpu_info()
        vmem = int(getattr(info, "vmem_capacity_bytes", 0) or 0)
    except Exception:
        vmem = 0
    if vmem >= 100 * 2 ** 20:      # v5e / v6e class
        return {"per_step": 24 * 2 ** 20, "vmem_limit": 96 * 2 ** 20, "min_steps": 1}
    if vmem > 0:                   # v7x class (64 MiB per TC)
        return {"per_step": 12 * 2 ** 20, "vmem_limit": 56 * 2 ** 20, "min_steps": 4}
    return {"per_step": 8 * 2 ** 20, "vmem_limit": 48 * 2 ** 20, "min_steps": 2}


# ---------------------------------------------------------------------------
# Pallas kernel: blocked, batched matmul  out[g] = w[g] @ x[g]
# ---------------------------------------------------------------------------

def _block_matmul_kernel(w_ref, x_ref, o_ref, *, block_g, relu, out_dtype):
    """Blocks: w (block_g, R, K) bf16, x (block_g, K, N) bf16, o (block_g, R, N).

    Real/imag parts ride together along a non-contracted axis, so one MXU dot
    per sub-problem covers the full complex arithmetic.  Epilogue is minimal:
    f32 ReLU (optional) + a single cast + lane-dense store.
    """
    for g in range(block_g):  # static unroll; block_g <= 8
        acc = jnp.dot(w_ref[g], x_ref[g], preferred_element_type=jnp.float32)
        if relu:
            acc = jnp.maximum(acc, 0.0)
        o_ref[g] = acc.astype(out_dtype)


class _PreparedWeight:
    """Batched-matmul weight, cast to bf16 and padded once at construction:
       lane dim K -> multiple of 128 (unmasked, lane-dense loads),
       row dim  R -> multiple of 16  (bf16 sublane packing / dense stores),
       g axis     -> multiple of 8   (any block size in {1,2,4,8} divides it)."""

    def __init__(self, w):
        w = jnp.asarray(w, jnp.float32)
        self.g, self.r, self.k = w.shape
        self.gp = _round_up(self.g, _MAX_BLOCK_G)
        self.rp = _round_up(self.r, _SUBLANE)
        self.kp = _round_up(self.k, _LANE)
        w = w.astype(jnp.bfloat16)
        w = _pad_to(w, 2, self.kp)
        w = _pad_to(w, 1, self.rp)
        w = _pad_to(w, 0, self.gp)
        self.w = w


def _choose_tiles(gp, rp, kp, np_, out_bytes, cfg):
    """Pick (g block, n block).  Grid order is (g outer, n inner) so the weight
    block stays resident across the inner n loop.  Budget includes the 2x
    double-buffering factor of the auto-pipeline."""
    budget, min_steps = cfg["per_step"], cfg["min_steps"]
    n_cands = sorted({n for n in (np_, 1024, 512, 256, 128)
                      if 128 <= n <= np_ and np_ % n == 0}, reverse=True)
    for blk in (8, 4, 2, 1):
        for nblk in n_cands:
            steps = (gp // blk) * (np_ // nblk)
            per_step = 2 * blk * (2 * rp * kp + 2 * kp * nblk + out_bytes * rp * nblk)
            if per_step <= budget and steps >= min_steps:
                return blk, nblk
    return 1, 128


def _prepared_matmul(pw, x, *, out_dtype=jnp.float32, relu=False, cfg=None):
    """out[g] = pw.w[g] @ x[g] on the MXU, using the pre-padded bf16 weight.

    x: (G, K, N) -> (G, R, Npad) with Npad = round_up(N, 128).  Lane padding of
    the output is kept (downstream stages consume the same layout)."""
    cfg = cfg or _tpu_config()
    G, K, N = x.shape
    assert (G, K) == (pw.g, pw.k), ((G, K), (pw.g, pw.k))

    x = x.astype(jnp.bfloat16)
    x = _pad_to(x, 1, pw.kp)
    np_ = _round_up(N, _LANE)
    x = _pad_to(x, 2, np_)
    x = _pad_to(x, 0, pw.gp)

    out_bytes = jnp.dtype(out_dtype).itemsize
    blk, nblk = _choose_tiles(pw.gp, pw.rp, pw.kp, np_, out_bytes, cfg)

    kern = functools.partial(_block_matmul_kernel, block_g=blk, relu=relu,
                             out_dtype=out_dtype)
    out = pl.pallas_call(
        kern,
        grid=(pw.gp // blk, np_ // nblk),           # g outer, n inner
        in_specs=[pl.BlockSpec((blk, pw.rp, pw.kp), lambda i, j: (i, 0, 0)),
                  pl.BlockSpec((blk, pw.kp, nblk), lambda i, j: (i, 0, j))],
        out_specs=pl.BlockSpec((blk, pw.rp, nblk), lambda i, j: (i, 0, j)),
        out_shape=jax.ShapeDtypeStruct((pw.gp, pw.rp, np_), out_dtype),
        compiler_params=pltpu.CompilerParams(
            dimension_semantics=("parallel", "parallel"),
            vmem_limit_bytes=cfg["vmem_limit"]),
    )(pw.w, x)
    return out[:G, :pw.r, :]


# ---------------------------------------------------------------------------
# Deterministic setup: associated Legendre polynomials
# ---------------------------------------------------------------------------

def _precompute_legpoly(mmax, lmax, theta):
    """Orthonormal associated Legendre P_l^m(cos theta), shape (mmax, lmax, nlat).
    Zero for l < m (triangular truncation)."""
    nmax = max(mmax, lmax)
    ct = np.cos(theta)
    vdm = np.zeros((nmax, nmax, len(theta)), dtype=np.float64)  # [m, l, k]
    vdm[0, 0, :] = 1.0 / np.sqrt(4.0 * np.pi)
    for l in range(1, nmax):
        vdm[l - 1, l, :] = np.sqrt(2 * l + 1) * ct * vdm[l - 1, l - 1, :]
        vdm[l, l, :] = np.sqrt((2 * l + 1) * (1 + ct) * (1 - ct) / (2 * l)) * vdm[l - 1, l - 1, :]
    for l in range(2, nmax):
        for m in range(0, l - 1):
            a = np.sqrt(((2 * l - 1) / (l - m)) * ((2 * l + 1) / (l + m)))
            b = np.sqrt(((l + m - 1) / (l - m)) * ((2 * l + 1) / (2 * l - 3)) * ((l - m - 1) / (l + m)))
            vdm[m, l, :] = ct * a * vdm[m, l - 1, :] - b * vdm[m, l - 2, :]
    return vdm[:mmax, :lmax]


# ---------------------------------------------------------------------------
# SphericalConv module
# ---------------------------------------------------------------------------

class SphericalConvPallas:
    """JAX/Pallas reimplementation of SphericalConv (middle-layer configuration).

    TODO(synk): first_layer / last_layer / use_embed branches (on-the-fly cached
    SHT module construction keyed by shape) are not instantiated; the math of
    those branches is the same sht/isht operators built here.
    """

    def __init__(self, key, in_channels, out_channels, img_size,
                 gain=2.0, bias=False, use_nonlinear=False):
        nlat, nlon = img_size
        self.nlat, self.nlon = nlat, nlon
        self.lmax = nlat
        self.mmax = nlon // 2 + 1
        self.in_channels = in_channels
        self.out_channels = out_channels
        self.use_nonlinear = use_nonlinear
        self.cfg = _tpu_config()

        # Equiangular colatitude grid + sin(theta) quadrature.
        theta = np.linspace(0.0, np.pi, nlat)
        quad_w = np.sin(theta) * (np.pi / max(nlat - 1, 1))
        quad_w[0] *= 0.5
        quad_w[-1] *= 0.5
        pct = _precompute_legpoly(self.mmax, self.lmax, theta)                     # (M, L, K)
        self.fwd_weights = jnp.asarray(pct * quad_w[None, None, :], jnp.float32)   # (M, L, K)
        self.inv_pct_t = jnp.asarray(np.transpose(pct, (0, 2, 1)), jnp.float32)    # (M, K, L)

        # forward/inverse transforms share geometry here -> scale_residual False.
        self.scale_residual = False

        # weight_1: scale * view_as_real(randn(out, in, lmax, complex64))
        scale = math.sqrt(gain / in_channels) * np.ones((self.lmax, 2), np.float32)
        scale[0] *= math.sqrt(2.0)
        kr, ki = jax.random.split(key)
        wr = jax.random.normal(kr, (out_channels, in_channels, self.lmax), jnp.float32) / np.sqrt(2.0)
        wi = jax.random.normal(ki, (out_channels, in_channels, self.lmax), jnp.float32) / np.sqrt(2.0)
        self.w_r = wr * jnp.asarray(scale[:, 0])   # broadcast over lmax
        self.w_i = wi * jnp.asarray(scale[:, 1])

        # Real block form of the complex, l-diagonal channel-mix weight:
        #   [[Wr, -Wi], [Wi, Wr]] per l  ->  (lmax, 2*out, 2*in)
        wrt = jnp.transpose(self.w_r, (2, 0, 1))   # (L, O, I)
        wit = jnp.transpose(self.w_i, (2, 0, 1))
        w_block = jnp.concatenate(
            [jnp.concatenate([wrt, -wit], axis=2),
             jnp.concatenate([wit, wrt], axis=2)], axis=1)

        # --- prepared (bf16, pre-padded) kernel weights, built ONCE at init ---
        # Triangular l >= m structure: split the m axis into bands and drop the
        # all-zero l < band_lo rows/cols of the Legendre operators.
        self.bands = self._make_bands(self.mmax)
        self.fwd_bands = [_PreparedWeight(self.fwd_weights[lo:hi, lo:, :])
                          for lo, hi in self.bands]
        self.inv_bands = [_PreparedWeight(self.inv_pct_t[lo:hi, :, lo:])
                          for lo, hi in self.bands]
        self.dh_w = _PreparedWeight(w_block)

        self.bias = jnp.zeros((1, out_channels, 1, 1), jnp.float32) if bias else None

        # Jit the whole forward so rfft / real-imag split / 5-D relayouts /
        # pads / casts fuse around the pallas_calls.
        self._jitted = jax.jit(self._forward_impl)

    @staticmethod
    def _make_bands(mmax):
        if mmax >= 64:
            n_bands = 4
        elif mmax >= 8:
            n_bands = 2
        else:
            n_bands = 1
        edges = np.linspace(0, mmax, n_bands + 1).astype(int)
        return [(int(edges[i]), int(edges[i + 1]))
                for i in range(n_bands) if edges[i + 1] > edges[i]]

    # -- forward real SHT --------------------------------------------------
    def _forward_sht(self, x):
        """x: (B, C, nlat, nlon) f32 -> (mmax, lmax, 2*B*C lane-padded) bf16.

        Lane layout of the output: [Re over (b,c) | Im over (b,c) | zero pad].
        """
        B, C, K, _ = x.shape
        # TODO(synk): rfft has no clean Pallas equivalent; kept as XLA glue.
        xf = 2.0 * jnp.pi * jnp.fft.rfft(x, axis=-1, norm="forward")[..., : self.mmax]

        def to_m(a):  # (B, C, K, M) -> (M, K, B*C)
            return jnp.transpose(a, (3, 2, 0, 1)).reshape(self.mmax, K, B * C)

        # bf16 BEFORE the relayout: halves the HBM bytes of the transpose.
        xr = jnp.real(xf).astype(jnp.bfloat16)
        xi = jnp.imag(xf).astype(jnp.bfloat16)
        xs = jnp.concatenate([to_m(xr), to_m(xi)], axis=-1)       # (M, K, 2BC)

        outs = []
        for (lo, hi), pw in zip(self.bands, self.fwd_bands):
            o = _prepared_matmul(pw, xs[lo:hi], out_dtype=jnp.bfloat16,
                                 cfg=self.cfg)                     # (hi-lo, L-lo, Npad)
            o = jnp.pad(o, ((0, 0), (lo, 0), (0, 0)))              # zeros for l < band_lo
            outs.append(o)
        return jnp.concatenate(outs, axis=0)                       # (M, L, Npad)

    # -- contract_dhconv ---------------------------------------------------
    def _dhconv(self, xlm_m, batch):
        """xlm_m: (mmax, lmax, >=2*B*Cin) -> (mmax, lmax, 2*B*Cout)."""
        M, L, B = self.mmax, self.lmax, batch
        I, O = self.in_channels, self.out_channels
        t = xlm_m[:, :, : 2 * B * I].reshape(M, L, 2, B, I)
        xd = jnp.transpose(t, (1, 2, 4, 3, 0)).reshape(L, 2 * I, B * M)     # bf16
        y = _prepared_matmul(self.dh_w, xd, out_dtype=jnp.bfloat16,
                             relu=self.use_nonlinear, cfg=self.cfg)         # (L, 2O, BM pad)
        t = y[:, :, : B * M].reshape(L, 2, O, B, M)
        return jnp.transpose(t, (4, 0, 1, 3, 2)).reshape(M, L, 2 * B * O)   # (M, L, 2BO)

    # -- inverse real SHT ----------------------------------------------------
    def _inverse_sht(self, spec_m, n_ch, batch):
        """spec_m: (mmax, lmax, >=2*B*n_ch) -> (B, n_ch, nlat, nlon) f32."""
        B = batch
        outs = []
        for (lo, hi), pw in zip(self.bands, self.inv_bands):
            # Only l >= band_lo contributes (triangular truncation).
            o = _prepared_matmul(pw, spec_m[lo:hi, lo:, :], out_dtype=jnp.float32,
                                 cfg=self.cfg)                     # (hi-lo, nlat, Npad)
            outs.append(o)
        ys = jnp.concatenate(outs, axis=0)                         # (M, nlat, Npad)
        ys = ys[:, :, : 2 * B * n_ch].reshape(self.mmax, self.nlat, 2, B, n_ch)
        yr = jnp.transpose(ys[:, :, 0], (2, 3, 1, 0))   # (B, n_ch, nlat, mmax)
        yi = jnp.transpose(ys[:, :, 1], (2, 3, 1, 0))
        # TODO(synk): irfft has no clean Pallas equivalent; kept as XLA glue.
        return jnp.fft.irfft(yr + 1j * yi, n=self.nlon, axis=-1, norm="forward")

    # -- forward pass --------------------------------------------------------
    def _forward_impl(self, x):
        dtype = x.dtype
        x = x.astype(jnp.float32)
        residual = x
        B = x.shape[0]
        xlm_m = self._forward_sht(x)                              # forward_transform
        if self.scale_residual:
            residual = self._inverse_sht(xlm_m, self.in_channels, B)
        ylm_m = self._dhconv(xlm_m, B)                            # contract_dhconv (+ReLU)
        y = self._inverse_sht(ylm_m, self.out_channels, B)        # inverse_transform
        if self.bias is not None:
            y = y + self.bias
        return y.astype(dtype), residual

    def __call__(self, x, last_image_shape=None):
        return self._jitted(x)


# ---------------------------------------------------------------------------
# Pure-JAX reference (for correctness check)
# ---------------------------------------------------------------------------

def reference_forward(x, mod):
    x = x.astype(jnp.float32)
    xf = 2.0 * jnp.pi * jnp.fft.rfft(x, axis=-1, norm="forward")[..., :mod.mmax]
    xlm = jnp.einsum("bckm,mlk->bclm", xf, mod.fwd_weights.astype(jnp.complex64))
    wc = mod.w_r + 1j * mod.w_i
    ylm = jnp.einsum("bilm,oil->bolm", xlm, wc)
    if mod.use_nonlinear:
        ylm = jnp.maximum(ylm.real, 0.0) + 1j * jnp.maximum(ylm.imag, 0.0)
    ys = jnp.einsum("bolm,mkl->bokm", ylm, mod.inv_pct_t.astype(jnp.complex64))
    y = jnp.fft.irfft(ys, n=mod.nlon, axis=-1, norm="forward")
    if mod.bias is not None:
        y = y + mod.bias
    return y, x


# ---------------------------------------------------------------------------
# Demo
# ---------------------------------------------------------------------------

if __name__ == "__main__":
    key = jax.random.PRNGKey(0)
    kx, kw = jax.random.split(key)

    B, Cin, Cout, H, W = 2, 4, 4, 16, 16   # NCHW; H=nlat, W=nlon
    x = jax.random.normal(kx, (B, Cin, H, W), jnp.float32)

    for use_nl, use_bias in ((False, False), (True, True)):
        mod = SphericalConvPallas(kw, Cin, Cout, (H, W), gain=2.0,
                                  bias=use_bias, use_nonlinear=use_nl)

        y, residual = mod(x)
        y = jax.block_until_ready(y)
        residual = jax.block_until_ready(residual)

        assert y.shape == (B, Cout, H, W) and y.dtype == jnp.float32
        assert residual.shape == (B, Cin, H, W)

        y_ref, res_ref = reference_forward(x, mod)
        rel_err = float(jnp.max(jnp.abs(y - y_ref))) / (float(jnp.max(jnp.abs(y_ref))) + 1e-8)
        assert rel_err < 5e-2, \
            f"mismatch vs reference (use_nonlinear={use_nl}): rel_err={rel_err}"
        assert bool(jnp.allclose(residual, res_ref))

    print("KERNEL_OK")
</pallas_src>

<mosaic_0001>
module attributes {stable_mosaic.version = 11 : i64} {
  func.func @_block_matmul_kernel(%arg0: i32, %arg1: i32, %arg2: memref<4x16x128xbf16, #tpu.memory_space<vmem>>, %arg3: memref<4x128x128xbf16, #tpu.memory_space<vmem>>, %arg4: memref<4x16x128xbf16, #tpu.memory_space<vmem>>) attributes {dimension_semantics = [#tpu.dimension_semantics<parallel>, #tpu.dimension_semantics<parallel>], iteration_bounds = array<i64: 2, 1>, scalar_prefetch = 0 : i64, scratch_operands = 0 : i64, tpu.core_type = #tpu.core_type<tc>, window_params = [{transform_indices = @transform_0, window_bounds = array<i64: 4, 16, 128>}, {transform_indices = @transform_1, window_bounds = array<i64: 4, 128, 128>}, {transform_indices = @transform_2, window_bounds = array<i64: 4, 16, 128>}]} {
    %c0 = arith.constant 0 : index
    %c0_0 = arith.constant 0 : index
    %c0_1 = arith.constant 0 : index
    %0 = vector.load %arg2[%c0, %c0_0, %c0_1] : memref<4x16x128xbf16, #tpu.memory_space<vmem>>, vector<1x16x128xbf16>
    %1 = vector.shape_cast %0 : vector<1x16x128xbf16> to vector<16x128xbf16>
    %c0_2 = arith.constant 0 : index
    %c0_3 = arith.constant 0 : index
    %c0_4 = arith.constant 0 : index
    %2 = vector.load %arg3[%c0_2, %c0_3, %c0_4] : memref<4x128x128xbf16, #tpu.memory_space<vmem>>, vector<1x128x128xbf16>
    %3 = vector.shape_cast %2 : vector<1x128x128xbf16> to vector<128x128xbf16>
    %cst = arith.constant dense<0.000000e+00> : vector<16x128xf32>
    %4 = tpu.matmul %1, %3, %cst {dimension_numbers = #tpu.dot_dimension_numbers<[1], [0], [0], [1], [0, 0, 1, 1], [], []>} : vector<16x128xbf16>, vector<128x128xbf16>, vector<16x128xf32> -> vector<16x128xf32>
    %5 = arith.truncf %4 : vector<16x128xf32> to vector<16x128xbf16>
    %c0_5 = arith.constant 0 : index
    %c0_6 = arith.constant 0 : index
    %c0_7 = arith.constant 0 : index
    %6 = vector.load %arg4[%c0_5, %c0_6, %c0_7] : memref<4x16x128xbf16, #tpu.memory_space<vmem>>, vector<1x16x128xbf16>
    %7 = vector.shape_cast %6 : vector<1x16x128xbf16> to vector<16x128xbf16>
    %8 = vector.shape_cast %5 : vector<16x128xbf16> to vector<1x16x128xbf16>
    tpu.vector_store %arg4[%c0_5, %c0_6, %c0_7], %8 {strides = array<i32>} : memref<4x16x128xbf16, #tpu.memory_space<vmem>>, vector<1x16x128xbf16>,
    %c1 = arith.constant 1 : index
    %c0_8 = arith.constant 0 : index
    %c0_9 = arith.constant 0 : index
    %9 = vector.load %arg2[%c1, %c0_8, %c0_9] : memref<4x16x128xbf16, #tpu.memory_space<vmem>>, vector<1x16x128xbf16>
    %10 = vector.shape_cast %9 : vector<1x16x128xbf16> to vector<16x128xbf16>
    %c1_10 = arith.constant 1 : index
    %c0_11 = arith.constant 0 : index
    %c0_12 = arith.constant 0 : index
    %11 = vector.load %arg3[%c1_10, %c0_11, %c0_12] : memref<4x128x128xbf16, #tpu.memory_space<vmem>>, vector<1x128x128xbf16>
    %12 = vector.shape_cast %11 : vector<1x128x128xbf16> to vector<128x128xbf16>
    %cst_13 = arith.constant dense<0.000000e+00> : vector<16x128xf32>
    %13 = tpu.matmul %10, %12, %cst_13 {dimension_numbers = #tpu.dot_dimension_numbers<[1], [0], [0], [1], [0, 0, 1, 1], [], []>} : vector<16x128xbf16>, vector<128x128xbf16>, vector<16x128xf32> -> vector<16x128xf32>
    %14 = arith.truncf %13 : vector<16x128xf32> to vector<16x128xbf16>
    %c1_14 = arith.constant 1 : index
    %c0_15 = arith.constant 0 : index
    %c0_16 = arith.constant 0 : index
    %15 = vector.load %arg4[%c1_14, %c0_15, %c0_16] : memref<4x16x128xbf16, #tpu.memory_space<vmem>>, vector<1x16x128xbf16>
    %16 = vector.shape_cast %15 : vector<1x16x128xbf16> to vector<16x128xbf16>
    %17 = vector.shape_cast %14 : vector<16x128xbf16> to vector<1x16x128xbf16>
    tpu.vector_store %arg4[%c1_14, %c0_15, %c0_16], %17 {strides = array<i32>} : memref<4x16x128xbf16, #tpu.memory_space<vmem>>, vector<1x16x128xbf16>,
    %c2 = arith.constant 2 : index
    %c0_17 = arith.constant 0 : index
    %c0_18 = arith.constant 0 : index
    %18 = vector.load %arg2[%c2, %c0_17, %c0_18] : memref<4x16x128xbf16, #tpu.memory_space<vmem>>, vector<1x16x128xbf16>
    %19 = vector.shape_cast %18 : vector<1x16x128xbf16> to vector<16x128xbf16>
    %c2_19 = arith.constant 2 : index
    %c0_20 = arith.constant 0 : index
    %c0_21 = arith.constant 0 : index
    %20 = vector.load %arg3[%c2_19, %c0_20, %c0_21] : memref<4x128x128xbf16, #tpu.memory_space<vmem>>, vector<1x128x128xbf16>
    %21 = vector.shape_cast %20 : vector<1x128x128xbf16> to vector<128x128xbf16>
    %cst_22 = arith.constant dense<0.000000e+00> : vector<16x128xf32>
    %22 = tpu.matmul %19, %21, %cst_22 {dimension_numbers = #tpu.dot_dimension_numbers<[1], [0], [0], [1], [0, 0, 1, 1], [], []>} : vector<16x128xbf16>, vector<128x128xbf16>, vector<16x128xf32> -> vector<16x128xf32>
    %23 = arith.truncf %22 : vector<16x128xf32> to vector<16x128xbf16>
    %c2_23 = arith.constant 2 : index
    %c0_24 = arith.constant 0 : index
    %c0_25 = arith.constant 0 : index
    %24 = vector.load %arg4[%c2_23, %c0_24, %c0_25] : memref<4x16x128xbf16, #tpu.memory_space<vmem>>, vector<1x16x128xbf16>
    %25 = vector.shape_cast %24 : vector<1x16x128xbf16> to vector<16x128xbf16>
    %26 = vector.shape_cast %23 : vector<16x128xbf16> to vector<1x16x128xbf16>
    tpu.vector_store %arg4[%c2_23, %c0_24, %c0_25], %26 {strides = array<i32>} : memref<4x16x128xbf16, #tpu.memory_space<vmem>>, vector<1x16x128xbf16>,
    %c3 = arith.constant 3 : index
    %c0_26 = arith.constant 0 : index
    %c0_27 = arith.constant 0 : index
    %27 = vector.load %arg2[%c3, %c0_26, %c0_27] : memref<4x16x128xbf16, #tpu.memory_space<vmem>>, vector<1x16x128xbf16>
    %28 = vector.shape_cast %27 : vector<1x16x128xbf16> to vector<16x128xbf16>
    %c3_28 = arith.constant 3 : index
    %c0_29 = arith.constant 0 : index
    %c0_30 = arith.constant 0 : index
    %29 = vector.load %arg3[%c3_28, %c0_29, %c0_30] : memref<4x128x128xbf16, #tpu.memory_space<vmem>>, vector<1x128x128xbf16>
    %30 = vector.shape_cast %29 : vector<1x128x128xbf16> to vector<128x128xbf16>
    %cst_31 = arith.constant dense<0.000000e+00> : vector<16x128xf32>
    %31 = tpu.matmul %28, %30, %cst_31 {dimension_numbers = #tpu.dot_dimension_numbers<[1], [0], [0], [1], [0, 0, 1, 1], [], []>} : vector<16x128xbf16>, vector<128x128xbf16>, vector<16x128xf32> -> vector<16x128xf32>
    %32 = arith.truncf %31 : vector<16x128xf32> to vector<16x128xbf16>
    %c3_32 = arith.constant 3 : index
    %c0_33 = arith.constant 0 : index
    %c0_34 = arith.constant 0 : index
    %33 = vector.load %arg4[%c3_32, %c0_33, %c0_34] : memref<4x16x128xbf16, #tpu.memory_space<vmem>>, vector<1x16x128xbf16>
    %34 = vector.shape_cast %33 : vector<1x16x128xbf16> to vector<16x128xbf16>
    %35 = vector.shape_cast %32 : vector<16x128xbf16> to vector<1x16x128xbf16>
    tpu.vector_store %arg4[%c3_32, %c0_33, %c0_34], %35 {strides = array<i32>} : memref<4x16x128xbf16, #tpu.memory_space<vmem>>, vector<1x16x128xbf16>,
    return
  }
  func.func @transform_0(%arg0: i32, %arg1: i32) -> (i32, i32, i32) {
    %c0_i32 = arith.constant 0 : i32
    %c0_i32_0 = arith.constant 0 : i32
    %c0_i32_1 = arith.constant 0 : i32
    return %arg0, %c0_i32, %c0_i32_0 : i32, i32, i32
  }
  func.func @transform_1(%arg0: i32, %arg1: i32) -> (i32, i32, i32) {
    %c0_i32 = arith.constant 0 : i32
    %c0_i32_0 = arith.constant 0 : i32
    return %arg0, %c0_i32, %arg1 : i32, i32, i32
  }
  func.func @transform_2(%arg0: i32, %arg1: i32) -> (i32, i32, i32) {
    %c0_i32 = arith.constant 0 : i32
    %c0_i32_0 = arith.constant 0 : i32
    return %arg0, %c0_i32, %arg1 : i32, i32, i32
  }
}

module attributes {stable_mosaic.version = 11 : i64} {
  func.func @_block_matmul_kernel(%arg0: i32, %arg1: i32, %arg2: memref<8x16x128xbf16, #tpu.memory_space<vmem>>, %arg3: memref<8x128x128xbf16, #tpu.memory_space<vmem>>, %arg4: memref<8x16x128xbf16, #tpu.memory_space<vmem>>) attributes {dimension_semantics = [#tpu.dimension_semantics<parallel>, #tpu.dimension_semantics<parallel>], iteration_bounds = array<i64: 2, 1>, scalar_prefetch = 0 : i64, scratch_operands = 0 : i64, tpu.core_type = #tpu.core_type<tc>, window_params = [{transform_indices = @transform_0, window_bounds = array<i64: 8, 16, 128>}, {transform_indices = @transform_1, window_bounds = array<i64: 8, 128, 128>}, {transform_indices = @transform_2, window_bounds = array<i64: 8, 16, 128>}]} {
    %c0 = arith.constant 0 : index
    %c0_0 = arith.constant 0 : index
    %c0_1 = arith.constant 0 : index
    %0 = vector.load %arg2[%c0, %c0_0, %c0_1] : memref<8x16x128xbf16, #tpu.memory_space<vmem>>, vector<1x16x128xbf16>
    %1 = vector.shape_cast %0 : vector<1x16x128xbf16> to vector<16x128xbf16>
    %c0_2 = arith.constant 0 : index
    %c0_3 = arith.constant 0 : index
    %c0_4 = arith.constant 0 : index
    %2 = vector.load %arg3[%c0_2, %c0_3, %c0_4] : memref<8x128x128xbf16, #tpu.memory_space<vmem>>, vector<1x128x128xbf16>
    %3 = vector.shape_cast %2 : vector<1x128x128xbf16> to vector<128x128xbf16>
    %cst = arith.constant dense<0.000000e+00> : vector<16x128xf32>
    %4 = tpu.matmul %1, %3, %cst {dimension_numbers = #tpu.dot_dimension_numbers<[1], [0], [0], [1], [0, 0, 1, 1], [], []>} : vector<16x128xbf16>, vector<128x128xbf16>, vector<16x128xf32> -> vector<16x128xf32>
    %5 = arith.truncf %4 : vector<16x128xf32> to vector<16x128xbf16>
    %c0_5 = arith.constant 0 : index
    %c0_6 = arith.constant 0 : index
    %c0_7 = arith.constant 0 : index
    %6 = vector.load %arg4[%c0_5, %c0_6, %c0_7] : memref<8x16x128xbf16, #tpu.memory_space<vmem>>, vector<1x16x128xbf16>
    %7 = vector.shape_cast %6 : vector<1x16x128xbf16> to vector<16x128xbf16>
    %8 = vector.shape_cast %5 : vector<16x128xbf16> to vector<1x16x128xbf16>
    tpu.vector_store %arg4[%c0_5, %c0_6, %c0_7], %8 {strides = array<i32>} : memref<8x16x128xbf16, #tpu.memory_space<vmem>>, vector<1x16x128xbf16>,
    %c1 = arith.constant 1 : index
    %c0_8 = arith.constant 0 : index
    %c0_9 = arith.constant 0 : index
    %9 = vector.load %arg2[%c1, %c0_8, %c0_9] : memref<8x16x128xbf16, #tpu.memory_space<vmem>>, vector<1x16x128xbf16>
    %10 = vector.shape_cast %9 : vector<1x16x128xbf16> to vector<16x128xbf16>
    %c1_10 = arith.constant 1 : index
    %c0_11 = arith.constant 0 : index
    %c0_12 = arith.constant 0 : index
    %11 = vector.load %arg3[%c1_10, %c0_11, %c0_12] : memref<8x128x128xbf16, #tpu.memory_space<vmem>>, vector<1x128x128xbf16>
    %12 = vector.shape_cast %11 : vector<1x128x128xbf16> to vector<128x128xbf16>
    %cst_13 = arith.constant dense<0.000000e+00> : vector<16x128xf32>
    %13 = tpu.matmul %10, %12, %cst_13 {dimension_numbers = #tpu.dot_dimension_numbers<[1], [0], [0], [1], [0, 0, 1, 1], [], []>} : vector<16x128xbf16>, vector<128x128xbf16>, vector<16x128xf32> -> vector<16x128xf32>
    %14 = arith.truncf %13 : vector<16x128xf32> to vector<16x128xbf16>
    %c1_14 = arith.constant 1 : index
    %c0_15 = arith.constant 0 : index
    %c0_16 = arith.constant 0 : index
    %15 = vector.load %arg4[%c1_14, %c0_15, %c0_16] : memref<8x16x128xbf16, #tpu.memory_space<vmem>>, vector<1x16x128xbf16>
    %16 = vector.shape_cast %15 : vector<1x16x128xbf16> to vector<16x128xbf16>
    %17 = vector.shape_cast %14 : vector<16x128xbf16> to vector<1x16x128xbf16>
    tpu.vector_store %arg4[%c1_14, %c0_15, %c0_16], %17 {strides = array<i32>} : memref<8x16x128xbf16, #tpu.memory_space<vmem>>, vector<1x16x128xbf16>,
    %c2 = arith.constant 2 : index
    %c0_17 = arith.constant 0 : index
    %c0_18 = arith.constant 0 : index
    %18 = vector.load %arg2[%c2, %c0_17, %c0_18] : memref<8x16x128xbf16, #tpu.memory_space<vmem>>, vector<1x16x128xbf16>
    %19 = vector.shape_cast %18 : vector<1x16x128xbf16> to vector<16x128xbf16>
    %c2_19 = arith.constant 2 : index
    %c0_20 = arith.constant 0 : index
    %c0_21 = arith.constant 0 : index
    %20 = vector.load %arg3[%c2_19, %c0_20, %c0_21] : memref<8x128x128xbf16, #tpu.memory_space<vmem>>, vector<1x128x128xbf16>
    %21 = vector.shape_cast %20 : vector<1x128x128xbf16> to vector<128x128xbf16>
    %cst_22 = arith.constant dense<0.000000e+00> : vector<16x128xf32>
    %22 = tpu.matmul %19, %21, %cst_22 {dimension_numbers = #tpu.dot_dimension_numbers<[1], [0], [0], [1], [0, 0, 1, 1], [], []>} : vector<16x128xbf16>, vector<128x128xbf16>, vector<16x128xf32> -> vector<16x128xf32>
    %23 = arith.truncf %22 : vector<16x128xf32> to vector<16x128xbf16>
    %c2_23 = arith.constant 2 : index
    %c0_24 = arith.constant 0 : index
    %c0_25 = arith.constant 0 : index
    %24 = vector.load %arg4[%c2_23, %c0_24, %c0_25] : memref<8x16x128xbf16, #tpu.memory_space<vmem>>, vector<1x16x128xbf16>
    %25 = vector.shape_cast %24 : vector<1x16x128xbf16> to vector<16x128xbf16>
    %26 = vector.shape_cast %23 : vector<16x128xbf16> to vector<1x16x128xbf16>
    tpu.vector_store %arg4[%c2_23, %c0_24, %c0_25], %26 {strides = array<i32>} : memref<8x16x128xbf16, #tpu.memory_space<vmem>>, vector<1x16x128xbf16>,
    %c3 = arith.constant 3 : index
    %c0_26 = arith.constant 0 : index
    %c0_27 = arith.constant 0 : index
    %27 = vector.load %arg2[%c3, %c0_26, %c0_27] : memref<8x16x128xbf16, #tpu.memory_space<vmem>>, vector<1x16x128xbf16>
    %28 = vector.shape_cast %27 : vector<1x16x128xbf16> to vector<16x128xbf16>
    %c3_28 = arith.constant 3 : index
    %c0_29 = arith.constant 0 : index
    %c0_30 = arith.constant 0 : index
    %29 = vector.load %arg3[%c3_28, %c0_29, %c0_30] : memref<8x128x128xbf16, #tpu.memory_space<vmem>>, vector<1x128x128xbf16>
    %30 = vector.shape_cast %29 : vector<1x128x128xbf16> to vector<128x128xbf16>
    %cst_31 = arith.constant dense<0.000000e+00> : vector<16x128xf32>
    %31 = tpu.matmul %28, %30, %cst_31 {dimension_numbers = #tpu.dot_dimension_numbers<[1], [0], [0], [1], [0, 0, 1, 1], [], []>} : vector<16x128xbf16>, vector<128x128xbf16>, vector<16x128xf32> -> vector<16x128xf32>
    %32 = arith.truncf %31 : vector<16x128xf32> to vector<16x128xbf16>
    %c3_32 = arith.constant 3 : index
    %c0_33 = arith.constant 0 : index
    %c0_34 = arith.constant 0 : index
    %33 = vector.load %arg4[%c3_32, %c0_33, %c0_34] : memref<8x16x128xbf16, #tpu.memory_space<vmem>>, vector<1x16x128xbf16>
    %34 = vector.shape_cast %33 : vector<1x16x128xbf16> to vector<16x128xbf16>
    %35 = vector.shape_cast %32 : vector<16x128xbf16> to vector<1x16x128xbf16>
    tpu.vector_store %arg4[%c3_32, %c0_33, %c0_34], %35 {strides = array<i32>} : memref<8x16x128xbf16, #tpu.memory_space<vmem>>, vector<1x16x128xbf16>,
    %c4 = arith.constant 4 : index
    %c0_35 = arith.constant 0 : index
    %c0_36 = arith.constant 0 : index
    %36 = vector.load %arg2[%c4, %c0_35, %c0_36] : memref<8x16x128xbf16, #tpu.memory_space<vmem>>, vector<1x16x128xbf16>
    %37 = vector.shape_cast %36 : vector<1x16x128xbf16> to vector<16x128xbf16>
    %c4_37 = arith.constant 4 : index
    %c0_38 = arith.constant 0 : index
    %c0_39 = arith.constant 0 : index
    %38 = vector.load %arg3[%c4_37, %c0_38, %c0_39] : memref<8x128x128xbf16, #tpu.memory_space<vmem>>, vector<1x128x128xbf16>
    %39 = vector.shape_cast %38 : vector<1x128x128xbf16> to vector<128x128xbf16>
    %cst_40 = arith.constant dense<0.000000e+00> : vector<16x128xf32>
    %40 = tpu.matmul %37, %39, %cst_40 {dimension_numbers = #tpu.dot_dimension_numbers<[1], [0], [0], [1], [0, 0, 1, 1], [], []>} : vector<16x128xbf16>, vector<128x128xbf16>, vector<16x128xf32> -> vector<16x128xf32>
    %41 = arith.truncf %40 : vector<16x128xf32> to vector<16x128xbf16>
    %c4_41 = arith.constant 4 : index
    %c0_42 = arith.constant 0 : index
    %c0_43 = arith.constant 0 : index
    %42 = vector.load %arg4[%c4_41, %c0_42, %c0_43] : memref<8x16x128xbf16, #tpu.memory_space<vmem>>, vector<1x16x128xbf16>
    %43 = vector.shape_cast %42 : vector<1x16x128xbf16> to vector<16x128xbf16>
    %44 = vector.shape_cast %41 : vector<16x128xbf16> to vector<1x16x128xbf16>
    tpu.vector_store %arg4[%c4_41, %c0_42, %c0_43], %44 {strides = array<i32>} : memref<8x16x128xbf16, #tpu.memory_space<vmem>>, vector<1x16x128xbf16>,
    %c5 = arith.constant 5 : index
    %c0_44 = arith.constant 0 : index
    %c0_45 = arith.constant 0 : index
    %45 = vector.load %arg2[%c5, %c0_44, %c0_45] : memref<8x16x128xbf16, #tpu.memory_space<vmem>>, vector<1x16x128xbf16>
    %46 = vector.shape_cast %45 : vector<1x16x128xbf16> to vector<16x128xbf16>
    %c5_46 = arith.constant 5 : index
    %c0_47 = arith.constant 0 : index
    %c0_48 = arith.constant 0 : index
    %47 = vector.load %arg3[%c5_46, %c0_47, %c0_48] : memref<8x128x128xbf16, #tpu.memory_space<vmem>>, vector<1x128x128xbf16>
    %48 = vector.shape_cast %47 : vector<1x128x128xbf16> to vector<128x128xbf16>
    %cst_49 = arith.constant dense<0.000000e+00> : vector<16x128xf32>
    %49 = tpu.matmul %46, %48, %cst_49 {dimension_numbers = #tpu.dot_dimension_numbers<[1], [0], [0], [1], [0, 0, 1, 1], [], []>} : vector<16x128xbf16>, vector<128x128xbf16>, vector<16x128xf32> -> vector<16x128xf32>
    %50 = arith.truncf %49 : vector<16x128xf32> to vector<16x128xbf16>
    %c5_50 = arith.constant 5 : index
    %c0_51 = arith.constant 0 : index
    %c0_52 = arith.constant 0 : index
    %51 = vector.load %arg4[%c5_50, %c0_51, %c0_52] : memref<8x16x128xbf16, #tpu.memory_space<vmem>>, vector<1x16x128xbf16>
    %52 = vector.shape_cast %51 : vector<1x16x128xbf16> to vector<16x128xbf16>
    %53 = vector.shape_cast %50 : vector<16x128xbf16> to vector<1x16x128xbf16>
    tpu.vector_store %arg4[%c5_50, %c0_51, %c0_52], %53 {strides = array<i32>} : memref<8x16x128xbf16, #tpu.memory_space<vmem>>, vector<1x16x128xbf16>,
    %c6 = arith.constant 6 : index
    %c0_53 = arith.constant 0 : index
    %c0_54 = arith.constant 0 : index
    %54 = vector.load %arg2[%c6, %c0_53, %c0_54] : memref<8x16x128xbf16, #tpu.memory_space<vmem>>, vector<1x16x128xbf16>
    %55 = vector.shape_cast %54 : vector<1x16x128xbf16> to vector<16x128xbf16>
    %c6_55 = arith.constant 6 : index
    %c0_56 = arith.constant 0 : index
    %c0_57 = arith.constant 0 : index
    %56 = vector.load %arg3[%c6_55, %c0_56, %c0_57] : memref<8x128x128xbf16, #tpu.memory_space<vmem>>, vector<1x128x128xbf16>
    %57 = vector.shape_cast %56 : vector<1x128x128xbf16> to vector<128x128xbf16>
    %cst_58 = arith.constant dense<0.000000e+00> : vector<16x128xf32>
    %58 = tpu.matmul %55, %57, %cst_58 {dimension_numbers = #tpu.dot_dimension_numbers<[1], [0], [0], [1], [0, 0, 1, 1], [], []>} : vector<16x128xbf16>, vector<128x128xbf16>, vector<16x128xf32> -> vector<16x128xf32>
    %59 = arith.truncf %58 : vector<16x128xf32> to vector<16x128xbf16>
    %c6_59 = arith.constant 6 : index
    %c0_60 = arith.constant 0 : index
    %c0_61 = arith.constant 0 : index
    %60 = vector.load %arg4[%c6_59, %c0_60, %c0_61] : memref<8x16x128xbf16, #tpu.memory_space<vmem>>, vector<1x16x128xbf16>
    %61 = vector.shape_cast %60 : vector<1x16x128xbf16> to vector<16x128xbf16>
    %62 = vector.shape_cast %59 : vector<16x128xbf16> to vector<1x16x128xbf16>
    tpu.vector_store %arg4[%c6_59, %c0_60, %c0_61], %62 {strides = array<i32>} : memref<8x16x128xbf16, #tpu.memory_space<vmem>>, vector<1x16x128xbf16>,
    %c7 = arith.constant 7 : index
    %c0_62 = arith.constant 0 : index
    %c0_63 = arith.constant 0 : index
    %63 = vector.load %arg2[%c7, %c0_62, %c0_63] : memref<8x16x128xbf16, #tpu.memory_space<vmem>>, vector<1x16x128xbf16>
    %64 = vector.shape_cast %63 : vector<1x16x128xbf16> to vector<16x128xbf16>
    %c7_64 = arith.constant 7 : index
    %c0_65 = arith.constant 0 : index
    %c0_66 = arith.constant 0 : index
    %65 = vector.load %arg3[%c7_64, %c0_65, %c0_66] : memref<8x128x128xbf16, #tpu.memory_space<vmem>>, vector<1x128x128xbf16>
    %66 = vector.shape_cast %65 : vector<1x128x128xbf16> to vector<128x128xbf16>
    %cst_67 = arith.constant dense<0.000000e+00> : vector<16x128xf32>
    %67 = tpu.matmul %64, %66, %cst_67 {dimension_numbers = #tpu.dot_dimension_numbers<[1], [0], [0], [1], [0, 0, 1, 1], [], []>} : vector<16x128xbf16>, vector<128x128xbf16>, vector<16x128xf32> -> vector<16x128xf32>
    %68 = arith.truncf %67 : vector<16x128xf32> to vector<16x128xbf16>
    %c7_68 = arith.constant 7 : index
    %c0_69 = arith.constant 0 : index
    %c0_70 = arith.constant 0 : index
    %69 = vector.load %arg4[%c7_68, %c0_69, %c0_70] : memref<8x16x128xbf16, #tpu.memory_space<vmem>>, vector<1x16x128xbf16>
    %70 = vector.shape_cast %69 : vector<1x16x128xbf16> to vector<16x128xbf16>
    %71 = vector.shape_cast %68 : vector<16x128xbf16> to vector<1x16x128xbf16>
    tpu.vector_store %arg4[%c7_68, %c0_69, %c0_70], %71 {strides = array<i32>} : memref<8x16x128xbf16, #tpu.memory_space<vmem>>, vector<1x16x128xbf16>,
    return
  }
  func.func @transform_0(%arg0: i32, %arg1: i32) -> (i32, i32, i32) {
    %c0_i32 = arith.constant 0 : i32
    %c0_i32_0 = arith.constant 0 : i32
    %c0_i32_1 = arith.constant 0 : i32
    return %arg0, %c0_i32, %c0_i32_0 : i32, i32, i32
  }
  func.func @transform_1(%arg0: i32, %arg1: i32) -> (i32, i32, i32) {
    %c0_i32 = arith.constant 0 : i32
    %c0_i32_0 = arith.constant 0 : i32
    return %arg0, %c0_i32, %arg1 : i32, i32, i32
  }
  func.func @transform_2(%arg0: i32, %arg1: i32) -> (i32, i32, i32) {
    %c0_i32 = arith.constant 0 : i32
    %c0_i32_0 = arith.constant 0 : i32
    return %arg0, %c0_i32, %arg1 : i32, i32, i32
  }
}

module attributes {stable_mosaic.version = 11 : i64} {
  func.func @_block_matmul_kernel(%arg0: i32, %arg1: i32, %arg2: memref<4x16x128xbf16, #tpu.memory_space<vmem>>, %arg3: memref<4x128x128xbf16, #tpu.memory_space<vmem>>, %arg4: memref<4x16x128xf32, #tpu.memory_space<vmem>>) attributes {dimension_semantics = [#tpu.dimension_semantics<parallel>, #tpu.dimension_semantics<parallel>], iteration_bounds = array<i64: 2, 1>, scalar_prefetch = 0 : i64, scratch_operands = 0 : i64, tpu.core_type = #tpu.core_type<tc>, window_params = [{transform_indices = @transform_0, window_bounds = array<i64: 4, 16, 128>}, {transform_indices = @transform_1, window_bounds = array<i64: 4, 128, 128>}, {transform_indices = @transform_2, window_bounds = array<i64: 4, 16, 128>}]} {
    %c0 = arith.constant 0 : index
    %c0_0 = arith.constant 0 : index
    %c0_1 = arith.constant 0 : index
    %0 = vector.load %arg2[%c0, %c0_0, %c0_1] : memref<4x16x128xbf16, #tpu.memory_space<vmem>>, vector<1x16x128xbf16>
    %1 = vector.shape_cast %0 : vector<1x16x128xbf16> to vector<16x128xbf16>
    %c0_2 = arith.constant 0 : index
    %c0_3 = arith.constant 0 : index
    %c0_4 = arith.constant 0 : index
    %2 = vector.load %arg3[%c0_2, %c0_3, %c0_4] : memref<4x128x128xbf16, #tpu.memory_space<vmem>>, vector<1x128x128xbf16>
    %3 = vector.shape_cast %2 : vector<1x128x128xbf16> to vector<128x128xbf16>
    %cst = arith.constant dense<0.000000e+00> : vector<16x128xf32>
    %4 = tpu.matmul %1, %3, %cst {dimension_numbers = #tpu.dot_dimension_numbers<[1], [0], [0], [1], [0, 0, 1, 1], [], []>} : vector<16x128xbf16>, vector<128x128xbf16>, vector<16x128xf32> -> vector<16x128xf32>
    %c0_5 = arith.constant 0 : index
    %c0_6 = arith.constant 0 : index
    %c0_7 = arith.constant 0 : index
    %5 = vector.load %arg4[%c0_5, %c0_6, %c0_7] : memref<4x16x128xf32, #tpu.memory_space<vmem>>, vector<1x16x128xf32>
    %6 = vector.shape_cast %5 : vector<1x16x128xf32> to vector<16x128xf32>
    %7 = vector.shape_cast %4 : vector<16x128xf32> to vector<1x16x128xf32>
    tpu.vector_store %arg4[%c0_5, %c0_6, %c0_7], %7 {strides = array<i32>} : memref<4x16x128xf32, #tpu.memory_space<vmem>>, vector<1x16x128xf32>,
    %c1 = arith.constant 1 : index
    %c0_8 = arith.constant 0 : index
    %c0_9 = arith.constant 0 : index
    %8 = vector.load %arg2[%c1, %c0_8, %c0_9] : memref<4x16x128xbf16, #tpu.memory_space<vmem>>, vector<1x16x128xbf16>
    %9 = vector.shape_cast %8 : vector<1x16x128xbf16> to vector<16x128xbf16>
    %c1_10 = arith.constant 1 : index
    %c0_11 = arith.constant 0 : index
    %c0_12 = arith.constant 0 : index
    %10 = vector.load %arg3[%c1_10, %c0_11, %c0_12] : memref<4x128x128xbf16, #tpu.memory_space<vmem>>, vector<1x128x128xbf16>
    %11 = vector.shape_cast %10 : vector<1x128x128xbf16> to vector<128x128xbf16>
    %cst_13 = arith.constant dense<0.000000e+00> : vector<16x128xf32>
    %12 = tpu.matmul %9, %11, %cst_13 {dimension_numbers = #tpu.dot_dimension_numbers<[1], [0], [0], [1], [0, 0, 1, 1], [], []>} : vector<16x128xbf16>, vector<128x128xbf16>, vector<16x128xf32> -> vector<16x128xf32>
    %c1_14 = arith.constant 1 : index
    %c0_15 = arith.constant 0 : index
    %c0_16 = arith.constant 0 : index
    %13 = vector.load %arg4[%c1_14, %c0_15, %c0_16] : memref<4x16x128xf32, #tpu.memory_space<vmem>>, vector<1x16x128xf32>
    %14 = vector.shape_cast %13 : vector<1x16x128xf32> to vector<16x128xf32>
    %15 = vector.shape_cast %12 : vector<16x128xf32> to vector<1x16x128xf32>
    tpu.vector_store %arg4[%c1_14, %c0_15, %c0_16], %15 {strides = array<i32>} : memref<4x16x128xf32, #tpu.memory_space<vmem>>, vector<1x16x128xf32>,
    %c2 = arith.constant 2 : index
    %c0_17 = arith.constant 0 : index
    %c0_18 = arith.constant 0 : index
    %16 = vector.load %arg2[%c2, %c0_17, %c0_18] : memref<4x16x128xbf16, #tpu.memory_space<vmem>>, vector<1x16x128xbf16>
    %17 = vector.shape_cast %16 : vector<1x16x128xbf16> to vector<16x128xbf16>
    %c2_19 = arith.constant 2 : index
    %c0_20 = arith.constant 0 : index
    %c0_21 = arith.constant 0 : index
    %18 = vector.load %arg3[%c2_19, %c0_20, %c0_21] : memref<4x128x128xbf16, #tpu.memory_space<vmem>>, vector<1x128x128xbf16>
    %19 = vector.shape_cast %18 : vector<1x128x128xbf16> to vector<128x128xbf16>
    %cst_22 = arith.constant dense<0.000000e+00> : vector<16x128xf32>
    %20 = tpu.matmul %17, %19, %cst_22 {dimension_numbers = #tpu.dot_dimension_numbers<[1], [0], [0], [1], [0, 0, 1, 1], [], []>} : vector<16x128xbf16>, vector<128x128xbf16>, vector<16x128xf32> -> vector<16x128xf32>
    %c2_23 = arith.constant 2 : index
    %c0_24 = arith.constant 0 : index
    %c0_25 = arith.constant 0 : index
    %21 = vector.load %arg4[%c2_23, %c0_24, %c0_25] : memref<4x16x128xf32, #tpu.memory_space<vmem>>, vector<1x16x128xf32>
    %22 = vector.shape_cast %21 : vector<1x16x128xf32> to vector<16x128xf32>
    %23 = vector.shape_cast %20 : vector<16x128xf32> to vector<1x16x128xf32>
    tpu.vector_store %arg4[%c2_23, %c0_24, %c0_25], %23 {strides = array<i32>} : memref<4x16x128xf32, #tpu.memory_space<vmem>>, vector<1x16x128xf32>,
    %c3 = arith.constant 3 : index
    %c0_26 = arith.constant 0 : index
    %c0_27 = arith.constant 0 : index
    %24 = vector.load %arg2[%c3, %c0_26, %c0_27] : memref<4x16x128xbf16, #tpu.memory_space<vmem>>, vector<1x16x128xbf16>
    %25 = vector.shape_cast %24 : vector<1x16x128xbf16> to vector<16x128xbf16>
    %c3_28 = arith.constant 3 : index
    %c0_29 = arith.constant 0 : index
    %c0_30 = arith.constant 0 : index
    %26 = vector.load %arg3[%c3_28, %c0_29, %c0_30] : memref<4x128x128xbf16, #tpu.memory_space<vmem>>, vector<1x128x128xbf16>
    %27 = vector.shape_cast %26 : vector<1x128x128xbf16> to vector<128x128xbf16>
    %cst_31 = arith.constant dense<0.000000e+00> : vector<16x128xf32>
    %28 = tpu.matmul %25, %27, %cst_31 {dimension_numbers = #tpu.dot_dimension_numbers<[1], [0], [0], [1], [0, 0, 1, 1], [], []>} : vector<16x128xbf16>, vector<128x128xbf16>, vector<16x128xf32> -> vector<16x128xf32>
    %c3_32 = arith.constant 3 : index
    %c0_33 = arith.constant 0 : index
    %c0_34 = arith.constant 0 : index
    %29 = vector.load %arg4[%c3_32, %c0_33, %c0_34] : memref<4x16x128xf32, #tpu.memory_space<vmem>>, vector<1x16x128xf32>
    %30 = vector.shape_cast %29 : vector<1x16x128xf32> to vector<16x128xf32>
    %31 = vector.shape_cast %28 : vector<16x128xf32> to vector<1x16x128xf32>
    tpu.vector_store %arg4[%c3_32, %c0_33, %c0_34], %31 {strides = array<i32>} : memref<4x16x128xf32, #tpu.memory_space<vmem>>, vector<1x16x128xf32>,
    return
  }
  func.func @transform_0(%arg0: i32, %arg1: i32) -> (i32, i32, i32) {
    %c0_i32 = arith.constant 0 : i32
    %c0_i32_0 = arith.constant 0 : i32
    %c0_i32_1 = arith.constant 0 : i32
    return %arg0, %c0_i32, %c0_i32_0 : i32, i32, i32
  }
  func.func @transform_1(%arg0: i32, %arg1: i32) -> (i32, i32, i32) {
    %c0_i32 = arith.constant 0 : i32
    %c0_i32_0 = arith.constant 0 : i32
    return %arg0, %c0_i32, %arg1 : i32, i32, i32
  }
  func.func @transform_2(%arg0: i32, %arg1: i32) -> (i32, i32, i32) {
    %c0_i32 = arith.constant 0 : i32
    %c0_i32_0 = arith.constant 0 : i32
    return %arg0, %c0_i32, %arg1 : i32, i32, i32
  }
}

</mosaic_0001>

<llo_original>
// kernel: _forward_impl.6
$region0: #{_forward_impl.6}
  #allocation0 [shape = 'u32[]', space=smem, size = 0x4, offset = 0x4, fixed_abs, tag = 'smem constant byte address 0x4 - core index']
  #allocation1 [shape = 'u32[144,128]{1,0:T(1,128)}', space=vmem, size = 0x12000, scoped, tag = 'internal scratch']
  %s0 = inlined_call_operand.vmem [shape: bf16[8,16,128], index: 0, kind: input, shape index: {}]
  %s1 = inlined_call_operand.vmem [shape: bf16[8,128,128], index: 1, kind: input, shape index: {}]
  %s2 = inlined_call_operand.vmem [shape: bf16[8,16,128], index: 2, kind: output, shape index: {}]
  %s3 = sld [smem:[#allocation0]]
  $region41: #{_forward_impl.6} parent=0
    _
  %s5 = ssub.s32 1, %s3
  %s6 = scalar_select 0, %s5, %s3
  loop: start=0, step=1, limit=4
  $region2: #{_forward_impl.6} parent=0 // loop_pre_header
    _
  $region3: #{_forward_impl.6} parent=0 // loop_header
    %s8 = sphi 0, %s12
    %p9 = scmp.ge.s32.totalorder %s8, 4
    %s15 = sphi 0, %s27
    %s16 = sphi 0, %s23
    %s17 = sphi 0, %s15
    %s18 = sphi 0, %s16
    %s19 = sphi 0, %s17
    %s20 = sphi 0, %s18
    %s30 = sphi 0, %s32
    %s33 = sphi 0, %s30
    %s34 = sphi 0, %s33
    %s50 = sphi 0, %s34
    %s58 = sphi 0, %s60
    %s61 = sphi 0, %s58
    %s62 = sphi 0, %s61
    %s78 = sphi 0, %s62
    %s86 = sphi 0, %s88
    %s89 = sphi 0, %s86
    %s90 = sphi 0, %s89
    %s106 = sphi 0, %s90
  $region4: #{_forward_impl.6} parent=0 // loop_header_branch
    %11 = sbr.rel (%p9) target = $region8
  $region5: #{_forward_impl.6} parent=0 // loop_body
    %s13 = ssub.s32 %s8, 1
    %s14 = ssub.s32 %s8, 2
    %s21 = sadd.s32 1, %s16
    %p22 = scmp.ge.s32.totalorder %s21, 1
    %s23 = scalar_select %p22, 0, %s21
    %s24 = sadd.s32 1, %s15
    %s25 = scalar_select %p22, %s24, %s15
    %p26 = scmp.ge.s32.totalorder %s25, 2
    %s27 = scalar_select %p26, 0, %s25
    %s28 = ssub.s32 %s15, %s27
    %p29 = scmp.eq.s32.totalorder %s28, 0
    %s31 = sadd.s32 %s30, 1
    %s32 = scalar_select %p29, %s30, %s31
    %p35 = pneg %p29
    %p36 = scmp.eq.s32.totalorder %s8, 1
    %p37 = por %p35, %p36
    %p38 = scmp.ne.s32.totalorder %s30, %s33
    %p39 = scmp.eq.s32.totalorder %s8, 0
    %p40 = por %p38, %p39
    %p41 = scmp.ne.s32.totalorder %s30, %s33
    %p42 = scmp.eq.s32.totalorder %s13, 1
    %p43 = por %p41, %p42
    %p44 = scmp.ne.s32.totalorder %s33, %s34
    %p45 = scmp.eq.s32.totalorder %s13, 0
    %p46 = por %p44, %p45
    %p47 = scmp.ne.s32.totalorder %s33, %s34
    %p48 = scmp.eq.s32.totalorder %s14, 1
    %p49 = por %p47, %p48
    %p51 = scmp.ne.s32.totalorder %s34, %s50
    %p52 = scmp.eq.s32.totalorder %s14, 0
    %p53 = por %p51, %p52
    %s54 = ssub.s32 %s15, %s27
    %s55 = ssub.s32 %s16, %s23
    %s56 = sor.u32 %s54, %s55
    %p57 = scmp.eq.s32.totalorder %s56, 0
    %s59 = sadd.s32 %s58, 1
    %s60 = scalar_select %p57, %s58, %s59
    %p63 = pneg %p57
    %p64 = scmp.eq.s32.totalorder %s8, 1
    %p65 = por %p63, %p64
    %p66 = scmp.ne.s32.totalorder %s58, %s61
    %p67 = scmp.eq.s32.totalorder %s8, 0
    %p68 = por %p66, %p67
    %p69 = scmp.ne.s32.totalorder %s58, %s61
    %p70 = scmp.eq.s32.totalorder %s13, 1
    %p71 = por %p69, %p70
    %p72 = scmp.ne.s32.totalorder %s61, %s62
    %p73 = scmp.eq.s32.totalorder %s13, 0
    %p74 = por %p72, %p73
    %p75 = scmp.ne.s32.totalorder %s61, %s62
    %p76 = scmp.eq.s32.totalorder %s14, 1
    %p77 = por %p75, %p76
    %p79 = scmp.ne.s32.totalorder %s62, %s78
    %p80 = scmp.eq.s32.totalorder %s14, 0
    %p81 = por %p79, %p80
    %s82 = ssub.s32 %s15, %s27
    %s83 = ssub.s32 %s16, %s23
    %s84 = sor.u32 %s82, %s83
    %p85 = scmp.eq.s32.totalorder %s84, 0
    %s87 = sadd.s32 %s86, 1
    %s88 = scalar_select %p85, %s86, %s87
    %p91 = pneg %p85
    %p92 = scmp.eq.s32.totalorder %s8, 1
    %p93 = por %p91, %p92
    %p94 = scmp.ne.s32.totalorder %s86, %s89
    %p95 = scmp.eq.s32.totalorder %s8, 0
    %p96 = por %p94, %p95
    %p97 = scmp.ne.s32.totalorder %s86, %s89
    %p98 = scmp.eq.s32.totalorder %s13, 1
    %p99 = por %p97, %p98
    %p100 = scmp.ne.s32.totalorder %s89, %s90
    %p101 = scmp.eq.s32.totalorder %s13, 0
    %p102 = por %p100, %p101
    %p103 = scmp.ne.s32.totalorder %s89, %s90
    %p104 = scmp.eq.s32.totalorder %s14, 1
    %p105 = por %p103, %p104
    %p107 = scmp.ne.s32.totalorder %s90, %s106
    %p108 = scmp.eq.s32.totalorder %s14, 0
    %p109 = por %p107, %p108
    %p110 = scmp.le.s32.totalorder 1, %s8
    %p111 = scmp.lt.s32.totalorder %s8, 3
    %p112 = pnand %p110, %p111
    %p113 = pneg %p112
    // Predicated region
    $region9: #{_forward_impl.6} parent=5 // pred_check
      _
    $region10: #{_forward_impl.6} parent=5 // pred_check_branch
      %115 = sbr.rel (%p112) target = $region12
    $region11: #{_forward_impl.6} parent=5 // pred_region
      %s116 = ssub.s32 %s8, 1
    $region12: #{_forward_impl.6} parent=5 // pred_fallthru
      _
    %p117 = scmp.lt.s32.totalorder %s8, 2
    // Predicated region
    $region13: #{_forward_impl.6} parent=5 // pred_check
      %p118 = pneg %p117
    $region14: #{_forward_impl.6} parent=5 // pred_check_branch
      %120 = sbr.rel (%p118) target = $region16
    $region15: #{_forward_impl.6} parent=5 // pred_region
      // Predicated region
      $region17: #{_forward_impl.6} parent=15 // pred_check
        %p121 = pneg %p40
      $region18: #{_forward_impl.6} parent=15 // pred_check_branch
        %123 = sbr.rel (%p121) target = $region20
      $region19: #{_forward_impl.6} parent=15 // pred_region
        %s124 = smul.u32 4, %s15
        %p125 = scmp.lt.s32.totalorder %s124, 7
        %s126 = scalar_select %p125, %s124, 7
        %s127 = smul.addr %s126, 2
        %s128 = smul.addr %s127, 4
        %s129 = scalar_lea.vmem %s0, %s128
        %s130 = smul.u32 4, %s15
      $region20: #{_forward_impl.6} parent=15 // pred_fallthru
        _
      // Predicated region
      $region21: #{_forward_impl.6} parent=15 // pred_check
        %p131 = pneg %p68
      $region22: #{_forward_impl.6} parent=15 // pred_check_branch
        %133 = sbr.rel (%p131) target = $region24
      $region23: #{_forward_impl.6} parent=15 // pred_region
        %s134 = smul.u32 4, %s15
        %p135 = scmp.lt.s32.totalorder %s134, 7
        %s136 = scalar_select %p135, %s134, 7
        %p137 = scmp.lt.s32.totalorder %s16, 0
        %s138 = scalar_select %p137, %s16, 0
        %s139 = smul.addr %s136, 16
        %s140 = sadd.s32 %s138, %s139
        %s141 = smul.addr %s140, 4
        %s142 = scalar_lea.vmem %s1, %s141
        %s143 = smul.u32 4, %s15
      $region24: #{_forward_impl.6} parent=15 // pred_fallthru
        _
    $region16: #{_forward_impl.6} parent=5 // pred_fallthru
      _
    %p144 = scmp.le.s32.totalorder 1, %s8
    %p145 = scmp.lt.s32.totalorder %s8, 3
    %p146 = pnand %p144, %p145
    %p147 = pneg %p146
    // Predicated region
    $region25: #{_forward_impl.6} parent=5 // pred_check
      _
    $region26: #{_forward_impl.6} parent=5 // pred_check_branch
      %149 = sbr.rel (%p146) target = $region28
    $region27: #{_forward_impl.6} parent=5 // pred_region
      %s150 = ssub.s32 %s8, 1
      %s151 = smul.u32 4, %s17
      %p152 = scmp.lt.s32.totalorder %s151, 7
      %s153 = scalar_select %p152, %s151, 7
      %s154 = smul.addr %s153, 2
      %s155 = smul.addr %s154, 4
      %s156 = scalar_lea.vmem %s0, %s155
      %p157 = pneg %p46
      %p158 = pneg %p43
      %s159 = smul.u32 4, %s17
      %p160 = scmp.lt.s32.totalorder %s159, 7
      %s161 = scalar_select %p160, %s159, 7
      %p162 = scmp.lt.s32.totalorder %s18, 0
      %s163 = scalar_select %p162, %s18, 0
      %s164 = smul.addr %s161, 16
      %s165 = sadd.s32 %s163, %s164
      %s166 = smul.addr %s165, 4
      %s167 = scalar_lea.vmem %s1, %s166
      %p168 = pneg %p74
      %p169 = pneg %p71
      %p170 = pneg %p102
      %p171 = pneg %p99
      %s172 = smul.u32 4, %s17
      %p173 = scmp.lt.s32.totalorder %s172, 7
      %s174 = scalar_select %p173, %s172, 7
      %p175 = scmp.lt.s32.totalorder %s18, 0
      %s176 = scalar_select %p175, %s18, 0
      %s177 = smul.addr %s174, 2
      %s178 = sadd.s32 %s176, %s177
      %s179 = smul.addr %s178, 4
      %s180 = scalar_lea.vmem %s2, %s179
      %s181 = smul.u32 4, %s17
      %p182 = scmp.lt.s32.totalorder %s181, 7
      %s183 = scalar_select %p182, %s181, 7
      %s184 = smul.addr %s183, 2
      %s185 = smul.addr %s184, 4
      %s186 = scalar_lea.vmem %s0, %s185
      %s187 = smul.u32 4, %s17
      %s188 = smul.u32 4, %s17
      %p189 = scmp.lt.s32.totalorder %s188, 7
      %s190 = scalar_select %p189, %s188, 7
      %p191 = scmp.lt.s32.totalorder %s18, 0
      %s192 = scalar_select %p191, %s18, 0
      %s193 = smul.addr %s190, 16
      %s194 = sadd.s32 %s192, %s193
      %s195 = smul.addr %s194, 4
      %s196 = scalar_lea.vmem %s1, %s195
      %s197 = smul.u32 4, %s17
      %s198 = smul.u32 4, %s17
      %p199 = scmp.lt.s32.totalorder %s198, 7
      %s200 = scalar_select %p199, %s198, 7
      %p201 = scmp.lt.s32.totalorder %s18, 0
      %s202 = scalar_select %p201, %s18, 0
      %s203 = smul.addr %s200, 2
      %s204 = sadd.s32 %s202, %s203
      %s205 = smul.addr %s204, 4
      %s206 = scalar_lea.vmem %s2, %s205
      %s207 = smul.u32 4, %s17
      %v209 = vld [vmem:[%s186] sm:$0xf]
      %v210 = vld [vmem:[%s186 + $0x4] sm:$0xf]
      %v211 = vld [vmem:[%s196] sm:$0xf]
      %v212 = vld [vmem:[%s196 + $0x4] sm:$0xf]
      %v213 = vld [vmem:[%s196 + $0x8] sm:$0xf]
      %v214 = vld [vmem:[%s196 + $0xc] sm:$0xf]
      %v215 = vld [vmem:[%s196 + $0x10] sm:$0xf]
      %v216 = vld [vmem:[%s196 + $0x14] sm:$0xf]
      %v217 = vld [vmem:[%s196 + $0x18] sm:$0xf]
      %v218 = vld [vmem:[%s196 + $0x1c] sm:$0xf]
      %v219 = vld [vmem:[%s196 + $0x20] sm:$0xf]
      %v220 = vld [vmem:[%s196 + $0x24] sm:$0xf]
      %v221 = vld [vmem:[%s196 + $0x28] sm:$0xf]
      %v222 = vld [vmem:[%s196 + $0x2c] sm:$0xf]
      %v223 = vld [vmem:[%s196 + $0x30] sm:$0xf]
      %v224 = vld [vmem:[%s196 + $0x34] sm:$0xf]
      %v225 = vld [vmem:[%s196 + $0x38] sm:$0xf]
      %v226 = vld [vmem:[%s196 + $0x3c] sm:$0xf]
      %v229 = vunpack.c.l.b16 %v209
      %v230 = vunpack.c.l.b16 %v210
      %v231 = vpack.c.b16 %v230, %v229
      %v249 = vunpack.c.l.b16 %v211
      %v250 = vunpack.c.l.b16 %v212
      %v251 = vunpack.c.l.b16 %v213
      %v252 = vunpack.c.l.b16 %v214
      %v253 = vunpack.c.l.b16 %v215
      %v254 = vunpack.c.l.b16 %v216
      %v255 = vunpack.c.l.b16 %v217
      %v256 = vunpack.c.l.b16 %v218
      %v257 = vunpack.c.l.b16 %v219
      %v258 = vunpack.c.l.b16 %v220
      %v259 = vunpack.c.l.b16 %v221
      %v260 = vunpack.c.l.b16 %v222
      %v261 = vunpack.c.l.b16 %v223
      %v262 = vunpack.c.l.b16 %v224
      %v263 = vunpack.c.l.b16 %v225
      %v264 = vunpack.c.l.b16 %v226
      %v265 = vpack.c.b16 %v250, %v249
      %v266 = vpack.c.b16 %v252, %v251
      %v267 = vpack.c.b16 %v254, %v253
      %v268 = vpack.c.b16 %v256, %v255
      %v269 = vpack.c.b16 %v258, %v257
      %v270 = vpack.c.b16 %v260, %v259
      %v271 = vpack.c.b16 %v262, %v261
      %v272 = vpack.c.b16 %v264, %v263
      %281 = vmatprep.subr.bf16.mxu0 0
      %282 = vmatpush1.bf16.msra.mxu0 %v265
      %283 = vmatprep.subr.bf16.mxu0 0
      %284 = vmatpush1.bf16.msra.mxu0 %v266
      %285 = vmatprep.subr.bf16.mxu0 0
      %286 = vmatpush1.bf16.msra.mxu0 %v267
      %287 = vmatprep.subr.bf16.mxu0 0
      %288 = vmatpush1.bf16.msra.mxu0 %v268
      %289 = vmatprep.subr.bf16.mxu0 0
      %290 = vmatpush1.bf16.msra.mxu0 %v269
      %291 = vmatprep.subr.bf16.mxu0 0
      %292 = vmatpush1.bf16.msra.mxu0 %v270
      %293 = vmatprep.subr.bf16.mxu0 0
      %294 = vmatpush1.bf16.msra.mxu0 %v271
      %295 = vmatprep.subr.bf16.mxu0 0
      %296 = vmatpush1.bf16.msra.mxu0 %v272
      %297 = vmatprep.subr.bf16.mxu0 0
      %298 = vmatpush1.bf16.msra.mxu0 0
      %299 = vmatprep.subr.bf16.mxu0 0
      %300 = vmatpush1.bf16.msra.mxu0 0
      %301 = vmatprep.subr.bf16.mxu0 0
      %302 = vmatpush1.bf16.msra.mxu0 0
      %303 = vmatprep.subr.bf16.mxu0 0
      %304 = vmatpush1.bf16.msra.mxu0 0
      %305 = vmatprep.subr.bf16.mxu0 0
      %306 = vmatpush1.bf16.msra.mxu0 0
      %307 = vmatprep.subr.bf16.mxu0 0
      %308 = vmatpush1.bf16.msra.mxu0 0
      %309 = vmatprep.subr.bf16.mxu0 0
      %310 = vmatpush1.bf16.msra.mxu0 0
      %311 = vmatprep.subr.bf16.mxu0 0
      %312 = vmatpush1.bf16.msra.mxu0 0
      %313 = vmatprep.mubr.bf16.mxu0 0
      %314 = vmatmul.mubr.bf16.gmra.mrb[0].mxu0 %v231
      %v315 = vpop.f32.mrb[0].mxu0
      %v316 = vadd.f32 0.0, %v315
      %v317 = vpop.f32.mrb[0].mxu0
      %v318 = vpop.f32.mrb[0].mxu0
      %v319 = vadd.f32 0.0, %v318
      %v320 = vpop.f32.mrb[0].mxu0
      %321 = vdwg.mxu0
      %v322 = vpack.c.bf16 %v319, %v316
      %v324 = vunpack.c.l.b16 %v322
      %v325 = vunpack.c.h.b16 %v322
      %v326 = vpack.c.b16 %v324, %v324
      %v327 = vpack.c.b16 %v325, %v325
      %330 = vst [vmem:[%s206] sm:$0xf] %v326
      %331 = vst [vmem:[%s206 + $0x4] sm:$0xf] %v327
      %s332 = scalar_lea.vmem %s186, 8
      %v333 = vld [vmem:[%s332] sm:$0xf]
      %v334 = vld [vmem:[%s332 + $0x4] sm:$0xf]
      %s335 = scalar_lea.vmem %s196, 64
      %v336 = vld [vmem:[%s335] sm:$0xf]
      %v337 = vld [vmem:[%s335 + $0x4] sm:$0xf]
      %v338 = vld [vmem:[%s335 + $0x8] sm:$0xf]
      %v339 = vld [vmem:[%s335 + $0xc] sm:$0xf]
      %v340 = vld [vmem:[%s335 + $0x10] sm:$0xf]
      %v341 = vld [vmem:[%s335 + $0x14] sm:$0xf]
      %v342 = vld [vmem:[%s335 + $0x18] sm:$0xf]
      %v343 = vld [vmem:[%s335 + $0x1c] sm:$0xf]
      %v344 = vld [vmem:[%s335 + $0x20] sm:$0xf]
      %v345 = vld [vmem:[%s335 + $0x24] sm:$0xf]
      %v346 = vld [vmem:[%s335 + $0x28] sm:$0xf]
      %v347 = vld [vmem:[%s335 + $0x2c] sm:$0xf]
      %v348 = vld [vmem:[%s335 + $0x30] sm:$0xf]
      %v349 = vld [vmem:[%s335 + $0x34] sm:$0xf]
      %v350 = vld [vmem:[%s335 + $0x38] sm:$0xf]
      %v351 = vld [vmem:[%s335 + $0x3c] sm:$0xf]
      %v354 = vunpack.c.l.b16 %v333
      %v355 = vunpack.c.l.b16 %v334
      %v356 = vpack.c.b16 %v355, %v354
      %v374 = vunpack.c.l.b16 %v336
      %v375 = vunpack.c.l.b16 %v337
      %v376 = vunpack.c.l.b16 %v338
      %v377 = vunpack.c.l.b16 %v339
      %v378 = vunpack.c.l.b16 %v340
      %v379 = vunpack.c.l.b16 %v341
      %v380 = vunpack.c.l.b16 %v342
      %v381 = vunpack.c.l.b16 %v343
      %v382 = vunpack.c.l.b16 %v344
      %v383 = vunpack.c.l.b16 %v345
      %v384 = vunpack.c.l.b16 %v346
      %v385 = vunpack.c.l.b16 %v347
      %v386 = vunpack.c.l.b16 %v348
      %v387 = vunpack.c.l.b16 %v349
      %v388 = vunpack.c.l.b16 %v350
      %v389 = vunpack.c.l.b16 %v351
      %v390 = vpack.c.b16 %v375, %v374
      %v391 = vpack.c.b16 %v377, %v376
      %v392 = vpack.c.b16 %v379, %v378
      %v393 = vpack.c.b16 %v381, %v380
      %v394 = vpack.c.b16 %v383, %v382
      %v395 = vpack.c.b16 %v385, %v384
      %v396 = vpack.c.b16 %v387, %v386
      %v397 = vpack.c.b16 %v389, %v388
      %406 = vmatprep.subr.bf16.mxu0 0
      %407 = vmatpush1.bf16.msra.mxu0 %v390
      %408 = vmatprep.subr.bf16.mxu0 0
      %409 = vmatpush1.bf16.msra.mxu0 %v391
      %410 = vmatprep.subr.bf16.mxu0 0
      %411 = vmatpush1.bf16.msra.mxu0 %v392
      %412 = vmatprep.subr.bf16.mxu0 0
      %413 = vmatpush1.bf16.msra.mxu0 %v393
      %414 = vmatprep.subr.bf16.mxu0 0
      %415 = vmatpush1.bf16.msra.mxu0 %v394
      %416 = vmatprep.subr.bf16.mxu0 0
      %417 = vmatpush1.bf16.msra.mxu0 %v395
      %418 = vmatprep.subr.bf16.mxu0 0
      %419 = vmatpush1.bf16.msra.mxu0 %v396
      %420 = vmatprep.subr.bf16.mxu0 0
      %421 = vmatpush1.bf16.msra.mxu0 %v397
      %422 = vmatprep.subr.bf16.mxu0 0
      %423 = vmatpush1.bf16.msra.mxu0 0
      %424 = vmatprep.subr.bf16.mxu0 0
      %425 = vmatpush1.bf16.msra.mxu0 0
      %426 = vmatprep.subr.bf16.mxu0 0
      %427 = vmatpush1.bf16.msra.mxu0 0
      %428 = vmatprep.subr.bf16.mxu0 0
      %429 = vmatpush1.bf16.msra.mxu0 0
      %430 = vmatprep.subr.bf16.mxu0 0
      %431 = vmatpush1.bf16.msra.mxu0 0
      %432 = vmatprep.subr.bf16.mxu0 0
      %433 = vmatpush1.bf16.msra.mxu0 0
      %434 = vmatprep.subr.bf16.mxu0 0
      %435 = vmatpush1.bf16.msra.mxu0 0
      %436 = vmatprep.subr.bf16.mxu0 0
      %437 = vmatpush1.bf16.msra.mxu0 0
      %438 = vmatprep.mubr.bf16.mxu0 0
      %439 = vmatmul.mubr.bf16.gmra.mrb[0].mxu0 %v356
      %v440 = vpop.f32.mrb[0].mxu0
      %v441 = vadd.f32 0.0, %v440
      %v442 = vpop.f32.mrb[0].mxu0
      %v443 = vpop.f32.mrb[0].mxu0
      %v444 = vadd.f32 0.0, %v443
      %v445 = vpop.f32.mrb[0].mxu0
      %446 = vdwg.mxu0
      %v447 = vpack.c.bf16 %v444, %v441
      %v449 = vunpack.c.l.b16 %v447
      %v450 = vunpack.c.h.b16 %v447
      %v451 = vpack.c.b16 %v449, %v449
      %v452 = vpack.c.b16 %v450, %v450
      %s455 = scalar_lea.vmem %s206, 8
      %456 = vst [vmem:[%s455] sm:$0xf] %v451
      %457 = vst [vmem:[%s455 + $0x4] sm:$0xf] %v452
      %s458 = scalar_lea.vmem %s186, 16
      %v459 = vld [vmem:[%s458] sm:$0xf]
      %v460 = vld [vmem:[%s458 + $0x4] sm:$0xf]
      %s461 = scalar_lea.vmem %s196, 128
      %v462 = vld [vmem:[%s461] sm:$0xf]
      %v463 = vld [vmem:[%s461 + $0x4] sm:$0xf]
      %v464 = vld [vmem:[%s461 + $0x8] sm:$0xf]
      %v465 = vld [vmem:[%s461 + $0xc] sm:$0xf]
      %v466 = vld [vmem:[%s461 + $0x10] sm:$0xf]
      %v467 = vld [vmem:[%s461 + $0x14] sm:$0xf]
      %v468 = vld [vmem:[%s461 + $0x18] sm:$0xf]
      %v469 = vld [vmem:[%s461 + $0x1c] sm:$0xf]
      %v470 = vld [vmem:[%s461 + $0x20] sm:$0xf]
      %v471 = vld [vmem:[%s461 + $0x24] sm:$0xf]
      %v472 = vld [vmem:[%s461 + $0x28] sm:$0xf]
      %v473 = vld [vmem:[%s461 + $0x2c] sm:$0xf]
      %v474 = vld [vmem:[%s461 + $0x30] sm:$0xf]
      %v475 = vld [vmem:[%s461 + $0x34] sm:$0xf]
      %v476 = vld [vmem:[%s461 + $0x38] sm:$0xf]
      %v477 = vld [vmem:[%s461 + $0x3c] sm:$0xf]
      %v480 = vunpack.c.l.b16 %v459
      %v481 = vunpack.c.l.b16 %v460
      %v482 = vpack.c.b16 %v481, %v480
      %v500 = vunpack.c.l.b16 %v462
      %v501 = vunpack.c.l.b16 %v463
      %v502 = vunpack.c.l.b16 %v464
      %v503 = vunpack.c.l.b16 %v465
      %v504 = vunpack.c.l.b16 %v466
      %v505 = vunpack.c.l.b16 %v467
      %v506 = vunpack.c.l.b16 %v468
      %v507 = vunpack.c.l.b16 %v469
      %v508 = vunpack.c.l.b16 %v470
      %v509 = vunpack.c.l.b16 %v471
      %v510 = vunpack.c.l.b16 %v472
      %v511 = vunpack.c.l.b16 %v473
      %v512 = vunpack.c.l.b16 %v474
      %v513 = vunpack.c.l.b16 %v475
      %v514 = vunpack.c.l.b16 %v476
      %v515 = vunpack.c.l.b16 %v477
      %v516 = vpack.c.b16 %v501, %v500
      %v517 = vpack.c.b16 %v503, %v502
      %v518 = vpack.c.b16 %v505, %v504
      %v519 = vpack.c.b16 %v507, %v506
      %v520 = vpack.c.b16 %v509, %v508
      %v521 = vpack.c.b16 %v511, %v510
      %v522 = vpack.c.b16 %v513, %v512
      %v523 = vpack.c.b16 %v515, %v514
      %532 = vmatprep.subr.bf16.mxu0 0
      %533 = vmatpush1.bf16.msra.mxu0 %v516
      %534 = vmatprep.subr.bf16.mxu0 0
      %535 = vmatpush1.bf16.msra.mxu0 %v517
      %536 = vmatprep.subr.bf16.mxu0 0
      %537 = vmatpush1.bf16.msra.mxu0 %v518
      %538 = vmatprep.subr.bf16.mxu0 0
      %539 = vmatpush1.bf16.msra.mxu0 %v519
      %540 = vmatprep.subr.bf16.mxu0 0
      %541 = vmatpush1.bf16.msra.mxu0 %v520
      %542 = vmatprep.subr.bf16.mxu0 0
      %543 = vmatpush1.bf16.msra.mxu0 %v521
      %544 = vmatprep.subr.bf16.mxu0 0
      %545 = vmatpush1.bf16.msra.mxu0 %v522
      %546 = vmatprep.subr.bf16.mxu0 0
      %547 = vmatpush1.bf16.msra.mxu0 %v523
      %548 = vmatprep.subr.bf16.mxu0 0
      %549 = vmatpush1.bf16.msra.mxu0 0
      %550 = vmatprep.subr.bf16.mxu0 0
      %551 = vmatpush1.bf16.msra.mxu0 0
      %552 = vmatprep.subr.bf16.mxu0 0
      %553 = vmatpush1.bf16.msra.mxu0 0
      %554 = vmatprep.subr.bf16.mxu0 0
      %555 = vmatpush1.bf16.msra.mxu0 0
      %556 = vmatprep.subr.bf16.mxu0 0
      %557 = vmatpush1.bf16.msra.mxu0 0
      %558 = vmatprep.subr.bf16.mxu0 0
      %559 = vmatpush1.bf16.msra.mxu0 0
      %560 = vmatprep.subr.bf16.mxu0 0
      %561 = vmatpush1.bf16.msra.mxu0 0
      %562 = vmatprep.subr.bf16.mxu0 0
      %563 = vmatpush1.bf16.msra.mxu0 0
      %564 = vmatprep.mubr.bf16.mxu0 0
      %565 = vmatmul.mubr.bf16.gmra.mrb[0].mxu0 %v482
      %v566 = vpop.f32.mrb[0].mxu0
      %v567 = vadd.f32 0.0, %v566
      %v568 = vpop.f32.mrb[0].mxu0
      %v569 = vpop.f32.mrb[0].mxu0
      %v570 = vadd.f32 0.0, %v569
      %v571 = vpop.f32.mrb[0].mxu0
      %572 = vdwg.mxu0
      %v573 = vpack.c.bf16 %v570, %v567
      %v575 = vunpack.c.l.b16 %v573
      %v576 = vunpack.c.h.b16 %v573
      %v577 = vpack.c.b16 %v575, %v575
      %v578 = vpack.c.b16 %v576, %v576
      %s581 = scalar_lea.vmem %s206, 16
      %582 = vst [vmem:[%s581] sm:$0xf] %v577
      %583 = vst [vmem:[%s581 + $0x4] sm:$0xf] %v578
      %s584 = scalar_lea.vmem %s186, 24
      %v585 = vld [vmem:[%s584] sm:$0xf]
      %v586 = vld [vmem:[%s584 + $0x4] sm:$0xf]
      %s587 = scalar_lea.vmem %s196, 192
      %v588 = vld [vmem:[%s587] sm:$0xf]
      %v589 = vld [vmem:[%s587 + $0x4] sm:$0xf]
      %v590 = vld [vmem:[%s587 + $0x8] sm:$0xf]
      %v591 = vld [vmem:[%s587 + $0xc] sm:$0xf]
      %v592 = vld [vmem:[%s587 + $0x10] sm:$0xf]
      %v593 = vld [vmem:[%s587 + $0x14] sm:$0xf]
      %v594 = vld [vmem:[%s587 + $0x18] sm:$0xf]
      %v595 = vld [vmem:[%s587 + $0x1c] sm:$0xf]
      %v596 = vld [vmem:[%s587 + $0x20] sm:$0xf]
      %v597 = vld [vmem:[%s587 + $0x24] sm:$0xf]
      %v598 = vld [vmem:[%s587 + $0x28] sm:$0xf]
      %v599 = vld [vmem:[%s587 + $0x2c] sm:$0xf]
      %v600 = vld [vmem:[%s587 + $0x30] sm:$0xf]
      %v601 = vld [vmem:[%s587 + $0x34] sm:$0xf]
      %v602 = vld [vmem:[%s587 + $0x38] sm:$0xf]
      %v603 = vld [vmem:[%s587 + $0x3c] sm:$0xf]
      %v606 = vunpack.c.l.b16 %v585
      %v607 = vunpack.c.l.b16 %v586
      %v608 = vpack.c.b16 %v607, %v606
      %v626 = vunpack.c.l.b16 %v588
      %v627 = vunpack.c.l.b16 %v589
      %v628 = vunpack.c.l.b16 %v590
      %v629 = vunpack.c.l.b16 %v591
      %v630 = vunpack.c.l.b16 %v592
      %v631 = vunpack.c.l.b16 %v593
      %v632 = vunpack.c.l.b16 %v594
      %v633 = vunpack.c.l.b16 %v595
      %v634 = vunpack.c.l.b16 %v596
      %v635 = vunpack.c.l.b16 %v597
      %v636 = vunpack.c.l.b16 %v598
      %v637 = vunpack.c.l.b16 %v599
      %v638 = vunpack.c.l.b16 %v600
      %v639 = vunpack.c.l.b16 %v601
      %v640 = vunpack.c.l.b16 %v602
      %v641 = vunpack.c.l.b16 %v603
      %v642 = vpack.c.b16 %v627, %v626
      %v643 = vpack.c.b16 %v629, %v628
      %v644 = vpack.c.b16 %v631, %v630
      %v645 = vpack.c.b16 %v633, %v632
      %v646 = vpack.c.b16 %v635, %v634
      %v647 = vpack.c.b16 %v637, %v636
      %v648 = vpack.c.b16 %v639, %v638
      %v649 = vpack.c.b16 %v641, %v640
      %658 = vmatprep.subr.bf16.mxu0 0
      %659 = vmatpush1.bf16.msra.mxu0 %v642
      %660 = vmatprep.subr.bf16.mxu0 0
      %661 = vmatpush1.bf16.msra.mxu0 %v643
      %662 = vmatprep.subr.bf16.mxu0 0
      %663 = vmatpush1.bf16.msra.mxu0 %v644
      %664 = vmatprep.subr.bf16.mxu0 0
      %665 = vmatpush1.bf16.msra.mxu0 %v645
      %666 = vmatprep.subr.bf16.mxu0 0
      %667 = vmatpush1.bf16.msra.mxu0 %v646
      %668 = vmatprep.subr.bf16.mxu0 0
      %669 = vmatpush1.bf16.msra.mxu0 %v647
      %670 = vmatprep.subr.bf16.mxu0 0
      %671 = vmatpush1.bf16.msra.mxu0 %v648
      %672 = vmatprep.subr.bf16.mxu0 0
      %673 = vmatpush1.bf16.msra.mxu0 %v649
      %674 = vmatprep.subr.bf16.mxu0 0
      %675 = vmatpush1.bf16.msra.mxu0 0
      %676 = vmatprep.subr.bf16.mxu0 0
      %677 = vmatpush1.bf16.msra.mxu0 0
      %678 = vmatprep.subr.bf16.mxu0 0
      %679 = vmatpush1.bf16.msra.mxu0 0
      %680 = vmatprep.subr.bf16.mxu0 0
      %681 = vmatpush1.bf16.msra.mxu0 0
      %682 = vmatprep.subr.bf16.mxu0 0
      %683 = vmatpush1.bf16.msra.mxu0 0
      %684 = vmatprep.subr.bf16.mxu0 0
      %685 = vmatpush1.bf16.msra.mxu0 0
      %686 = vmatprep.subr.bf16.mxu0 0
      %687 = vmatpush1.bf16.msra.mxu0 0
      %688 = vmatprep.subr.bf16.mxu0 0
      %689 = vmatpush1.bf16.msra.mxu0 0
      %690 = vmatprep.mubr.bf16.mxu0 0
      %691 = vmatmul.mubr.bf16.gmra.mrb[0].mxu0 %v608
      %v692 = vpop.f32.mrb[0].mxu0
      %v693 = vadd.f32 0.0, %v692
      %v694 = vpop.f32.mrb[0].mxu0
      %v695 = vpop.f32.mrb[0].mxu0
      %v696 = vadd.f32 0.0, %v695
      %v697 = vpop.f32.mrb[0].mxu0
      %698 = vdwg.mxu0
      %v699 = vpack.c.bf16 %v696, %v693
      %v701 = vunpack.c.l.b16 %v699
      %v702 = vunpack.c.h.b16 %v699
      %v703 = vpack.c.b16 %v701, %v701
      %v704 = vpack.c.b16 %v702, %v702
      %s707 = scalar_lea.vmem %s206, 24
      %708 = vst [vmem:[%s707] sm:$0xf] %v703
      %709 = vst [vmem:[%s707 + $0x4] sm:$0xf] %v704
      %s710 = smul.u32 4, %s17
      %p711 = scmp.lt.s32.totalorder %s710, 7
      %s712 = scalar_select %p711, %s710, 7
      %p713 = scmp.lt.s32.totalorder %s18, 0
      %s714 = scalar_select %p713, %s18, 0
      %s715 = smul.addr %s712, 2
      %s716 = sadd.s32 %s714, %s715
      %s717 = smul.addr %s716, 4
      %s718 = scalar_lea.vmem %s2, %s717
      // Predicated region
      $region29: #{_forward_impl.6} parent=27 // pred_check
        %p719 = pneg %p99
      $region30: #{_forward_impl.6} parent=27 // pred_check_branch
        %721 = sbr.rel (%p719) target = $region32
      $region31: #{_forward_impl.6} parent=27 // pred_region
        %s722 = smul.u32 4, %s17
      $region32: #{_forward_impl.6} parent=27 // pred_fallthru
        _
    $region28: #{_forward_impl.6} parent=5 // pred_fallthru
      _
    %p723 = scmp.le.s32.totalorder 2, %s8
    // Predicated region
    $region33: #{_forward_impl.6} parent=5 // pred_check
      %p724 = pneg %p723
    $region34: #{_forward_impl.6} parent=5 // pred_check_branch
      %726 = sbr.rel (%p724) target = $region36
    $region35: #{_forward_impl.6} parent=5 // pred_region
      %s727 = ssub.s32 %s8, 2
      // Predicated region
      $region37: #{_forward_impl.6} parent=35 // pred_check
        %p728 = pneg %p105
      $region38: #{_forward_impl.6} parent=35 // pred_check_branch
        %730 = sbr.rel (%p728) target = $region40
      $region39: #{_forward_impl.6} parent=35 // pred_region
        %s731 = smul.u32 4, %s19
        %p732 = scmp.lt.s32.totalorder %s731, 7
        %s733 = scalar_select %p732, %s731, 7
        %p734 = scmp.lt.s32.totalorder %s20, 0
        %s735 = scalar_select %p734, %s20, 0
        %s736 = smul.addr %s733, 2
        %s737 = sadd.s32 %s735, %s736
        %s738 = smul.addr %s737, 4
        %s739 = scalar_lea.vmem %s2, %s738
      $region40: #{_forward_impl.6} parent=35 // pred_fallthru
        _
    $region36: #{_forward_impl.6} parent=5 // pred_fallthru
      _
  $region6: #{_forward_impl.6} parent=0 // loop_footer
    %s12 = sadd.s32 1, %s8
  $region7: #{_forward_impl.6} parent=0 // loop_footer_branch
    %7 = sbr.rel target = $region3
  $region8: #{_forward_impl.6} parent=0 // loop_exit
    _

// kernel: reverse.1
$region0: #{reverse.1}
  %s0 = inlined_call_operand.vmem [shape: f32[2,4,16,7], index: 0, kind: input, shape index: {}]
  %s1 = inlined_call_operand.vmem [shape: f32[2,4,16,7], index: 1, kind: output, shape index: {}]
  $region1: #{reverse.1} parent=0
    #allocation0 [shape = 'u8[65536]{0}', space=vmem, size = 0x10000, scoped, tag = 'operand span for operand 0']
    #allocation1 [shape = 'u8[32768]{0}', space=vmem, size = 0x8000, scoped, tag = 'operand span for operand 1']
    %s2 = scalar_lea.vmem [#allocation0], 8
    // Predicated region
    $region2: #{reverse.1} parent=1 // pred_check
      _
    $region3: #{reverse.1} parent=1 // pred_check_branch
      %4 = sbr.rel (0) target = $region5
    $region4: #{reverse.1} parent=1 // pred_region
      // Predicated region
      $region6: #{reverse.1} parent=4 // pred_check
        _
      $region7: #{reverse.1} parent=4 // pred_check_branch
        %6 = sbr.rel (0) target = $region9
      $region8: #{reverse.1} parent=4 // pred_region
        // Predicated region
        $region21: #{reverse.1} parent=8 // pred_check
          _
        $region22: #{reverse.1} parent=8 // pred_check_branch
          %35 = sbr.rel (0) target = $region24
        $region23: #{reverse.1} parent=8 // pred_region
          loop: start=0, step=1, limit=1
          $region25: #{reverse.1} parent=23 // loop_pre_header
            _
          $region26: #{reverse.1} parent=23 // loop_header
            %s37 = sphi 0, %s41
            %p38 = scmp.ge.s32.totalorder %s37, 1
            %s42 = sphi %s0, %s0
            %s43 = sphi %s2, %s2
          $region27: #{reverse.1} parent=23 // loop_header_branch
            %40 = sbr.rel (%p38) target = $region31
          $region28: #{reverse.1} parent=23 // loop_body
            %v44 = vld [vmem:[%s42] sm:$0xff]
            %45 = vst [vmem:[%s43] sm:$0xff] %v44
            %v46 = vld [vmem:[%s42 + $0x8] sm:$0xff]
            %47 = vst [vmem:[%s43 + $0x10] sm:$0xff] %v46
            %v48 = vld [vmem:[%s42 + $0x10] sm:$0xff]
            %49 = vst [vmem:[%s43 + $0x20] sm:$0xff] %v48
            %v50 = vld [vmem:[%s42 + $0x18] sm:$0xff]
            %51 = vst [vmem:[%s43 + $0x30] sm:$0xff] %v50
            %v52 = vld [vmem:[%s42 + $0x20] sm:$0xff]
            %53 = vst [vmem:[%s43 + $0x40] sm:$0xff] %v52
            %v54 = vld [vmem:[%s42 + $0x28] sm:$0xff]
            %55 = vst [vmem:[%s43 + $0x50] sm:$0xff] %v54
            %v56 = vld [vmem:[%s42 + $0x30] sm:$0xff]
            %57 = vst [vmem:[%s43 + $0x60] sm:$0xff] %v56
            %v58 = vld [vmem:[%s42 + $0x38] sm:$0xff]
            %59 = vst [vmem:[%s43 + $0x70] sm:$0xff] %v58
          $region29: #{reverse.1} parent=23 // loop_footer
            %s41 = sadd.s32 1, %s37
          $region30: #{reverse.1} parent=23 // loop_footer_branch
            %36 = sbr.rel target = $region26
          $region31: #{reverse.1} parent=23 // loop_exit
            _
        $region24: #{reverse.1} parent=8 // pred_fallthru
          _
        // Predicated region
        $region32: #{reverse.1} parent=8 // pred_check
          _
        $region33: #{reverse.1} parent=8 // pred_check_branch
          %61 = sbr.rel target = $region35
        $region34: #{reverse.1} parent=8 // pred_region
          _
        $region35: #{reverse.1} parent=8 // pred_fallthru
          _
      $region9: #{reverse.1} parent=4 // pred_fallthru
        _
      // Predicated region
      $region10: #{reverse.1} parent=4 // pred_check
        _
      $region11: #{reverse.1} parent=4 // pred_check_branch
        %8 = sbr.rel target = $region13
      $region12: #{reverse.1} parent=4 // pred_region
        loop: start=0, step=1, limit=1
        $region14: #{reverse.1} parent=12 // loop_pre_header
          _
        $region15: #{reverse.1} parent=12 // loop_header
          %s11 = sphi 0, %s15
          %p12 = scmp.ge.s32.totalorder %s11, 1
          %s16 = sphi %s0, %s0
          %s17 = sphi %s2, %s2
        $region16: #{reverse.1} parent=12 // loop_header_branch
          %14 = sbr.rel (%p12) target = $region20
        $region17: #{reverse.1} parent=12 // loop_body
          %v18 = vld [vmem:[%s16] sm:$0xff]
          %19 = vst [vmem:[%s17] sm:$0xff] %v18
          %v20 = vld [vmem:[%s16 + $0x8] sm:$0xff]
          %21 = vst [vmem:[%s17 + $0x10] sm:$0xff] %v20
          %v22 = vld [vmem:[%s16 + $0x10] sm:$0xff]
          %23 = vst [vmem:[%s17 + $0x20] sm:$0xff] %v22
          %v24 = vld [vmem:[%s16 + $0x18] sm:$0xff]
          %25 = vst [vmem:[%s17 + $0x30] sm:$0xff] %v24
          %v26 = vld [vmem:[%s16 + $0x20] sm:$0xff]
          %27 = vst [vmem:[%s17 + $0x40] sm:$0xff] %v26
          %v28 = vld [vmem:[%s16 + $0x28] sm:$0xff]
          %29 = vst [vmem:[%s17 + $0x50] sm:$0xff] %v28
          %v30 = vld [vmem:[%s16 + $0x30] sm:$0xff]
          %31 = vst [vmem:[%s17 + $0x60] sm:$0xff] %v30
          %v32 = vld [vmem:[%s16 + $0x38] sm:$0xff]
          %33 = vst [vmem:[%s17 + $0x70] sm:$0xff] %v32
        $region18: #{reverse.1} parent=12 // loop_footer
          %s15 = sadd.s32 1, %s11
        $region19: #{reverse.1} parent=12 // loop_footer_branch
          %10 = sbr.rel target = $region15
        $region20: #{reverse.1} parent=12 // loop_exit
          _
      $region13: #{reverse.1} parent=4 // pred_fallthru
        _
    $region5: #{reverse.1} parent=1 // pred_fallthru
      _
    %62 = vnop
    %s63 = scalar_lea.vmem [#allocation0], 7
    %v64 = vld [vmem:[%s63] ss:$-1 sm:$0xff]
    %v65 = vrot.slane %v64, 1
    %66 = vst [vmem:[#allocation1] sm:$0xff] %v65
    %s67 = scalar_lea.vmem [#allocation0], 8
    %s68 = scalar_lea.vmem %s67, 7 [#allocation0]
    %v69 = vld [vmem:[%s68] ss:$-1 sm:$0xff]
    %v70 = vrot.slane %v69, 1
    %v71 = vlaneseq
    %v72 = vshrl.u32 %v71, 7
    %vm73 = vcmp.lt.s32.totalorder %v72, 7
    %74 = vst.msk [vmem:[#allocation1] sm:$0xff] %vm73, %v70
    %s75 = scalar_lea.vmem [#allocation1], 8
    %s76 = scalar_lea.vmem [#allocation0], 16
    %s77 = scalar_lea.vmem %s76, 7 [#allocation0]
    %v78 = vld [vmem:[%s77] ss:$-1 sm:$0xff]
    %v79 = vrot.slane %v78, 1
    %80 = vst [vmem:[%s75] sm:$0xff] %v79
    %s81 = scalar_lea.vmem %s76, 8 [#allocation0]
    %s82 = scalar_lea.vmem %s81, 7 [#allocation0]
    %v83 = vld [vmem:[%s82] ss:$-1 sm:$0xff]
    %v84 = vrot.slane %v83, 1
    %v85 = vlaneseq
    %v86 = vshrl.u32 %v85, 7
    %vm87 = vcmp.lt.s32.totalorder %v86, 7
    %88 = vst.msk [vmem:[%s75] sm:$0xff] %vm87, %v84
    %s89 = scalar_lea.vmem [#allocation1], 16
    %s90 = scalar_lea.vmem [#allocation0], 32
    %s91 = scalar_lea.vmem %s90, 7 [#allocation0]
    %v92 = vld [vmem:[%s91] ss:$-1 sm:$0xff]
    %v93 = vrot.slane %v92, 1
    %94 = vst [vmem:[%s89] sm:$0xff] %v93
    %s95 = scalar_lea.vmem %s90, 8 [#allocation0]
    %s96 = scalar_lea.vmem %s95, 7 [#allocation0]
    %v97 = vld [vmem:[%s96] ss:$-1 sm:$0xff]
    %v98 = vrot.slane %v97, 1
    %v99 = vlaneseq
    %v100 = vshrl.u32 %v99, 7
    %vm101 = vcmp.lt.s32.totalorder %v100, 7
    %102 = vst.msk [vmem:[%s89] sm:$0xff] %vm101, %v98
    %s103 = scalar_lea.vmem [#allocation1], 24
    %s104 = scalar_lea.vmem [#allocation0], 48
    %s105 = scalar_lea.vmem %s104, 7 [#allocation0]
    %v106 = vld [vmem:[%s105] ss:$-1 sm:$0xff]
    %v107 = vrot.slane %v106, 1
    %108 = vst [vmem:[%s103] sm:$0xff] %v107
    %s109 = scalar_lea.vmem %s104, 8 [#allocation0]
    %s110 = scalar_lea.vmem %s109, 7 [#allocation0]
    %v111 = vld [vmem:[%s110] ss:$-1 sm:$0xff]
    %v112 = vrot.slane %v111, 1
    %v113 = vlaneseq
    %v114 = vshrl.u32 %v113, 7
    %vm115 = vcmp.lt.s32.totalorder %v114, 7
    %116 = vst.msk [vmem:[%s103] sm:$0xff] %vm115, %v112
    %s117 = scalar_lea.vmem [#allocation1], 32
    %s118 = scalar_lea.vmem [#allocation0], 64
    %s119 = scalar_lea.vmem %s118, 7 [#allocation0]
    %v120 = vld [vmem:[%s119] ss:$-1 sm:$0xff]
    %v121 = vrot.slane %v120, 1
    %122 = vst [vmem:[%s117] sm:$0xff] %v121
    %s123 = scalar_lea.vmem %s118, 8 [#allocation0]
    %s124 = scalar_lea.vmem %s123, 7 [#allocation0]
    %v125 = vld [vmem:[%s124] ss:$-1 sm:$0xff]
    %v126 = vrot.slane %v125, 1
    %v127 = vlaneseq
    %v128 = vshrl.u32 %v127, 7
    %vm129 = vcmp.lt.s32.totalorder %v128, 7
    %130 = vst.msk [vmem:[%s117] sm:$0xff] %vm129, %v126
    %s131 = scalar_lea.vmem [#allocation1], 40
    %s132 = scalar_lea.vmem [#allocation0], 80
    %s133 = scalar_lea.vmem %s132, 7 [#allocation0]
    %v134 = vld [vmem:[%s133] ss:$-1 sm:$0xff]
    %v135 = vrot.slane %v134, 1
    %136 = vst [vmem:[%s131] sm:$0xff] %v135
    %s137 = scalar_lea.vmem %s132, 8 [#allocation0]
    %s138 = scalar_lea.vmem %s137, 7 [#allocation0]
    %v139 = vld [vmem:[%s138] ss:$-1 sm:$0xff]
    %v140 = vrot.slane %v139, 1
    %v141 = vlaneseq
    %v142 = vshrl.u32 %v141, 7
    %vm143 = vcmp.lt.s32.totalorder %v142, 7
    %144 = vst.msk [vmem:[%s131] sm:$0xff] %vm143, %v140
    %s145 = scalar_lea.vmem [#allocation1], 48
    %s146 = scalar_lea.vmem [#allocation0], 96
    %s147 = scalar_lea.vmem %s146, 7 [#allocation0]
    %v148 = vld [vmem:[%s147] ss:$-1 sm:$0xff]
    %v149 = vrot.slane %v148, 1
    %150 = vst [vmem:[%s145] sm:$0xff] %v149
    %s151 = scalar_lea.vmem %s146, 8 [#allocation0]
    %s152 = scalar_lea.vmem %s151, 7 [#allocation0]
    %v153 = vld [vmem:[%s152] ss:$-1 sm:$0xff]
    %v154 = vrot.slane %v153, 1
    %v155 = vlaneseq
    %v156 = vshrl.u32 %v155, 7
    %vm157 = vcmp.lt.s32.totalorder %v156, 7
    %158 = vst.msk [vmem:[%s145] sm:$0xff] %vm157, %v154
    %s159 = scalar_lea.vmem [#allocation1], 56
    %s160 = scalar_lea.vmem [#allocation0], 112
    %s161 = scalar_lea.vmem %s160, 7 [#allocation0]
    %v162 = vld [vmem:[%s161] ss:$-1 sm:$0xff]
    %v163 = vrot.slane %v162, 1
    %164 = vst [vmem:[%s159] sm:$0xff] %v163
    %s165 = scalar_lea.vmem %s160, 8 [#allocation0]
    %s166 = scalar_lea.vmem %s165, 7 [#allocation0]
    %v167 = vld [vmem:[%s166] ss:$-1 sm:$0xff]
    %v168 = vrot.slane %v167, 1
    %v169 = vlaneseq
    %v170 = vshrl.u32 %v169, 7
    %vm171 = vcmp.lt.s32.totalorder %v170, 7
    %172 = vst.msk [vmem:[%s159] sm:$0xff] %vm171, %v168
    // Predicated region
    $region36: #{reverse.1} parent=1 // pred_check
      _
    $region37: #{reverse.1} parent=1 // pred_check_branch
      %174 = sbr.rel (0) target = $region39
    $region38: #{reverse.1} parent=1 // pred_region
      // Predicated region
      $region40: #{reverse.1} parent=38 // pred_check
        _
      $region41: #{reverse.1} parent=38 // pred_check_branch
        %176 = sbr.rel (0) target = $region43
      $region42: #{reverse.1} parent=38 // pred_region
        // Predicated region
        $region55: #{reverse.1} parent=42 // pred_check
          _
        $region56: #{reverse.1} parent=42 // pred_check_branch
          %205 = sbr.rel (0) target = $region58
        $region57: #{reverse.1} parent=42 // pred_region
          loop: start=0, step=1, limit=1
          $region59: #{reverse.1} parent=57 // loop_pre_header
            _
          $region60: #{reverse.1} parent=57 // loop_header
            %s207 = sphi 0, %s211
            %p208 = scmp.ge.s32.totalorder %s207, 1
            %s212 = sphi [#allocation1], [#allocation1]
            %s213 = sphi %s1, %s1
          $region61: #{reverse.1} parent=57 // loop_header_branch
            %210 = sbr.rel (%p208) target = $region65
          $region62: #{reverse.1} parent=57 // loop_body
            %v214 = vld [vmem:[%s212] sm:$0xff]
            %215 = vst [vmem:[%s213] sm:$0xff] %v214
            %v216 = vld [vmem:[%s212 + $0x8] sm:$0xff]
            %217 = vst [vmem:[%s213 + $0x8] sm:$0xff] %v216
            %v218 = vld [vmem:[%s212 + $0x10] sm:$0xff]
            %219 = vst [vmem:[%s213 + $0x10] sm:$0xff] %v218
            %v220 = vld [vmem:[%s212 + $0x18] sm:$0xff]
            %221 = vst [vmem:[%s213 + $0x18] sm:$0xff] %v220
            %v222 = vld [vmem:[%s212 + $0x20] sm:$0xff]
            %223 = vst [vmem:[%s213 + $0x20] sm:$0xff] %v222
            %v224 = vld [vmem:[%s212 + $0x28] sm:$0xff]
            %225 = vst [vmem:[%s213 + $0x28] sm:$0xff] %v224
            %v226 = vld [vmem:[%s212 + $0x30] sm:$0xff]
            %227 = vst [vmem:[%s213 + $0x30] sm:$0xff] %v226
            %v228 = vld [vmem:[%s212 + $0x38] sm:$0xff]
            %229 = vst [vmem:[%s213 + $0x38] sm:$0xff] %v228
          $region63: #{reverse.1} parent=57 // loop_footer
            %s211 = sadd.s32 1, %s207
          $region64: #{reverse.1} parent=57 // loop_footer_branch
            %206 = sbr.rel target = $region60
          $region65: #{reverse.1} parent=57 // loop_exit
            _
        $region58: #{reverse.1} parent=42 // pred_fallthru
          _
        // Predicated region
        $region66: #{reverse.1} parent=42 // pred_check
          _
        $region67: #{reverse.1} parent=42 // pred_check_branch
          %231 = sbr.rel target = $region69
        $region68: #{reverse.1} parent=42 // pred_region
          _
        $region69: #{reverse.1} parent=42 // pred_fallthru
          _
      $region43: #{reverse.1} parent=38 // pred_fallthru
        _
      // Predicated region
      $region44: #{reverse.1} parent=38 // pred_check
        _
      $region45: #{reverse.1} parent=38 // pred_check_branch
        %178 = sbr.rel target = $region47
      $region46: #{reverse.1} parent=38 // pred_region
        loop: start=0, step=1, limit=1
        $region48: #{reverse.1} parent=46 // loop_pre_header
          _
        $region49: #{reverse.1} parent=46 // loop_header
          %s181 = sphi 0, %s185
          %p182 = scmp.ge.s32.totalorder %s181, 1
          %s186 = sphi [#allocation1], [#allocation1]
          %s187 = sphi %s1, %s1
        $region50: #{reverse.1} parent=46 // loop_header_branch
          %184 = sbr.rel (%p182) target = $region54
        $region51: #{reverse.1} parent=46 // loop_body
          %v188 = vld [vmem:[%s186] sm:$0xff]
          %189 = vst [vmem:[%s187] sm:$0xff] %v188
          %v190 = vld [vmem:[%s186 + $0x8] sm:$0xff]
          %191 = vst [vmem:[%s187 + $0x8] sm:$0xff] %v190
          %v192 = vld [vmem:[%s186 + $0x10] sm:$0xff]
          %193 = vst [vmem:[%s187 + $0x10] sm:$0xff] %v192
          %v194 = vld [vmem:[%s186 + $0x18] sm:$0xff]
          %195 = vst [vmem:[%s187 + $0x18] sm:$0xff] %v194
          %v196 = vld [vmem:[%s186 + $0x20] sm:$0xff]
          %197 = vst [vmem:[%s187 + $0x20] sm:$0xff] %v196
          %v198 = vld [vmem:[%s186 + $0x28] sm:$0xff]
          %199 = vst [vmem:[%s187 + $0x28] sm:$0xff] %v198
          %v200 = vld [vmem:[%s186 + $0x30] sm:$0xff]
          %201 = vst [vmem:[%s187 + $0x30] sm:$0xff] %v200
          %v202 = vld [vmem:[%s186 + $0x38] sm:$0xff]
          %203 = vst [vmem:[%s187 + $0x38] sm:$0xff] %v202
        $region52: #{reverse.1} parent=46 // loop_footer
          %s185 = sadd.s32 1, %s181
        $region53: #{reverse.1} parent=46 // loop_footer_branch
          %180 = sbr.rel target = $region49
        $region54: #{reverse.1} parent=46 // loop_exit
          _
      $region47: #{reverse.1} parent=38 // pred_fallthru
        _
    $region39: #{reverse.1} parent=1 // pred_fallthru
      _
    %232 = vnop

// kernel: _forward_impl.7
$region0: #{_forward_impl.7}
  #allocation0 [shape = 'u32[]', space=smem, size = 0x4, offset = 0x4, fixed_abs, tag = 'smem constant byte address 0x4 - core index']
  #allocation1 [shape = 'u32[144,128]{1,0:T(1,128)}', space=vmem, size = 0x12000, scoped, tag = 'internal scratch']
  %s0 = inlined_call_operand.vmem [shape: bf16[16,16,128], index: 0, kind: input, shape index: {}]
  %s1 = inlined_call_operand.vmem [shape: bf16[16,128,128], index: 1, kind: input, shape index: {}]
  %s2 = inlined_call_operand.vmem [shape: bf16[16,16,128], index: 2, kind: output, shape index: {}]
  %s3 = sld [smem:[#allocation0]]
  $region41: #{_forward_impl.7} parent=0
    _
  %s5 = ssub.s32 1, %s3
  %s6 = scalar_select 0, %s5, %s3
  loop: start=0, step=1, limit=4
  $region2: #{_forward_impl.7} parent=0 // loop_pre_header
    _
  $region3: #{_forward_impl.7} parent=0 // loop_header
    %s8 = sphi 0, %s12
    %p9 = scmp.ge.s32.totalorder %s8, 4
    %s15 = sphi 0, %s27
    %s16 = sphi 0, %s23
    %s17 = sphi 0, %s15
    %s18 = sphi 0, %s16
    %s19 = sphi 0, %s17
    %s20 = sphi 0, %s18
    %s30 = sphi 0, %s32
    %s33 = sphi 0, %s30
    %s34 = sphi 0, %s33
    %s50 = sphi 0, %s34
    %s58 = sphi 0, %s60
    %s61 = sphi 0, %s58
    %s62 = sphi 0, %s61
    %s78 = sphi 0, %s62
    %s86 = sphi 0, %s88
    %s89 = sphi 0, %s86
    %s90 = sphi 0, %s89
    %s106 = sphi 0, %s90
  $region4: #{_forward_impl.7} parent=0 // loop_header_branch
    %11 = sbr.rel (%p9) target = $region8
  $region5: #{_forward_impl.7} parent=0 // loop_body
    %s13 = ssub.s32 %s8, 1
    %s14 = ssub.s32 %s8, 2
    %s21 = sadd.s32 1, %s16
    %p22 = scmp.ge.s32.totalorder %s21, 1
    %s23 = scalar_select %p22, 0, %s21
    %s24 = sadd.s32 1, %s15
    %s25 = scalar_select %p22, %s24, %s15
    %p26 = scmp.ge.s32.totalorder %s25, 2
    %s27 = scalar_select %p26, 0, %s25
    %s28 = ssub.s32 %s15, %s27
    %p29 = scmp.eq.s32.totalorder %s28, 0
    %s31 = sadd.s32 %s30, 1
    %s32 = scalar_select %p29, %s30, %s31
    %p35 = pneg %p29
    %p36 = scmp.eq.s32.totalorder %s8, 1
    %p37 = por %p35, %p36
    %p38 = scmp.ne.s32.totalorder %s30, %s33
    %p39 = scmp.eq.s32.totalorder %s8, 0
    %p40 = por %p38, %p39
    %p41 = scmp.ne.s32.totalorder %s30, %s33
    %p42 = scmp.eq.s32.totalorder %s13, 1
    %p43 = por %p41, %p42
    %p44 = scmp.ne.s32.totalorder %s33, %s34
    %p45 = scmp.eq.s32.totalorder %s13, 0
    %p46 = por %p44, %p45
    %p47 = scmp.ne.s32.totalorder %s33, %s34
    %p48 = scmp.eq.s32.totalorder %s14, 1
    %p49 = por %p47, %p48
    %p51 = scmp.ne.s32.totalorder %s34, %s50
    %p52 = scmp.eq.s32.totalorder %s14, 0
    %p53 = por %p51, %p52
    %s54 = ssub.s32 %s15, %s27
    %s55 = ssub.s32 %s16, %s23
    %s56 = sor.u32 %s54, %s55
    %p57 = scmp.eq.s32.totalorder %s56, 0
    %s59 = sadd.s32 %s58, 1
    %s60 = scalar_select %p57, %s58, %s59
    %p63 = pneg %p57
    %p64 = scmp.eq.s32.totalorder %s8, 1
    %p65 = por %p63, %p64
    %p66 = scmp.ne.s32.totalorder %s58, %s61
    %p67 = scmp.eq.s32.totalorder %s8, 0
    %p68 = por %p66, %p67
    %p69 = scmp.ne.s32.totalorder %s58, %s61
    %p70 = scmp.eq.s32.totalorder %s13, 1
    %p71 = por %p69, %p70
    %p72 = scmp.ne.s32.totalorder %s61, %s62
    %p73 = scmp.eq.s32.totalorder %s13, 0
    %p74 = por %p72, %p73
    %p75 = scmp.ne.s32.totalorder %s61, %s62
    %p76 = scmp.eq.s32.totalorder %s14, 1
    %p77 = por %p75, %p76
    %p79 = scmp.ne.s32.totalorder %s62, %s78
    %p80 = scmp.eq.s32.totalorder %s14, 0
    %p81 = por %p79, %p80
    %s82 = ssub.s32 %s15, %s27
    %s83 = ssub.s32 %s16, %s23
    %s84 = sor.u32 %s82, %s83
    %p85 = scmp.eq.s32.totalorder %s84, 0
    %s87 = sadd.s32 %s86, 1
    %s88 = scalar_select %p85, %s86, %s87
    %p91 = pneg %p85
    %p92 = scmp.eq.s32.totalorder %s8, 1
    %p93 = por %p91, %p92
    %p94 = scmp.ne.s32.totalorder %s86, %s89
    %p95 = scmp.eq.s32.totalorder %s8, 0
    %p96 = por %p94, %p95
    %p97 = scmp.ne.s32.totalorder %s86, %s89
    %p98 = scmp.eq.s32.totalorder %s13, 1
    %p99 = por %p97, %p98
    %p100 = scmp.ne.s32.totalorder %s89, %s90
    %p101 = scmp.eq.s32.totalorder %s13, 0
    %p102 = por %p100, %p101
    %p103 = scmp.ne.s32.totalorder %s89, %s90
    %p104 = scmp.eq.s32.totalorder %s14, 1
    %p105 = por %p103, %p104
    %p107 = scmp.ne.s32.totalorder %s90, %s106
    %p108 = scmp.eq.s32.totalorder %s14, 0
    %p109 = por %p107, %p108
    %p110 = scmp.le.s32.totalorder 1, %s8
    %p111 = scmp.lt.s32.totalorder %s8, 3
    %p112 = pnand %p110, %p111
    %p113 = pneg %p112
    // Predicated region
    $region9: #{_forward_impl.7} parent=5 // pred_check
      _
    $region10: #{_forward_impl.7} parent=5 // pred_check_branch
      %115 = sbr.rel (%p112) target = $region12
    $region11: #{_forward_impl.7} parent=5 // pred_region
      %s116 = ssub.s32 %s8, 1
    $region12: #{_forward_impl.7} parent=5 // pred_fallthru
      _
    %p117 = scmp.lt.s32.totalorder %s8, 2
    // Predicated region
    $region13: #{_forward_impl.7} parent=5 // pred_check
      %p118 = pneg %p117
    $region14: #{_forward_impl.7} parent=5 // pred_check_branch
      %120 = sbr.rel (%p118) target = $region16
    $region15: #{_forward_impl.7} parent=5 // pred_region
      // Predicated region
      $region17: #{_forward_impl.7} parent=15 // pred_check
        %p121 = pneg %p40
      $region18: #{_forward_impl.7} parent=15 // pred_check_branch
        %123 = sbr.rel (%p121) target = $region20
      $region19: #{_forward_impl.7} parent=15 // pred_region
        %s124 = smul.u32 8, %s15
        %p125 = scmp.lt.s32.totalorder %s124, 15
        %s126 = scalar_select %p125, %s124, 15
        %s127 = smul.addr %s126, 2
        %s128 = smul.addr %s127, 4
        %s129 = scalar_lea.vmem %s0, %s128
        %s130 = smul.u32 8, %s15
      $region20: #{_forward_impl.7} parent=15 // pred_fallthru
        _
      // Predicated region
      $region21: #{_forward_impl.7} parent=15 // pred_check
        %p131 = pneg %p68
      $region22: #{_forward_impl.7} parent=15 // pred_check_branch
        %133 = sbr.rel (%p131) target = $region24
      $region23: #{_forward_impl.7} parent=15 // pred_region
        %s134 = smul.u32 8, %s15
        %p135 = scmp.lt.s32.totalorder %s134, 15
        %s136 = scalar_select %p135, %s134, 15
        %p137 = scmp.lt.s32.totalorder %s16, 0
        %s138 = scalar_select %p137, %s16, 0
        %s139 = smul.addr %s136, 16
        %s140 = sadd.s32 %s138, %s139
        %s141 = smul.addr %s140, 4
        %s142 = scalar_lea.vmem %s1, %s141
        %s143 = smul.u32 8, %s15
      $region24: #{_forward_impl.7} parent=15 // pred_fallthru
        _
    $region16: #{_forward_impl.7} parent=5 // pred_fallthru
      _
    %p144 = scmp.le.s32.totalorder 1, %s8
    %p145 = scmp.lt.s32.totalorder %s8, 3
    %p146 = pnand %p144, %p145
    %p147 = pneg %p146
    // Predicated region
    $region25: #{_forward_impl.7} parent=5 // pred_check
      _
    $region26: #{_forward_impl.7} parent=5 // pred_check_branch
      %149 = sbr.rel (%p146) target = $region28
    $region27: #{_forward_impl.7} parent=5 // pred_region
      %s150 = ssub.s32 %s8, 1
      %s151 = smul.u32 8, %s17
      %p152 = scmp.lt.s32.totalorder %s151, 15
      %s153 = scalar_select %p152, %s151, 15
      %s154 = smul.addr %s153, 2
      %s155 = smul.addr %s154, 4
      %s156 = scalar_lea.vmem %s0, %s155
      %p157 = pneg %p46
      %p158 = pneg %p43
      %s159 = smul.u32 8, %s17
      %p160 = scmp.lt.s32.totalorder %s159, 15
      %s161 = scalar_select %p160, %s159, 15
      %p162 = scmp.lt.s32.totalorder %s18, 0
      %s163 = scalar_select %p162, %s18, 0
      %s164 = smul.addr %s161, 16
      %s165 = sadd.s32 %s163, %s164
      %s166 = smul.addr %s165, 4
      %s167 = scalar_lea.vmem %s1, %s166
      %p168 = pneg %p74
      %p169 = pneg %p71
      %p170 = pneg %p102
      %p171 = pneg %p99
      %s172 = smul.u32 8, %s17
      %p173 = scmp.lt.s32.totalorder %s172, 15
      %s174 = scalar_select %p173, %s172, 15
      %p175 = scmp.lt.s32.totalorder %s18, 0
      %s176 = scalar_select %p175, %s18, 0
      %s177 = smul.addr %s174, 2
      %s178 = sadd.s32 %s176, %s177
      %s179 = smul.addr %s178, 4
      %s180 = scalar_lea.vmem %s2, %s179
      %s181 = smul.u32 8, %s17
      %p182 = scmp.lt.s32.totalorder %s181, 15
      %s183 = scalar_select %p182, %s181, 15
      %s184 = smul.addr %s183, 2
      %s185 = smul.addr %s184, 4
      %s186 = scalar_lea.vmem %s0, %s185
      %s187 = smul.u32 8, %s17
      %s188 = smul.u32 8, %s17
      %p189 = scmp.lt.s32.totalorder %s188, 15
      %s190 = scalar_select %p189, %s188, 15
      %p191 = scmp.lt.s32.totalorder %s18, 0
      %s192 = scalar_select %p191, %s18, 0
      %s193 = smul.addr %s190, 16
      %s194 = sadd.s32 %s192, %s193
      %s195 = smul.addr %s194, 4
      %s196 = scalar_lea.vmem %s1, %s195
      %s197 = smul.u32 8, %s17
      %s198 = smul.u32 8, %s17
      %p199 = scmp.lt.s32.totalorder %s198, 15
      %s200 = scalar_select %p199, %s198, 15
      %p201 = scmp.lt.s32.totalorder %s18, 0
      %s202 = scalar_select %p201, %s18, 0
      %s203 = smul.addr %s200, 2
      %s204 = sadd.s32 %s202, %s203
      %s205 = smul.addr %s204, 4
      %s206 = scalar_lea.vmem %s2, %s205
      %s207 = smul.u32 8, %s17
      %v209 = vld [vmem:[%s186] sm:$0xf]
      %v210 = vld [vmem:[%s186 + $0x4] sm:$0xf]
      %v211 = vld [vmem:[%s196] sm:$0xf]
      %v212 = vld [vmem:[%s196 + $0x4] sm:$0xf]
      %v213 = vld [vmem:[%s196 + $0x8] sm:$0xf]
      %v214 = vld [vmem:[%s196 + $0xc] sm:$0xf]
      %v215 = vld [vmem:[%s196 + $0x10] sm:$0xf]
      %v216 = vld [vmem:[%s196 + $0x14] sm:$0xf]
      %v217 = vld [vmem:[%s196 + $0x18] sm:$0xf]
      %v218 = vld [vmem:[%s196 + $0x1c] sm:$0xf]
      %v219 = vld [vmem:[%s196 + $0x20] sm:$0xf]
      %v220 = vld [vmem:[%s196 + $0x24] sm:$0xf]
      %v221 = vld [vmem:[%s196 + $0x28] sm:$0xf]
      %v222 = vld [vmem:[%s196 + $0x2c] sm:$0xf]
      %v223 = vld [vmem:[%s196 + $0x30] sm:$0xf]
      %v224 = vld [vmem:[%s196 + $0x34] sm:$0xf]
      %v225 = vld [vmem:[%s196 + $0x38] sm:$0xf]
      %v226 = vld [vmem:[%s196 + $0x3c] sm:$0xf]
      %v229 = vunpack.c.l.b16 %v209
      %v230 = vunpack.c.l.b16 %v210
      %v231 = vpack.c.b16 %v230, %v229
      %v249 = vunpack.c.l.b16 %v211
      %v250 = vunpack.c.l.b16 %v212
      %v251 = vunpack.c.l.b16 %v213
      %v252 = vunpack.c.l.b16 %v214
      %v253 = vunpack.c.l.b16 %v215
      %v254 = vunpack.c.l.b16 %v216
      %v255 = vunpack.c.l.b16 %v217
      %v256 = vunpack.c.l.b16 %v218
      %v257 = vunpack.c.l.b16 %v219
      %v258 = vunpack.c.l.b16 %v220
      %v259 = vunpack.c.l.b16 %v221
      %v260 = vunpack.c.l.b16 %v222
      %v261 = vunpack.c.l.b16 %v223
      %v262 = vunpack.c.l.b16 %v224
      %v263 = vunpack.c.l.b16 %v225
      %v264 = vunpack.c.l.b16 %v226
      %v265 = vpack.c.b16 %v250, %v249
      %v266 = vpack.c.b16 %v252, %v251
      %v267 = vpack.c.b16 %v254, %v253
      %v268 = vpack.c.b16 %v256, %v255
      %v269 = vpack.c.b16 %v258, %v257
      %v270 = vpack.c.b16 %v260, %v259
      %v271 = vpack.c.b16 %v262, %v261
      %v272 = vpack.c.b16 %v264, %v263
      %281 = vmatprep.subr.bf16.mxu0 0
      %282 = vmatpush1.bf16.msra.mxu0 %v265
      %283 = vmatprep.subr.bf16.mxu0 0
      %284 = vmatpush1.bf16.msra.mxu0 %v266
      %285 = vmatprep.subr.bf16.mxu0 0
      %286 = vmatpush1.bf16.msra.mxu0 %v267
      %287 = vmatprep.subr.bf16.mxu0 0
      %288 = vmatpush1.bf16.msra.mxu0 %v268
      %289 = vmatprep.subr.bf16.mxu0 0
      %290 = vmatpush1.bf16.msra.mxu0 %v269
      %291 = vmatprep.subr.bf16.mxu0 0
      %292 = vmatpush1.bf16.msra.mxu0 %v270
      %293 = vmatprep.subr.bf16.mxu0 0
      %294 = vmatpush1.bf16.msra.mxu0 %v271
      %295 = vmatprep.subr.bf16.mxu0 0
      %296 = vmatpush1.bf16.msra.mxu0 %v272
      %297 = vmatprep.subr.bf16.mxu0 0
      %298 = vmatpush1.bf16.msra.mxu0 0
      %299 = vmatprep.subr.bf16.mxu0 0
      %300 = vmatpush1.bf16.msra.mxu0 0
      %301 = vmatprep.subr.bf16.mxu0 0
      %302 = vmatpush1.bf16.msra.mxu0 0
      %303 = vmatprep.subr.bf16.mxu0 0
      %304 = vmatpush1.bf16.msra.mxu0 0
      %305 = vmatprep.subr.bf16.mxu0 0
      %306 = vmatpush1.bf16.msra.mxu0 0
      %307 = vmatprep.subr.bf16.mxu0 0
      %308 = vmatpush1.bf16.msra.mxu0 0
      %309 = vmatprep.subr.bf16.mxu0 0
      %310 = vmatpush1.bf16.msra.mxu0 0
      %311 = vmatprep.subr.bf16.mxu0 0
      %312 = vmatpush1.bf16.msra.mxu0 0
      %313 = vmatprep.mubr.bf16.mxu0 0
      %314 = vmatmul.mubr.bf16.gmra.mrb[0].mxu0 %v231
      %v315 = vpop.f32.mrb[0].mxu0
      %v316 = vadd.f32 0.0, %v315
      %v317 = vpop.f32.mrb[0].mxu0
      %v318 = vpop.f32.mrb[0].mxu0
      %v319 = vadd.f32 0.0, %v318
      %v320 = vpop.f32.mrb[0].mxu0
      %321 = vdwg.mxu0
      %v322 = vpack.c.bf16 %v319, %v316
      %v324 = vunpack.c.l.b16 %v322
      %v325 = vunpack.c.h.b16 %v322
      %v326 = vpack.c.b16 %v324, %v324
      %v327 = vpack.c.b16 %v325, %v325
      %330 = vst [vmem:[%s206] sm:$0xf] %v326
      %331 = vst [vmem:[%s206 + $0x4] sm:$0xf] %v327
      %s332 = scalar_lea.vmem %s186, 8
      %v333 = vld [vmem:[%s332] sm:$0xf]
      %v334 = vld [vmem:[%s332 + $0x4] sm:$0xf]
      %s335 = scalar_lea.vmem %s196, 64
      %v336 = vld [vmem:[%s335] sm:$0xf]
      %v337 = vld [vmem:[%s335 + $0x4] sm:$0xf]
      %v338 = vld [vmem:[%s335 + $0x8] sm:$0xf]
      %v339 = vld [vmem:[%s335 + $0xc] sm:$0xf]
      %v340 = vld [vmem:[%s335 + $0x10] sm:$0xf]
      %v341 = vld [vmem:[%s335 + $0x14] sm:$0xf]
      %v342 = vld [vmem:[%s335 + $0x18] sm:$0xf]
      %v343 = vld [vmem:[%s335 + $0x1c] sm:$0xf]
      %v344 = vld [vmem:[%s335 + $0x20] sm:$0xf]
      %v345 = vld [vmem:[%s335 + $0x24] sm:$0xf]
      %v346 = vld [vmem:[%s335 + $0x28] sm:$0xf]
      %v347 = vld [vmem:[%s335 + $0x2c] sm:$0xf]
      %v348 = vld [vmem:[%s335 + $0x30] sm:$0xf]
      %v349 = vld [vmem:[%s335 + $0x34] sm:$0xf]
      %v350 = vld [vmem:[%s335 + $0x38] sm:$0xf]
      %v351 = vld [vmem:[%s335 + $0x3c] sm:$0xf]
      %v354 = vunpack.c.l.b16 %v333
      %v355 = vunpack.c.l.b16 %v334
      %v356 = vpack.c.b16 %v355, %v354
      %v374 = vunpack.c.l.b16 %v336
      %v375 = vunpack.c.l.b16 %v337
      %v376 = vunpack.c.l.b16 %v338
      %v377 = vunpack.c.l.b16 %v339
      %v378 = vunpack.c.l.b16 %v340
      %v379 = vunpack.c.l.b16 %v341
      %v380 = vunpack.c.l.b16 %v342
      %v381 = vunpack.c.l.b16 %v343
      %v382 = vunpack.c.l.b16 %v344
      %v383 = vunpack.c.l.b16 %v345
      %v384 = vunpack.c.l.b16 %v346
      %v385 = vunpack.c.l.b16 %v347
      %v386 = vunpack.c.l.b16 %v348
      %v387 = vunpack.c.l.b16 %v349
      %v388 = vunpack.c.l.b16 %v350
      %v389 = vunpack.c.l.b16 %v351
      %v390 = vpack.c.b16 %v375, %v374
      %v391 = vpack.c.b16 %v377, %v376
      %v392 = vpack.c.b16 %v379, %v378
      %v393 = vpack.c.b16 %v381, %v380
      %v394 = vpack.c.b16 %v383, %v382
      %v395 = vpack.c.b16 %v385, %v384
      %v396 = vpack.c.b16 %v387, %v386
      %v397 = vpack.c.b16 %v389, %v388
      %406 = vmatprep.subr.bf16.mxu0 0
      %407 = vmatpush1.bf16.msra.mxu0 %v390
      %408 = vmatprep.subr.bf16.mxu0 0
      %409 = vmatpush1.bf16.msra.mxu0 %v391
      %410 = vmatprep.subr.bf16.mxu0 0
      %411 = vmatpush1.bf16.msra.mxu0 %v392
      %412 = vmatprep.subr.bf16.mxu0 0
      %413 = vmatpush1.bf16.msra.mxu0 %v393
      %414 = vmatprep.subr.bf16.mxu0 0
      %415 = vmatpush1.bf16.msra.mxu0 %v394
      %416 = vmatprep.subr.bf16.mxu0 0
      %417 = vmatpush1.bf16.msra.mxu0 %v395
      %418 = vmatprep.subr.bf16.mxu0 0
      %419 = vmatpush1.bf16.msra.mxu0 %v396
      %420 = vmatprep.subr.bf16.mxu0 0
      %421 = vmatpush1.bf16.msra.mxu0 %v397
      %422 = vmatprep.subr.bf16.mxu0 0
      %423 = vmatpush1.bf16.msra.mxu0 0
      %424 = vmatprep.subr.bf16.mxu0 0
      %425 = vmatpush1.bf16.msra.mxu0 0
      %426 = vmatprep.subr.bf16.mxu0 0
      %427 = vmatpush1.bf16.msra.mxu0 0
      %428 = vmatprep.subr.bf16.mxu0 0
      %429 = vmatpush1.bf16.msra.mxu0 0
      %430 = vmatprep.subr.bf16.mxu0 0
      %431 = vmatpush1.bf16.msra.mxu0 0
      %432 = vmatprep.subr.bf16.mxu0 0
      %433 = vmatpush1.bf16.msra.mxu0 0
      %434 = vmatprep.subr.bf16.mxu0 0
      %435 = vmatpush1.bf16.msra.mxu0 0
      %436 = vmatprep.subr.bf16.mxu0 0
      %437 = vmatpush1.bf16.msra.mxu0 0
      %438 = vmatprep.mubr.bf16.mxu0 0
      %439 = vmatmul.mubr.bf16.gmra.mrb[0].mxu0 %v356
      %v440 = vpop.f32.mrb[0].mxu0
      %v441 = vadd.f32 0.0, %v440
      %v442 = vpop.f32.mrb[0].mxu0
      %v443 = vpop.f32.mrb[0].mxu0
      %v444 = vadd.f32 0.0, %v443
      %v445 = vpop.f32.mrb[0].mxu0
      %446 = vdwg.mxu0
      %v447 = vpack.c.bf16 %v444, %v441
      %v449 = vunpack.c.l.b16 %v447
      %v450 = vunpack.c.h.b16 %v447
      %v451 = vpack.c.b16 %v449, %v449
      %v452 = vpack.c.b16 %v450, %v450
      %s455 = scalar_lea.vmem %s206, 8
      %456 = vst [vmem:[%s455] sm:$0xf] %v451
      %457 = vst [vmem:[%s455 + $0x4] sm:$0xf] %v452
      %s458 = scalar_lea.vmem %s186, 16
      %v459 = vld [vmem:[%s458] sm:$0xf]
      %v460 = vld [vmem:[%s458 + $0x4] sm:$0xf]
      %s461 = scalar_lea.vmem %s196, 128
      %v462 = vld [vmem:[%s461] sm:$0xf]
      %v463 = vld [vmem:[%s461 + $0x4] sm:$0xf]
      %v464 = vld [vmem:[%s461 + $0x8] sm:$0xf]
      %v465 = vld [vmem:[%s461 + $0xc] sm:$0xf]
      %v466 = vld [vmem:[%s461 + $0x10] sm:$0xf]
      %v467 = vld [vmem:[%s461 + $0x14] sm:$0xf]
      %v468 = vld [vmem:[%s461 + $0x18] sm:$0xf]
      %v469 = vld [vmem:[%s461 + $0x1c] sm:$0xf]
      %v470 = vld [vmem:[%s461 + $0x20] sm:$0xf]
      %v471 = vld [vmem:[%s461 + $0x24] sm:$0xf]
      %v472 = vld [vmem:[%s461 + $0x28] sm:$0xf]
      %v473 = vld [vmem:[%s461 + $0x2c] sm:$0xf]
      %v474 = vld [vmem:[%s461 + $0x30] sm:$0xf]
      %v475 = vld [vmem:[%s461 + $0x34] sm:$0xf]
      %v476 = vld [vmem:[%s461 + $0x38] sm:$0xf]
      %v477 = vld [vmem:[%s461 + $0x3c] sm:$0xf]
      %v480 = vunpack.c.l.b16 %v459
      %v481 = vunpack.c.l.b16 %v460
      %v482 = vpack.c.b16 %v481, %v480
      %v500 = vunpack.c.l.b16 %v462
      %v501 = vunpack.c.l.b16 %v463
      %v502 = vunpack.c.l.b16 %v464
      %v503 = vunpack.c.l.b16 %v465
      %v504 = vunpack.c.l.b16 %v466
      %v505 = vunpack.c.l.b16 %v467
      %v506 = vunpack.c.l.b16 %v468
      %v507 = vunpack.c.l.b16 %v469
      %v508 = vunpack.c.l.b16 %v470
      %v509 = vunpack.c.l.b16 %v471
      %v510 = vunpack.c.l.b16 %v472
      %v511 = vunpack.c.l.b16 %v473
      %v512 = vunpack.c.l.b16 %v474
      %v513 = vunpack.c.l.b16 %v475
      %v514 = vunpack.c.l.b16 %v476
      %v515 = vunpack.c.l.b16 %v477
      %v516 = vpack.c.b16 %v501, %v500
      %v517 = vpack.c.b16 %v503, %v502
      %v518 = vpack.c.b16 %v505, %v504
      %v519 = vpack.c.b16 %v507, %v506
      %v520 = vpack.c.b16 %v509, %v508
      %v521 = vpack.c.b16 %v511, %v510
      %v522 = vpack.c.b16 %v513, %v512
      %v523 = vpack.c.b16 %v515, %v514
      %532 = vmatprep.subr.bf16.mxu0 0
      %533 = vmatpush1.bf16.msra.mxu0 %v516
      %534 = vmatprep.subr.bf16.mxu0 0
      %535 = vmatpush1.bf16.msra.mxu0 %v517
      %536 = vmatprep.subr.bf16.mxu0 0
      %537 = vmatpush1.bf16.msra.mxu0 %v518
      %538 = vmatprep.subr.bf16.mxu0 0
      %539 = vmatpush1.bf16.msra.mxu0 %v519
      %540 = vmatprep.subr.bf16.mxu0 0
      %541 = vmatpush1.bf16.msra.mxu0 %v520
      %542 = vmatprep.subr.bf16.mxu0 0
      %543 = vmatpush1.bf16.msra.mxu0 %v521
      %544 = vmatprep.subr.bf16.mxu0 0
      %545 = vmatpush1.bf16.msra.mxu0 %v522
      %546 = vmatprep.subr.bf16.mxu0 0
      %547 = vmatpush1.bf16.msra.mxu0 %v523
      %548 = vmatprep.subr.bf16.mxu0 0
      %549 = vmatpush1.bf16.msra.mxu0 0
      %550 = vmatprep.subr.bf16.mxu0 0
      %551 = vmatpush1.bf16.msra.mxu0 0
      %552 = vmatprep.subr.bf16.mxu0 0
      %553 = vmatpush1.bf16.msra.mxu0 0
      %554 = vmatprep.subr.bf16.mxu0 0
      %555 = vmatpush1.bf16.msra.mxu0 0
      %556 = vmatprep.subr.bf16.mxu0 0
      %557 = vmatpush1.bf16.msra.mxu0 0
      %558 = vmatprep.subr.bf16.mxu0 0
      %559 = vmatpush1.bf16.msra.mxu0 0
      %560 = vmatprep.subr.bf16.mxu0 0
      %561 = vmatpush1.bf16.msra.mxu0 0
      %562 = vmatprep.subr.bf16.mxu0 0
      %563 = vmatpush1.bf16.msra.mxu0 0
      %564 = vmatprep.mubr.bf16.mxu0 0
      %565 = vmatmul.mubr.bf16.gmra.mrb[0].mxu0 %v482
      %v566 = vpop.f32.mrb[0].mxu0
      %v567 = vadd.f32 0.0, %v566
      %v568 = vpop.f32.mrb[0].mxu0
      %v569 = vpop.f32.mrb[0].mxu0
      %v570 = vadd.f32 0.0, %v569
      %v571 = vpop.f32.mrb[0].mxu0
      %572 = vdwg.mxu0
      %v573 = vpack.c.bf16 %v570, %v567
      %v575 = vunpack.c.l.b16 %v573
      %v576 = vunpack.c.h.b16 %v573
      %v577 = vpack.c.b16 %v575, %v575
      %v578 = vpack.c.b16 %v576, %v576
      %s581 = scalar_lea.vmem %s206, 16
      %582 = vst [vmem:[%s581] sm:$0xf] %v577
      %583 = vst [vmem:[%s581 + $0x4] sm:$0xf] %v578
      %s584 = scalar_lea.vmem %s186, 24
      %v585 = vld [vmem:[%s584] sm:$0xf]
      %v586 = vld [vmem:[%s584 + $0x4] sm:$0xf]
      %s587 = scalar_lea.vmem %s196, 192
      %v588 = vld [vmem:[%s587] sm:$0xf]
      %v589 = vld [vmem:[%s587 + $0x4] sm:$0xf]
      %v590 = vld [vmem:[%s587 + $0x8] sm:$0xf]
      %v591 = vld [vmem:[%s587 + $0xc] sm:$0xf]
      %v592 = vld [vmem:[%s587 + $0x10] sm:$0xf]
      %v593 = vld [vmem:[%s587 + $0x14] sm:$0xf]
      %v594 = vld [vmem:[%s587 + $0x18] sm:$0xf]
      %v595 = vld [vmem:[%s587 + $0x1c] sm:$0xf]
      %v596 = vld [vmem:[%s587 + $0x20] sm:$0xf]
      %v597 = vld [vmem:[%s587 + $0x24] sm:$0xf]
      %v598 = vld [vmem:[%s587 + $0x28] sm:$0xf]
      %v599 = vld [vmem:[%s587 + $0x2c] sm:$0xf]
      %v600 = vld [vmem:[%s587 + $0x30] sm:$0xf]
      %v601 = vld [vmem:[%s587 + $0x34] sm:$0xf]
      %v602 = vld [vmem:[%s587 + $0x38] sm:$0xf]
      %v603 = vld [vmem:[%s587 + $0x3c] sm:$0xf]
      %v606 = vunpack.c.l.b16 %v585
      %v607 = vunpack.c.l.b16 %v586
      %v608 = vpack.c.b16 %v607, %v606
      %v626 = vunpack.c.l.b16 %v588
      %v627 = vunpack.c.l.b16 %v589
      %v628 = vunpack.c.l.b16 %v590
      %v629 = vunpack.c.l.b16 %v591
      %v630 = vunpack.c.l.b16 %v592
      %v631 = vunpack.c.l.b16 %v593
      %v632 = vunpack.c.l.b16 %v594
      %v633 = vunpack.c.l.b16 %v595
      %v634 = vunpack.c.l.b16 %v596
      %v635 = vunpack.c.l.b16 %v597
      %v636 = vunpack.c.l.b16 %v598
      %v637 = vunpack.c.l.b16 %v599
      %v638 = vunpack.c.l.b16 %v600
      %v639 = vunpack.c.l.b16 %v601
      %v640 = vunpack.c.l.b16 %v602
      %v641 = vunpack.c.l.b16 %v603
      %v642 = vpack.c.b16 %v627, %v626
      %v643 = vpack.c.b16 %v629, %v628
      %v644 = vpack.c.b16 %v631, %v630
      %v645 = vpack.c.b16 %v633, %v632
      %v646 = vpack.c.b16 %v635, %v634
      %v647 = vpack.c.b16 %v637, %v636
      %v648 = vpack.c.b16 %v639, %v638
      %v649 = vpack.c.b16 %v641, %v640
      %658 = vmatprep.subr.bf16.mxu0 0
      %659 = vmatpush1.bf16.msra.mxu0 %v642
      %660 = vmatprep.subr.bf16.mxu0 0
      %661 = vmatpush1.bf16.msra.mxu0 %v643
      %662 = vmatprep.subr.bf16.mxu0 0
      %663 = vmatpush1.bf16.msra.mxu0 %v644
      %664 = vmatprep.subr.bf16.mxu0 0
      %665 = vmatpush1.bf16.msra.mxu0 %v645
      %666 = vmatprep.subr.bf16.mxu0 0
      %667 = vmatpush1.bf16.msra.mxu0 %v646
      %668 = vmatprep.subr.bf16.mxu0 0
      %669 = vmatpush1.bf16.msra.mxu0 %v647
      %670 = vmatprep.subr.bf16.mxu0 0
      %671 = vmatpush1.bf16.msra.mxu0 %v648
      %672 = vmatprep.subr.bf16.mxu0 0
      %673 = vmatpush1.bf16.msra.mxu0 %v649
      %674 = vmatprep.subr.bf16.mxu0 0
      %675 = vmatpush1.bf16.msra.mxu0 0
      %676 = vmatprep.subr.bf16.mxu0 0
      %677 = vmatpush1.bf16.msra.mxu0 0
      %678 = vmatprep.subr.bf16.mxu0 0
      %679 = vmatpush1.bf16.msra.mxu0 0
      %680 = vmatprep.subr.bf16.mxu0 0
      %681 = vmatpush1.bf16.msra.mxu0 0
      %682 = vmatprep.subr.bf16.mxu0 0
      %683 = vmatpush1.bf16.msra.mxu0 0
      %684 = vmatprep.subr.bf16.mxu0 0
      %685 = vmatpush1.bf16.msra.mxu0 0
      %686 = vmatprep.subr.bf16.mxu0 0
      %687 = vmatpush1.bf16.msra.mxu0 0
      %688 = vmatprep.subr.bf16.mxu0 0
      %689 = vmatpush1.bf16.msra.mxu0 0
      %690 = vmatprep.mubr.bf16.mxu0 0
      %691 = vmatmul.mubr.bf16.gmra.mrb[0].mxu0 %v608
      %v692 = vpop.f32.mrb[0].mxu0
      %v693 = vadd.f32 0.0, %v692
      %v694 = vpop.f32.mrb[0].mxu0
      %v695 = vpop.f32.mrb[0].mxu0
      %v696 = vadd.f32 0.0, %v695
      %v697 = vpop.f32.mrb[0].mxu0
      %698 = vdwg.mxu0
      %v699 = vpack.c.bf16 %v696, %v693
      %v701 = vunpack.c.l.b16 %v699
      %v702 = vunpack.c.h.b16 %v699
      %v703 = vpack.c.b16 %v701, %v701
      %v704 = vpack.c.b16 %v702, %v702
      %s707 = scalar_lea.vmem %s206, 24
      %708 = vst [vmem:[%s707] sm:$0xf] %v703
      %709 = vst [vmem:[%s707 + $0x4] sm:$0xf] %v704
      %s710 = scalar_lea.vmem %s186, 32
      %v711 = vld [vmem:[%s710] sm:$0xf]
      %v712 = vld [vmem:[%s710 + $0x4] sm:$0xf]
      %s713 = scalar_lea.vmem %s196, 256
      %v714 = vld [vmem:[%s713] sm:$0xf]
      %v715 = vld [vmem:[%s713 + $0x4] sm:$0xf]
      %v716 = vld [vmem:[%s713 + $0x8] sm:$0xf]
      %v717 = vld [vmem:[%s713 + $0xc] sm:$0xf]
      %v718 = vld [vmem:[%s713 + $0x10] sm:$0xf]
      %v719 = vld [vmem:[%s713 + $0x14] sm:$0xf]
      %v720 = vld [vmem:[%s713 + $0x18] sm:$0xf]
      %v721 = vld [vmem:[%s713 + $0x1c] sm:$0xf]
      %v722 = vld [vmem:[%s713 + $0x20] sm:$0xf]
      %v723 = vld [vmem:[%s713 + $0x24] sm:$0xf]
      %v724 = vld [vmem:[%s713 + $0x28] sm:$0xf]
      %v725 = vld [vmem:[%s713 + $0x2c] sm:$0xf]
      %v726 = vld [vmem:[%s713 + $0x30] sm:$0xf]
      %v727 = vld [vmem:[%s713 + $0x34] sm:$0xf]
      %v728 = vld [vmem:[%s713 + $0x38] sm:$0xf]
      %v729 = vld [vmem:[%s713 + $0x3c] sm:$0xf]
      %v732 = vunpack.c.l.b16 %v711
      %v733 = vunpack.c.l.b16 %v712
      %v734 = vpack.c.b16 %v733, %v732
      %v752 = vunpack.c.l.b16 %v714
      %v753 = vunpack.c.l.b16 %v715
      %v754 = vunpack.c.l.b16 %v716
      %v755 = vunpack.c.l.b16 %v717
      %v756 = vunpack.c.l.b16 %v718
      %v757 = vunpack.c.l.b16 %v719
      %v758 = vunpack.c.l.b16 %v720
      %v759 = vunpack.c.l.b16 %v721
      %v760 = vunpack.c.l.b16 %v722
      %v761 = vunpack.c.l.b16 %v723
      %v762 = vunpack.c.l.b16 %v724
      %v763 = vunpack.c.l.b16 %v725
      %v764 = vunpack.c.l.b16 %v726
      %v765 = vunpack.c.l.b16 %v727
      %v766 = vunpack.c.l.b16 %v728
      %v767 = vunpack.c.l.b16 %v729
      %v768 = vpack.c.b16 %v753, %v752
      %v769 = vpack.c.b16 %v755, %v754
      %v770 = vpack.c.b16 %v757, %v756
      %v771 = vpack.c.b16 %v759, %v758
      %v772 = vpack.c.b16 %v761, %v760
      %v773 = vpack.c.b16 %v763, %v762
      %v774 = vpack.c.b16 %v765, %v764
      %v775 = vpack.c.b16 %v767, %v766
      %784 = vmatprep.subr.bf16.mxu0 0
      %785 = vmatpush1.bf16.msra.mxu0 %v768
      %786 = vmatprep.subr.bf16.mxu0 0
      %787 = vmatpush1.bf16.msra.mxu0 %v769
      %788 = vmatprep.subr.bf16.mxu0 0
      %789 = vmatpush1.bf16.msra.mxu0 %v770
      %790 = vmatprep.subr.bf16.mxu0 0
      %791 = vmatpush1.bf16.msra.mxu0 %v771
      %792 = vmatprep.subr.bf16.mxu0 0
      %793 = vmatpush1.bf16.msra.mxu0 %v772
      %794 = vmatprep.subr.bf16.mxu0 0
      %795 = vmatpush1.bf16.msra.mxu0 %v773
      %796 = vmatprep.subr.bf16.mxu0 0
      %797 = vmatpush1.bf16.msra.mxu0 %v774
      %798 = vmatprep.subr.bf16.mxu0 0
      %799 = vmatpush1.bf16.msra.mxu0 %v775
      %800 = vmatprep.subr.bf16.mxu0 0
      %801 = vmatpush1.bf16.msra.mxu0 0
      %802 = vmatprep.subr.bf16.mxu0 0
      %803 = vmatpush1.bf16.msra.mxu0 0
      %804 = vmatprep.subr.bf16.mxu0 0
      %805 = vmatpush1.bf16.msra.mxu0 0
      %806 = vmatprep.subr.bf16.mxu0 0
      %807 = vmatpush1.bf16.msra.mxu0 0
      %808 = vmatprep.subr.bf16.mxu0 0
      %809 = vmatpush1.bf16.msra.mxu0 0
      %810 = vmatprep.subr.bf16.mxu0 0
      %811 = vmatpush1.bf16.msra.mxu0 0
      %812 = vmatprep.subr.bf16.mxu0 0
      %813 = vmatpush1.bf16.msra.mxu0 0
      %814 = vmatprep.subr.bf16.mxu0 0
      %815 = vmatpush1.bf16.msra.mxu0 0
      %816 = vmatprep.mubr.bf16.mxu0 0
      %817 = vmatmul.mubr.bf16.gmra.mrb[0].mxu0 %v734
      %v818 = vpop.f32.mrb[0].mxu0
      %v819 = vadd.f32 0.0, %v818
      %v820 = vpop.f32.mrb[0].mxu0
      %v821 = vpop.f32.mrb[0].mxu0
      %v822 = vadd.f32 0.0, %v821
      %v823 = vpop.f32.mrb[0].mxu0
      %824 = vdwg.mxu0
      %v825 = vpack.c.bf16 %v822, %v819
      %v827 = vunpack.c.l.b16 %v825
      %v828 = vunpack.c.h.b16 %v825
      %v829 = vpack.c.b16 %v827, %v827
      %v830 = vpack.c.b16 %v828, %v828
      %s833 = scalar_lea.vmem %s206, 32
      %834 = vst [vmem:[%s833] sm:$0xf] %v829
      %835 = vst [vmem:[%s833 + $0x4] sm:$0xf] %v830
      %s836 = scalar_lea.vmem %s186, 40
      %v837 = vld [vmem:[%s836] sm:$0xf]
      %v838 = vld [vmem:[%s836 + $0x4] sm:$0xf]
      %s839 = scalar_lea.vmem %s196, 320
      %v840 = vld [vmem:[%s839] sm:$0xf]
      %v841 = vld [vmem:[%s839 + $0x4] sm:$0xf]
      %v842 = vld [vmem:[%s839 + $0x8] sm:$0xf]
      %v843 = vld [vmem:[%s839 + $0xc] sm:$0xf]
      %v844 = vld [vmem:[%s839 + $0x10] sm:$0xf]
      %v845 = vld [vmem:[%s839 + $0x14] sm:$0xf]
      %v846 = vld [vmem:[%s839 + $0x18] sm:$0xf]
      %v847 = vld [vmem:[%s839 + $0x1c] sm:$0xf]
      %v848 = vld [vmem:[%s839 + $0x20] sm:$0xf]
      %v849 = vld [vmem:[%s839 + $0x24] sm:$0xf]
      %v850 = vld [vmem:[%s839 + $0x28] sm:$0xf]
      %v851 = vld [vmem:[%s839 + $0x2c] sm:$0xf]
      %v852 = vld [vmem:[%s839 + $0x30] sm:$0xf]
      %v853 = vld [vmem:[%s839 + $0x34] sm:$0xf]
      %v854 = vld [vmem:[%s839 + $0x38] sm:$0xf]
      %v855 = vld [vmem:[%s839 + $0x3c] sm:$0xf]
      %v858 = vunpack.c.l.b16 %v837
      %v859 = vunpack.c.l.b16 %v838
      %v860 = vpack.c.b16 %v859, %v858
      %v878 = vunpack.c.l.b16 %v840
      %v879 = vunpack.c.l.b16 %v841
      %v880 = vunpack.c.l.b16 %v842
      %v881 = vunpack.c.l.b16 %v843
      %v882 = vunpack.c.l.b16 %v844
      %v883 = vunpack.c.l.b16 %v845
      %v884 = vunpack.c.l.b16 %v846
      %v885 = vunpack.c.l.b16 %v847
      %v886 = vunpack.c.l.b16 %v848
      %v887 = vunpack.c.l.b16 %v849
      %v888 = vunpack.c.l.b16 %v850
      %v889 = vunpack.c.l.b16 %v851
      %v890 = vunpack.c.l.b16 %v852
      %v891 = vunpack.c.l.b16 %v853
      %v892 = vunpack.c.l.b16 %v854
      %v893 = vunpack.c.l.b16 %v855
      %v894 = vpack.c.b16 %v879, %v878
      %v895 = vpack.c.b16 %v881, %v880
      %v896 = vpack.c.b16 %v883, %v882
      %v897 = vpack.c.b16 %v885, %v884
      %v898 = vpack.c.b16 %v887, %v886
      %v899 = vpack.c.b16 %v889, %v888
      %v900 = vpack.c.b16 %v891, %v890
      %v901 = vpack.c.b16 %v893, %v892
      %910 = vmatprep.subr.bf16.mxu0 0
      %911 = vmatpush1.bf16.msra.mxu0 %v894
      %912 = vmatprep.subr.bf16.mxu0 0
      %913 = vmatpush1.bf16.msra.mxu0 %v895
      %914 = vmatprep.subr.bf16.mxu0 0
      %915 = vmatpush1.bf16.msra.mxu0 %v896
      %916 = vmatprep.subr.bf16.mxu0 0
      %917 = vmatpush1.bf16.msra.mxu0 %v897
      %918 = vmatprep.subr.bf16.mxu0 0
      %919 = vmatpush1.bf16.msra.mxu0 %v898
      %920 = vmatprep.subr.bf16.mxu0 0
      %921 = vmatpush1.bf16.msra.mxu0 %v899
      %922 = vmatprep.subr.bf16.mxu0 0
      %923 = vmatpush1.bf16.msra.mxu0 %v900
      %924 = vmatprep.subr.bf16.mxu0 0
      %925 = vmatpush1.bf16.msra.mxu0 %v901
      %926 = vmatprep.subr.bf16.mxu0 0
      %927 = vmatpush1.bf16.msra.mxu0 0
      %928 = vmatprep.subr.bf16.mxu0 0
      %929 = vmatpush1.bf16.msra.mxu0 0
      %930 = vmatprep.subr.bf16.mxu0 0
      %931 = vmatpush1.bf16.msra.mxu0 0
      %932 = vmatprep.subr.bf16.mxu0 0
      %933 = vmatpush1.bf16.msra.mxu0 0
      %934 = vmatprep.subr.bf16.mxu0 0
      %935 = vmatpush1.bf16.msra.mxu0 0
      %936 = vmatprep.subr.bf16.mxu0 0
      %937 = vmatpush1.bf16.msra.mxu0 0
      %938 = vmatprep.subr.bf16.mxu0 0
      %939 = vmatpush1.bf16.msra.mxu0 0
      %940 = vmatprep.subr.bf16.mxu0 0
      %941 = vmatpush1.bf16.msra.mxu0 0
      %942 = vmatprep.mubr.bf16.mxu0 0
      %943 = vmatmul.mubr.bf16.gmra.mrb[0].mxu0 %v860
      %v944 = vpop.f32.mrb[0].mxu0
      %v945 = vadd.f32 0.0, %v944
      %v946 = vpop.f32.mrb[0].mxu0
      %v947 = vpop.f32.mrb[0].mxu0
      %v948 = vadd.f32 0.0, %v947
      %v949 = vpop.f32.mrb[0].mxu0
      %950 = vdwg.mxu0
      %v951 = vpack.c.bf16 %v948, %v945
      %v953 = vunpack.c.l.b16 %v951
      %v954 = vunpack.c.h.b16 %v951
      %v955 = vpack.c.b16 %v953, %v953
      %v956 = vpack.c.b16 %v954, %v954
      %s959 = scalar_lea.vmem %s206, 40
      %960 = vst [vmem:[%s959] sm:$0xf] %v955
      %961 = vst [vmem:[%s959 + $0x4] sm:$0xf] %v956
      %s962 = scalar_lea.vmem %s186, 48
      %v963 = vld [vmem:[%s962] sm:$0xf]
      %v964 = vld [vmem:[%s962 + $0x4] sm:$0xf]
      %s965 = scalar_lea.vmem %s196, 384
      %v966 = vld [vmem:[%s965] sm:$0xf]
      %v967 = vld [vmem:[%s965 + $0x4] sm:$0xf]
      %v968 = vld [vmem:[%s965 + $0x8] sm:$0xf]
      %v969 = vld [vmem:[%s965 + $0xc] sm:$0xf]
      %v970 = vld [vmem:[%s965 + $0x10] sm:$0xf]
      %v971 = vld [vmem:[%s965 + $0x14] sm:$0xf]
      %v972 = vld [vmem:[%s965 + $0x18] sm:$0xf]
      %v973 = vld [vmem:[%s965 + $0x1c] sm:$0xf]
      %v974 = vld [vmem:[%s965 + $0x20] sm:$0xf]
      %v975 = vld [vmem:[%s965 + $0x24] sm:$0xf]
      %v976 = vld [vmem:[%s965 + $0x28] sm:$0xf]
      %v977 = vld [vmem:[%s965 + $0x2c] sm:$0xf]
      %v978 = vld [vmem:[%s965 + $0x30] sm:$0xf]
      %v979 = vld [vmem:[%s965 + $0x34] sm:$0xf]
      %v980 = vld [vmem:[%s965 + $0x38] sm:$0xf]
      %v981 = vld [vmem:[%s965 + $0x3c] sm:$0xf]
      %v984 = vunpack.c.l.b16 %v963
      %v985 = vunpack.c.l.b16 %v964
      %v986 = vpack.c.b16 %v985, %v984
      %v1004 = vunpack.c.l.b16 %v966
      %v1005 = vunpack.c.l.b16 %v967
      %v1006 = vunpack.c.l.b16 %v968
      %v1007 = vunpack.c.l.b16 %v969
      %v1008 = vunpack.c.l.b16 %v970
      %v1009 = vunpack.c.l.b16 %v971
      %v1010 = vunpack.c.l.b16 %v972
      %v1011 = vunpack.c.l.b16 %v973
      %v1012 = vunpack.c.l.b16 %v974
      %v1013 = vunpack.c.l.b16 %v975
      %v1014 = vunpack.c.l.b16 %v976
      %v1015 = vunpack.c.l.b16 %v977
      %v1016 = vunpack.c.l.b16 %v978
      %v1017 = vunpack.c.l.b16 %v979
      %v1018 = vunpack.c.l.b16 %v980
      %v1019 = vunpack.c.l.b16 %v981
      %v1020 = vpack.c.b16 %v1005, %v1004
      %v1021 = vpack.c.b16 %v1007, %v1006
      %v1022 = vpack.c.b16 %v1009, %v1008
      %v1023 = vpack.c.b16 %v1011, %v1010
      %v1024 = vpack.c.b16 %v1013, %v1012
      %v1025 = vpack.c.b16 %v1015, %v1014
      %v1026 = vpack.c.b16 %v1017, %v1016
      %v1027 = vpack.c.b16 %v1019, %v1018
      %1036 = vmatprep.subr.bf16.mxu0 0
      %1037 = vmatpush1.bf16.msra.mxu0 %v1020
      %1038 = vmatprep.subr.bf16.mxu0 0
      %1039 = vmatpush1.bf16.msra.mxu0 %v1021
      %1040 = vmatprep.subr.bf16.mxu0 0
      %1041 = vmatpush1.bf16.msra.mxu0 %v1022
      %1042 = vmatprep.subr.bf16.mxu0 0
      %1043 = vmatpush1.bf16.msra.mxu0 %v1023
      %1044 = vmatprep.subr.bf16.mxu0 0
      %1045 = vmatpush1.bf16.msra.mxu0 %v1024
      %1046 = vmatprep.subr.bf16.mxu0 0
      %1047 = vmatpush1.bf16.msra.mxu0 %v1025
      %1048 = vmatprep.subr.bf16.mxu0 0
      %1049 = vmatpush1.bf16.msra.mxu0 %v1026
      %1050 = vmatprep.subr.bf16.mxu0 0
      %1051 = vmatpush1.bf16.msra.mxu0 %v1027
      %1052 = vmatprep.subr.bf16.mxu0 0
      %1053 = vmatpush1.bf16.msra.mxu0 0
      %1054 = vmatprep.subr.bf16.mxu0 0
      %1055 = vmatpush1.bf16.msra.mxu0 0
      %1056 = vmatprep.subr.bf16.mxu0 0
      %1057 = vmatpush1.bf16.msra.mxu0 0
      %1058 = vmatprep.subr.bf16.mxu0 0
      %1059 = vmatpush1.bf16.msra.mxu0 0
      %1060 = vmatprep.subr.bf16.mxu0 0
      %1061 = vmatpush1.bf16.msra.mxu0 0
      %1062 = vmatprep.subr.bf16.mxu0 0
      %1063 = vmatpush1.bf16.msra.mxu0 0
      %1064 = vmatprep.subr.bf16.mxu0 0
      %1065 = vmatpush1.bf16.msra.mxu0 0
      %1066 = vmatprep.subr.bf16.mxu0 0
      %1067 = vmatpush1.bf16.msra.mxu0 0
      %1068 = vmatprep.mubr.bf16.mxu0 0
      %1069 = vmatmul.mubr.bf16.gmra.mrb[0].mxu0 %v986
      %v1070 = vpop.f32.mrb[0].mxu0
      %v1071 = vadd.f32 0.0, %v1070
      %v1072 = vpop.f32.mrb[0].mxu0
      %v1073 = vpop.f32.mrb[0].mxu0
      %v1074 = vadd.f32 0.0, %v1073
      %v1075 = vpop.f32.mrb[0].mxu0
      %1076 = vdwg.mxu0
      %v1077 = vpack.c.bf16 %v1074, %v1071
      %v1079 = vunpack.c.l.b16 %v1077
      %v1080 = vunpack.c.h.b16 %v1077
      %v1081 = vpack.c.b16 %v1079, %v1079
      %v1082 = vpack.c.b16 %v1080, %v1080
      %s1085 = scalar_lea.vmem %s206, 48
      %1086 = vst [vmem:[%s1085] sm:$0xf] %v1081
      %1087 = vst [vmem:[%s1085 + $0x4] sm:$0xf] %v1082
      %s1088 = scalar_lea.vmem %s186, 56
      %v1089 = vld [vmem:[%s1088] sm:$0xf]
      %v1090 = vld [vmem:[%s1088 + $0x4] sm:$0xf]
      %s1091 = scalar_lea.vmem %s196, 448
      %v1092 = vld [vmem:[%s1091] sm:$0xf]
      %v1093 = vld [vmem:[%s1091 + $0x4] sm:$0xf]
      %v1094 = vld [vmem:[%s1091 + $0x8] sm:$0xf]
      %v1095 = vld [vmem:[%s1091 + $0xc] sm:$0xf]
      %v1096 = vld [vmem:[%s1091 + $0x10] sm:$0xf]
      %v1097 = vld [vmem:[%s1091 + $0x14] sm:$0xf]
      %v1098 = vld [vmem:[%s1091 + $0x18] sm:$0xf]
      %v1099 = vld [vmem:[%s1091 + $0x1c] sm:$0xf]
      %v1100 = vld [vmem:[%s1091 + $0x20] sm:$0xf]
      %v1101 = vld [vmem:[%s1091 + $0x24] sm:$0xf]
      %v1102 = vld [vmem:[%s1091 + $0x28] sm:$0xf]
      %v1103 = vld [vmem:[%s1091 + $0x2c] sm:$0xf]
      %v1104 = vld [vmem:[%s1091 + $0x30] sm:$0xf]
      %v1105 = vld [vmem:[%s1091 + $0x34] sm:$0xf]
      %v1106 = vld [vmem:[%s1091 + $0x38] sm:$0xf]
      %v1107 = vld [vmem:[%s1091 + $0x3c] sm:$0xf]
      %v1110 = vunpack.c.l.b16 %v1089
      %v1111 = vunpack.c.l.b16 %v1090
      %v1112 = vpack.c.b16 %v1111, %v1110
      %v1130 = vunpack.c.l.b16 %v1092
      %v1131 = vunpack.c.l.b16 %v1093
      %v1132 = vunpack.c.l.b16 %v1094
      %v1133 = vunpack.c.l.b16 %v1095
      %v1134 = vunpack.c.l.b16 %v1096
      %v1135 = vunpack.c.l.b16 %v1097
      %v1136 = vunpack.c.l.b16 %v1098
      %v1137 = vunpack.c.l.b16 %v1099
      %v1138 = vunpack.c.l.b16 %v1100
      %v1139 = vunpack.c.l.b16 %v1101
      %v1140 = vunpack.c.l.b16 %v1102
      %v1141 = vunpack.c.l.b16 %v1103
      %v1142 = vunpack.c.l.b16 %v1104
      %v1143 = vunpack.c.l.b16 %v1105
      %v1144 = vunpack.c.l.b16 %v1106
      %v1145 = vunpack.c.l.b16 %v1107
      %v1146 = vpack.c.b16 %v1131, %v1130
      %v1147 = vpack.c.b16 %v1133, %v1132
      %v1148 = vpack.c.b16 %v1135, %v1134
      %v1149 = vpack.c.b16 %v1137, %v1136
      %v1150 = vpack.c.b16 %v1139, %v1138
      %v1151 = vpack.c.b16 %v1141, %v1140
      %v1152 = vpack.c.b16 %v1143, %v1142
      %v1153 = vpack.c.b16 %v1145, %v1144
      %1162 = vmatprep.subr.bf16.mxu0 0
      %1163 = vmatpush1.bf16.msra.mxu0 %v1146
      %1164 = vmatprep.subr.bf16.mxu0 0
      %1165 = vmatpush1.bf16.msra.mxu0 %v1147
      %1166 = vmatprep.subr.bf16.mxu0 0
      %1167 = vmatpush1.bf16.msra.mxu0 %v1148
      %1168 = vmatprep.subr.bf16.mxu0 0
      %1169 = vmatpush1.bf16.msra.mxu0 %v1149
      %1170 = vmatprep.subr.bf16.mxu0 0
      %1171 = vmatpush1.bf16.msra.mxu0 %v1150
      %1172 = vmatprep.subr.bf16.mxu0 0
      %1173 = vmatpush1.bf16.msra.mxu0 %v1151
      %1174 = vmatprep.subr.bf16.mxu0 0
      %1175 = vmatpush1.bf16.msra.mxu0 %v1152
      %1176 = vmatprep.subr.bf16.mxu0 0
      %1177 = vmatpush1.bf16.msra.mxu0 %v1153
      %1178 = vmatprep.subr.bf16.mxu0 0
      %1179 = vmatpush1.bf16.msra.mxu0 0
      %1180 = vmatprep.subr.bf16.mxu0 0
      %1181 = vmatpush1.bf16.msra.mxu0 0
      %1182 = vmatprep.subr.bf16.mxu0 0
      %1183 = vmatpush1.bf16.msra.mxu0 0
      %1184 = vmatprep.subr.bf16.mxu0 0
      %1185 = vmatpush1.bf16.msra.mxu0 0
      %1186 = vmatprep.subr.bf16.mxu0 0
      %1187 = vmatpush1.bf16.msra.mxu0 0
      %1188 = vmatprep.subr.bf16.mxu0 0
      %1189 = vmatpush1.bf16.msra.mxu0 0
      %1190 = vmatprep.subr.bf16.mxu0 0
      %1191 = vmatpush1.bf16.msra.mxu0 0
      %1192 = vmatprep.subr.bf16.mxu0 0
      %1193 = vmatpush1.bf16.msra.mxu0 0
      %1194 = vmatprep.mubr.bf16.mxu0 0
      %1195 = vmatmul.mubr.bf16.gmra.mrb[0].mxu0 %v1112
      %v1196 = vpop.f32.mrb[0].mxu0
      %v1197 = vadd.f32 0.0, %v1196
      %v1198 = vpop.f32.mrb[0].mxu0
      %v1199 = vpop.f32.mrb[0].mxu0
      %v1200 = vadd.f32 0.0, %v1199
      %v1201 = vpop.f32.mrb[0].mxu0
      %1202 = vdwg.mxu0
      %v1203 = vpack.c.bf16 %v1200, %v1197
      %v1205 = vunpack.c.l.b16 %v1203
      %v1206 = vunpack.c.h.b16 %v1203
      %v1207 = vpack.c.b16 %v1205, %v1205
      %v1208 = vpack.c.b16 %v1206, %v1206
      %s1211 = scalar_lea.vmem %s206, 56
      %1212 = vst [vmem:[%s1211] sm:$0xf] %v1207
      %1213 = vst [vmem:[%s1211 + $0x4] sm:$0xf] %v1208
      %s1214 = smul.u32 8, %s17
      %p1215 = scmp.lt.s32.totalorder %s1214, 15
      %s1216 = scalar_select %p1215, %s1214, 15
      %p1217 = scmp.lt.s32.totalorder %s18, 0
      %s1218 = scalar_select %p1217, %s18, 0
      %s1219 = smul.addr %s1216, 2
      %s1220 = sadd.s32 %s1218, %s1219
      %s1221 = smul.addr %s1220, 4
      %s1222 = scalar_lea.vmem %s2, %s1221
      // Predicated region
      $region29: #{_forward_impl.7} parent=27 // pred_check
        %p1223 = pneg %p99
      $region30: #{_forward_impl.7} parent=27 // pred_check_branch
        %1225 = sbr.rel (%p1223) target = $region32
      $region31: #{_forward_impl.7} parent=27 // pred_region
        %s1226 = smul.u32 8, %s17
      $region32: #{_forward_impl.7} parent=27 // pred_fallthru
        _
    $region28: #{_forward_impl.7} parent=5 // pred_fallthru
      _
    %p1227 = scmp.le.s32.totalorder 2, %s8
    // Predicated region
    $region33: #{_forward_impl.7} parent=5 // pred_check
      %p1228 = pneg %p1227
    $region34: #{_forward_impl.7} parent=5 // pred_check_branch
      %1230 = sbr.rel (%p1228) target = $region36
    $region35: #{_forward_impl.7} parent=5 // pred_region
      %s1231 = ssub.s32 %s8, 2
      // Predicated region
      $region37: #{_forward_impl.7} parent=35 // pred_check
        %p1232 = pneg %p105
      $region38: #{_forward_impl.7} parent=35 // pred_check_branch
        %1234 = sbr.rel (%p1232) target = $region40
      $region39: #{_forward_impl.7} parent=35 // pred_region
        %s1235 = smul.u32 8, %s19
        %p1236 = scmp.lt.s32.totalorder %s1235, 15
        %s1237 = scalar_select %p1236, %s1235, 15
        %p1238 = scmp.lt.s32.totalorder %s20, 0
        %s1239 = scalar_select %p1238, %s20, 0
        %s1240 = smul.addr %s1237, 2
        %s1241 = sadd.s32 %s1239, %s1240
        %s1242 = smul.addr %s1241, 4
        %s1243 = scalar_lea.vmem %s2, %s1242
      $region40: #{_forward_impl.7} parent=35 // pred_fallthru
        _
    $region36: #{_forward_impl.7} parent=5 // pred_fallthru
      _
  $region6: #{_forward_impl.7} parent=0 // loop_footer
    %s12 = sadd.s32 1, %s8
  $region7: #{_forward_impl.7} parent=0 // loop_footer_branch
    %7 = sbr.rel target = $region3
  $region8: #{_forward_impl.7} parent=0 // loop_exit
    _

// kernel: _forward_impl.9
$region0: #{_forward_impl.9}
  #allocation0 [shape = 'u32[]', space=smem, size = 0x4, offset = 0x4, fixed_abs, tag = 'smem constant byte address 0x4 - core index']
  #allocation1 [shape = 'u32[144,128]{1,0:T(1,128)}', space=vmem, size = 0x12000, scoped, tag = 'internal scratch']
  %s0 = inlined_call_operand.vmem [shape: bf16[8,16,128], index: 0, kind: input, shape index: {}]
  %s1 = inlined_call_operand.vmem [shape: bf16[8,128,128], index: 1, kind: input, shape index: {}]
  %s2 = inlined_call_operand.vmem [shape: f32[8,16,128], index: 2, kind: output, shape index: {}]
  %s3 = sld [smem:[#allocation0]]
  $region41: #{_forward_impl.9} parent=0
    _
  %s5 = ssub.s32 1, %s3
  %s6 = scalar_select 0, %s5, %s3
  loop: start=0, step=1, limit=4
  $region2: #{_forward_impl.9} parent=0 // loop_pre_header
    _
  $region3: #{_forward_impl.9} parent=0 // loop_header
    %s8 = sphi 0, %s12
    %p9 = scmp.ge.s32.totalorder %s8, 4
    %s15 = sphi 0, %s27
    %s16 = sphi 0, %s23
    %s17 = sphi 0, %s15
    %s18 = sphi 0, %s16
    %s19 = sphi 0, %s17
    %s20 = sphi 0, %s18
    %s30 = sphi 0, %s32
    %s33 = sphi 0, %s30
    %s34 = sphi 0, %s33
    %s50 = sphi 0, %s34
    %s58 = sphi 0, %s60
    %s61 = sphi 0, %s58
    %s62 = sphi 0, %s61
    %s78 = sphi 0, %s62
    %s86 = sphi 0, %s88
    %s89 = sphi 0, %s86
    %s90 = sphi 0, %s89
    %s106 = sphi 0, %s90
  $region4: #{_forward_impl.9} parent=0 // loop_header_branch
    %11 = sbr.rel (%p9) target = $region8
  $region5: #{_forward_impl.9} parent=0 // loop_body
    %s13 = ssub.s32 %s8, 1
    %s14 = ssub.s32 %s8, 2
    %s21 = sadd.s32 1, %s16
    %p22 = scmp.ge.s32.totalorder %s21, 1
    %s23 = scalar_select %p22, 0, %s21
    %s24 = sadd.s32 1, %s15
    %s25 = scalar_select %p22, %s24, %s15
    %p26 = scmp.ge.s32.totalorder %s25, 2
    %s27 = scalar_select %p26, 0, %s25
    %s28 = ssub.s32 %s15, %s27
    %p29 = scmp.eq.s32.totalorder %s28, 0
    %s31 = sadd.s32 %s30, 1
    %s32 = scalar_select %p29, %s30, %s31
    %p35 = pneg %p29
    %p36 = scmp.eq.s32.totalorder %s8, 1
    %p37 = por %p35, %p36
    %p38 = scmp.ne.s32.totalorder %s30, %s33
    %p39 = scmp.eq.s32.totalorder %s8, 0
    %p40 = por %p38, %p39
    %p41 = scmp.ne.s32.totalorder %s30, %s33
    %p42 = scmp.eq.s32.totalorder %s13, 1
    %p43 = por %p41, %p42
    %p44 = scmp.ne.s32.totalorder %s33, %s34
    %p45 = scmp.eq.s32.totalorder %s13, 0
    %p46 = por %p44, %p45
    %p47 = scmp.ne.s32.totalorder %s33, %s34
    %p48 = scmp.eq.s32.totalorder %s14, 1
    %p49 = por %p47, %p48
    %p51 = scmp.ne.s32.totalorder %s34, %s50
    %p52 = scmp.eq.s32.totalorder %s14, 0
    %p53 = por %p51, %p52
    %s54 = ssub.s32 %s15, %s27
    %s55 = ssub.s32 %s16, %s23
    %s56 = sor.u32 %s54, %s55
    %p57 = scmp.eq.s32.totalorder %s56, 0
    %s59 = sadd.s32 %s58, 1
    %s60 = scalar_select %p57, %s58, %s59
    %p63 = pneg %p57
    %p64 = scmp.eq.s32.totalorder %s8, 1
    %p65 = por %p63, %p64
    %p66 = scmp.ne.s32.totalorder %s58, %s61
    %p67 = scmp.eq.s32.totalorder %s8, 0
    %p68 = por %p66, %p67
    %p69 = scmp.ne.s32.totalorder %s58, %s61
    %p70 = scmp.eq.s32.totalorder %s13, 1
    %p71 = por %p69, %p70
    %p72 = scmp.ne.s32.totalorder %s61, %s62
    %p73 = scmp.eq.s32.totalorder %s13, 0
    %p74 = por %p72, %p73
    %p75 = scmp.ne.s32.totalorder %s61, %s62
    %p76 = scmp.eq.s32.totalorder %s14, 1
    %p77 = por %p75, %p76
    %p79 = scmp.ne.s32.totalorder %s62, %s78
    %p80 = scmp.eq.s32.totalorder %s14, 0
    %p81 = por %p79, %p80
    %s82 = ssub.s32 %s15, %s27
    %s83 = ssub.s32 %s16, %s23
    %s84 = sor.u32 %s82, %s83
    %p85 = scmp.eq.s32.totalorder %s84, 0
    %s87 = sadd.s32 %s86, 1
    %s88 = scalar_select %p85, %s86, %s87
    %p91 = pneg %p85
    %p92 = scmp.eq.s32.totalorder %s8, 1
    %p93 = por %p91, %p92
    %p94 = scmp.ne.s32.totalorder %s86, %s89
    %p95 = scmp.eq.s32.totalorder %s8, 0
    %p96 = por %p94, %p95
    %p97 = scmp.ne.s32.totalorder %s86, %s89
    %p98 = scmp.eq.s32.totalorder %s13, 1
    %p99 = por %p97, %p98
    %p100 = scmp.ne.s32.totalorder %s89, %s90
    %p101 = scmp.eq.s32.totalorder %s13, 0
    %p102 = por %p100, %p101
    %p103 = scmp.ne.s32.totalorder %s89, %s90
    %p104 = scmp.eq.s32.totalorder %s14, 1
    %p105 = por %p103, %p104
    %p107 = scmp.ne.s32.totalorder %s90, %s106
    %p108 = scmp.eq.s32.totalorder %s14, 0
    %p109 = por %p107, %p108
    %p110 = scmp.le.s32.totalorder 1, %s8
    %p111 = scmp.lt.s32.totalorder %s8, 3
    %p112 = pnand %p110, %p111
    %p113 = pneg %p112
    // Predicated region
    $region9: #{_forward_impl.9} parent=5 // pred_check
      _
    $region10: #{_forward_impl.9} parent=5 // pred_check_branch
      %115 = sbr.rel (%p112) target = $region12
    $region11: #{_forward_impl.9} parent=5 // pred_region
      %s116 = ssub.s32 %s8, 1
    $region12: #{_forward_impl.9} parent=5 // pred_fallthru
      _
    %p117 = scmp.lt.s32.totalorder %s8, 2
    // Predicated region
    $region13: #{_forward_impl.9} parent=5 // pred_check
      %p118 = pneg %p117
    $region14: #{_forward_impl.9} parent=5 // pred_check_branch
      %120 = sbr.rel (%p118) target = $region16
    $region15: #{_forward_impl.9} parent=5 // pred_region
      // Predicated region
      $region17: #{_forward_impl.9} parent=15 // pred_check
        %p121 = pneg %p40
      $region18: #{_forward_impl.9} parent=15 // pred_check_branch
        %123 = sbr.rel (%p121) target = $region20
      $region19: #{_forward_impl.9} parent=15 // pred_region
        %s124 = smul.u32 4, %s15
        %p125 = scmp.lt.s32.totalorder %s124, 7
        %s126 = scalar_select %p125, %s124, 7
        %s127 = smul.addr %s126, 2
        %s128 = smul.addr %s127, 4
        %s129 = scalar_lea.vmem %s0, %s128
        %s130 = smul.u32 4, %s15
      $region20: #{_forward_impl.9} parent=15 // pred_fallthru
        _
      // Predicated region
      $region21: #{_forward_impl.9} parent=15 // pred_check
        %p131 = pneg %p68
      $region22: #{_forward_impl.9} parent=15 // pred_check_branch
        %133 = sbr.rel (%p131) target = $region24
      $region23: #{_forward_impl.9} parent=15 // pred_region
        %s134 = smul.u32 4, %s15
        %p135 = scmp.lt.s32.totalorder %s134, 7
        %s136 = scalar_select %p135, %s134, 7
        %p137 = scmp.lt.s32.totalorder %s16, 0
        %s138 = scalar_select %p137, %s16, 0
        %s139 = smul.addr %s136, 16
        %s140 = sadd.s32 %s138, %s139
        %s141 = smul.addr %s140, 4
        %s142 = scalar_lea.vmem %s1, %s141
        %s143 = smul.u32 4, %s15
      $region24: #{_forward_impl.9} parent=15 // pred_fallthru
        _
    $region16: #{_forward_impl.9} parent=5 // pred_fallthru
      _
    %p144 = scmp.le.s32.totalorder 1, %s8
    %p145 = scmp.lt.s32.totalorder %s8, 3
    %p146 = pnand %p144, %p145
    %p147 = pneg %p146
    // Predicated region
    $region25: #{_forward_impl.9} parent=5 // pred_check
      _
    $region26: #{_forward_impl.9} parent=5 // pred_check_branch
      %149 = sbr.rel (%p146) target = $region28
    $region27: #{_forward_impl.9} parent=5 // pred_region
      %s150 = ssub.s32 %s8, 1
      %s151 = smul.u32 4, %s17
      %p152 = scmp.lt.s32.totalorder %s151, 7
      %s153 = scalar_select %p152, %s151, 7
      %s154 = smul.addr %s153, 2
      %s155 = smul.addr %s154, 4
      %s156 = scalar_lea.vmem %s0, %s155
      %p157 = pneg %p46
      %p158 = pneg %p43
      %s159 = smul.u32 4, %s17
      %p160 = scmp.lt.s32.totalorder %s159, 7
      %s161 = scalar_select %p160, %s159, 7
      %p162 = scmp.lt.s32.totalorder %s18, 0
      %s163 = scalar_select %p162, %s18, 0
      %s164 = smul.addr %s161, 16
      %s165 = sadd.s32 %s163, %s164
      %s166 = smul.addr %s165, 4
      %s167 = scalar_lea.vmem %s1, %s166
      %p168 = pneg %p74
      %p169 = pneg %p71
      %p170 = pneg %p102
      %p171 = pneg %p99
      %s172 = smul.u32 4, %s17
      %p173 = scmp.lt.s32.totalorder %s172, 7
      %s174 = scalar_select %p173, %s172, 7
      %p175 = scmp.lt.s32.totalorder %s18, 0
      %s176 = scalar_select %p175, %s18, 0
      %s177 = smul.addr %s174, 2
      %s178 = sadd.s32 %s176, %s177
      %s179 = smul.addr %s178, 8
      %s180 = scalar_lea.vmem %s2, %s179
      %s181 = smul.u32 4, %s17
      %p182 = scmp.lt.s32.totalorder %s181, 7
      %s183 = scalar_select %p182, %s181, 7
      %s184 = smul.addr %s183, 2
      %s185 = smul.addr %s184, 4
      %s186 = scalar_lea.vmem %s0, %s185
      %s187 = smul.u32 4, %s17
      %s188 = smul.u32 4, %s17
      %p189 = scmp.lt.s32.totalorder %s188, 7
      %s190 = scalar_select %p189, %s188, 7
      %p191 = scmp.lt.s32.totalorder %s18, 0
      %s192 = scalar_select %p191, %s18, 0
      %s193 = smul.addr %s190, 16
      %s194 = sadd.s32 %s192, %s193
      %s195 = smul.addr %s194, 4
      %s196 = scalar_lea.vmem %s1, %s195
      %s197 = smul.u32 4, %s17
      %s198 = smul.u32 4, %s17
      %p199 = scmp.lt.s32.totalorder %s198, 7
      %s200 = scalar_select %p199, %s198, 7
      %p201 = scmp.lt.s32.totalorder %s18, 0
      %s202 = scalar_select %p201, %s18, 0
      %s203 = smul.addr %s200, 2
      %s204 = sadd.s32 %s202, %s203
      %s205 = smul.addr %s204, 8
      %s206 = scalar_lea.vmem %s2, %s205
      %s207 = smul.u32 4, %s17
      %v209 = vld [vmem:[%s186] sm:$0xf]
      %v210 = vld [vmem:[%s186 + $0x4] sm:$0xf]
      %v211 = vld [vmem:[%s196] sm:$0xf]
      %v212 = vld [vmem:[%s196 + $0x4] sm:$0xf]
      %v213 = vld [vmem:[%s196 + $0x8] sm:$0xf]
      %v214 = vld [vmem:[%s196 + $0xc] sm:$0xf]
      %v215 = vld [vmem:[%s196 + $0x10] sm:$0xf]
      %v216 = vld [vmem:[%s196 + $0x14] sm:$0xf]
      %v217 = vld [vmem:[%s196 + $0x18] sm:$0xf]
      %v218 = vld [vmem:[%s196 + $0x1c] sm:$0xf]
      %v219 = vld [vmem:[%s196 + $0x20] sm:$0xf]
      %v220 = vld [vmem:[%s196 + $0x24] sm:$0xf]
      %v221 = vld [vmem:[%s196 + $0x28] sm:$0xf]
      %v222 = vld [vmem:[%s196 + $0x2c] sm:$0xf]
      %v223 = vld [vmem:[%s196 + $0x30] sm:$0xf]
      %v224 = vld [vmem:[%s196 + $0x34] sm:$0xf]
      %v225 = vld [vmem:[%s196 + $0x38] sm:$0xf]
      %v226 = vld [vmem:[%s196 + $0x3c] sm:$0xf]
      %v229 = vunpack.c.l.b16 %v209
      %v230 = vunpack.c.l.b16 %v210
      %v231 = vpack.c.b16 %v230, %v229
      %v249 = vunpack.c.l.b16 %v211
      %v250 = vunpack.c.l.b16 %v212
      %v251 = vunpack.c.l.b16 %v213
      %v252 = vunpack.c.l.b16 %v214
      %v253 = vunpack.c.l.b16 %v215
      %v254 = vunpack.c.l.b16 %v216
      %v255 = vunpack.c.l.b16 %v217
      %v256 = vunpack.c.l.b16 %v218
      %v257 = vunpack.c.l.b16 %v219
      %v258 = vunpack.c.l.b16 %v220
      %v259 = vunpack.c.l.b16 %v221
      %v260 = vunpack.c.l.b16 %v222
      %v261 = vunpack.c.l.b16 %v223
      %v262 = vunpack.c.l.b16 %v224
      %v263 = vunpack.c.l.b16 %v225
      %v264 = vunpack.c.l.b16 %v226
      %v265 = vpack.c.b16 %v250, %v249
      %v266 = vpack.c.b16 %v252, %v251
      %v267 = vpack.c.b16 %v254, %v253
      %v268 = vpack.c.b16 %v256, %v255
      %v269 = vpack.c.b16 %v258, %v257
      %v270 = vpack.c.b16 %v260, %v259
      %v271 = vpack.c.b16 %v262, %v261
      %v272 = vpack.c.b16 %v264, %v263
      %281 = vmatprep.subr.bf16.mxu0 0
      %282 = vmatpush1.bf16.msra.mxu0 %v265
      %283 = vmatprep.subr.bf16.mxu0 0
      %284 = vmatpush1.bf16.msra.mxu0 %v266
      %285 = vmatprep.subr.bf16.mxu0 0
      %286 = vmatpush1.bf16.msra.mxu0 %v267
      %287 = vmatprep.subr.bf16.mxu0 0
      %288 = vmatpush1.bf16.msra.mxu0 %v268
      %289 = vmatprep.subr.bf16.mxu0 0
      %290 = vmatpush1.bf16.msra.mxu0 %v269
      %291 = vmatprep.subr.bf16.mxu0 0
      %292 = vmatpush1.bf16.msra.mxu0 %v270
      %293 = vmatprep.subr.bf16.mxu0 0
      %294 = vmatpush1.bf16.msra.mxu0 %v271
      %295 = vmatprep.subr.bf16.mxu0 0
      %296 = vmatpush1.bf16.msra.mxu0 %v272
      %297 = vmatprep.subr.bf16.mxu0 0
      %298 = vmatpush1.bf16.msra.mxu0 0
      %299 = vmatprep.subr.bf16.mxu0 0
      %300 = vmatpush1.bf16.msra.mxu0 0
      %301 = vmatprep.subr.bf16.mxu0 0
      %302 = vmatpush1.bf16.msra.mxu0 0
      %303 = vmatprep.subr.bf16.mxu0 0
      %304 = vmatpush1.bf16.msra.mxu0 0
      %305 = vmatprep.subr.bf16.mxu0 0
      %306 = vmatpush1.bf16.msra.mxu0 0
      %307 = vmatprep.subr.bf16.mxu0 0
      %308 = vmatpush1.bf16.msra.mxu0 0
      %309 = vmatprep.subr.bf16.mxu0 0
      %310 = vmatpush1.bf16.msra.mxu0 0
      %311 = vmatprep.subr.bf16.mxu0 0
      %312 = vmatpush1.bf16.msra.mxu0 0
      %313 = vmatprep.mubr.bf16.mxu0 0
      %314 = vmatmul.mubr.bf16.gmra.mrb[0].mxu0 %v231
      %v315 = vpop.f32.mrb[0].mxu0
      %v316 = vadd.f32 0.0, %v315
      %v317 = vpop.f32.mrb[0].mxu0
      %v318 = vpop.f32.mrb[0].mxu0
      %v319 = vadd.f32 0.0, %v318
      %v320 = vpop.f32.mrb[0].mxu0
      %321 = vdwg.mxu0
      %322 = vst [vmem:[%s206] sm:$0xff] %v316
      %323 = vst [vmem:[%s206 + $0x8] sm:$0xff] %v319
      %s324 = scalar_lea.vmem %s186, 8
      %v325 = vld [vmem:[%s324] sm:$0xf]
      %v326 = vld [vmem:[%s324 + $0x4] sm:$0xf]
      %s327 = scalar_lea.vmem %s196, 64
      %v328 = vld [vmem:[%s327] sm:$0xf]
      %v329 = vld [vmem:[%s327 + $0x4] sm:$0xf]
      %v330 = vld [vmem:[%s327 + $0x8] sm:$0xf]
      %v331 = vld [vmem:[%s327 + $0xc] sm:$0xf]
      %v332 = vld [vmem:[%s327 + $0x10] sm:$0xf]
      %v333 = vld [vmem:[%s327 + $0x14] sm:$0xf]
      %v334 = vld [vmem:[%s327 + $0x18] sm:$0xf]
      %v335 = vld [vmem:[%s327 + $0x1c] sm:$0xf]
      %v336 = vld [vmem:[%s327 + $0x20] sm:$0xf]
      %v337 = vld [vmem:[%s327 + $0x24] sm:$0xf]
      %v338 = vld [vmem:[%s327 + $0x28] sm:$0xf]
      %v339 = vld [vmem:[%s327 + $0x2c] sm:$0xf]
      %v340 = vld [vmem:[%s327 + $0x30] sm:$0xf]
      %v341 = vld [vmem:[%s327 + $0x34] sm:$0xf]
      %v342 = vld [vmem:[%s327 + $0x38] sm:$0xf]
      %v343 = vld [vmem:[%s327 + $0x3c] sm:$0xf]
      %v346 = vunpack.c.l.b16 %v325
      %v347 = vunpack.c.l.b16 %v326
      %v348 = vpack.c.b16 %v347, %v346
      %v366 = vunpack.c.l.b16 %v328
      %v367 = vunpack.c.l.b16 %v329
      %v368 = vunpack.c.l.b16 %v330
      %v369 = vunpack.c.l.b16 %v331
      %v370 = vunpack.c.l.b16 %v332
      %v371 = vunpack.c.l.b16 %v333
      %v372 = vunpack.c.l.b16 %v334
      %v373 = vunpack.c.l.b16 %v335
      %v374 = vunpack.c.l.b16 %v336
      %v375 = vunpack.c.l.b16 %v337
      %v376 = vunpack.c.l.b16 %v338
      %v377 = vunpack.c.l.b16 %v339
      %v378 = vunpack.c.l.b16 %v340
      %v379 = vunpack.c.l.b16 %v341
      %v380 = vunpack.c.l.b16 %v342
      %v381 = vunpack.c.l.b16 %v343
      %v382 = vpack.c.b16 %v367, %v366
      %v383 = vpack.c.b16 %v369, %v368
      %v384 = vpack.c.b16 %v371, %v370
      %v385 = vpack.c.b16 %v373, %v372
      %v386 = vpack.c.b16 %v375, %v374
      %v387 = vpack.c.b16 %v377, %v376
      %v388 = vpack.c.b16 %v379, %v378
      %v389 = vpack.c.b16 %v381, %v380
      %398 = vmatprep.subr.bf16.mxu0 0
      %399 = vmatpush1.bf16.msra.mxu0 %v382
      %400 = vmatprep.subr.bf16.mxu0 0
      %401 = vmatpush1.bf16.msra.mxu0 %v383
      %402 = vmatprep.subr.bf16.mxu0 0
      %403 = vmatpush1.bf16.msra.mxu0 %v384
      %404 = vmatprep.subr.bf16.mxu0 0
      %405 = vmatpush1.bf16.msra.mxu0 %v385
      %406 = vmatprep.subr.bf16.mxu0 0
      %407 = vmatpush1.bf16.msra.mxu0 %v386
      %408 = vmatprep.subr.bf16.mxu0 0
      %409 = vmatpush1.bf16.msra.mxu0 %v387
      %410 = vmatprep.subr.bf16.mxu0 0
      %411 = vmatpush1.bf16.msra.mxu0 %v388
      %412 = vmatprep.subr.bf16.mxu0 0
      %413 = vmatpush1.bf16.msra.mxu0 %v389
      %414 = vmatprep.subr.bf16.mxu0 0
      %415 = vmatpush1.bf16.msra.mxu0 0
      %416 = vmatprep.subr.bf16.mxu0 0
      %417 = vmatpush1.bf16.msra.mxu0 0
      %418 = vmatprep.subr.bf16.mxu0 0
      %419 = vmatpush1.bf16.msra.mxu0 0
      %420 = vmatprep.subr.bf16.mxu0 0
      %421 = vmatpush1.bf16.msra.mxu0 0
      %422 = vmatprep.subr.bf16.mxu0 0
      %423 = vmatpush1.bf16.msra.mxu0 0
      %424 = vmatprep.subr.bf16.mxu0 0
      %425 = vmatpush1.bf16.msra.mxu0 0
      %426 = vmatprep.subr.bf16.mxu0 0
      %427 = vmatpush1.bf16.msra.mxu0 0
      %428 = vmatprep.subr.bf16.mxu0 0
      %429 = vmatpush1.bf16.msra.mxu0 0
      %430 = vmatprep.mubr.bf16.mxu0 0
      %431 = vmatmul.mubr.bf16.gmra.mrb[0].mxu0 %v348
      %v432 = vpop.f32.mrb[0].mxu0
      %v433 = vadd.f32 0.0, %v432
      %v434 = vpop.f32.mrb[0].mxu0
      %v435 = vpop.f32.mrb[0].mxu0
      %v436 = vadd.f32 0.0, %v435
      %v437 = vpop.f32.mrb[0].mxu0
      %438 = vdwg.mxu0
      %s439 = scalar_lea.vmem %s206, 16
      %440 = vst [vmem:[%s439] sm:$0xff] %v433
      %441 = vst [vmem:[%s439 + $0x8] sm:$0xff] %v436
      %s442 = scalar_lea.vmem %s186, 16
      %v443 = vld [vmem:[%s442] sm:$0xf]
      %v444 = vld [vmem:[%s442 + $0x4] sm:$0xf]
      %s445 = scalar_lea.vmem %s196, 128
      %v446 = vld [vmem:[%s445] sm:$0xf]
      %v447 = vld [vmem:[%s445 + $0x4] sm:$0xf]
      %v448 = vld [vmem:[%s445 + $0x8] sm:$0xf]
      %v449 = vld [vmem:[%s445 + $0xc] sm:$0xf]
      %v450 = vld [vmem:[%s445 + $0x10] sm:$0xf]
      %v451 = vld [vmem:[%s445 + $0x14] sm:$0xf]
      %v452 = vld [vmem:[%s445 + $0x18] sm:$0xf]
      %v453 = vld [vmem:[%s445 + $0x1c] sm:$0xf]
      %v454 = vld [vmem:[%s445 + $0x20] sm:$0xf]
      %v455 = vld [vmem:[%s445 + $0x24] sm:$0xf]
      %v456 = vld [vmem:[%s445 + $0x28] sm:$0xf]
      %v457 = vld [vmem:[%s445 + $0x2c] sm:$0xf]
      %v458 = vld [vmem:[%s445 + $0x30] sm:$0xf]
      %v459 = vld [vmem:[%s445 + $0x34] sm:$0xf]
      %v460 = vld [vmem:[%s445 + $0x38] sm:$0xf]
      %v461 = vld [vmem:[%s445 + $0x3c] sm:$0xf]
      %v464 = vunpack.c.l.b16 %v443
      %v465 = vunpack.c.l.b16 %v444
      %v466 = vpack.c.b16 %v465, %v464
      %v484 = vunpack.c.l.b16 %v446
      %v485 = vunpack.c.l.b16 %v447
      %v486 = vunpack.c.l.b16 %v448
      %v487 = vunpack.c.l.b16 %v449
      %v488 = vunpack.c.l.b16 %v450
      %v489 = vunpack.c.l.b16 %v451
      %v490 = vunpack.c.l.b16 %v452
      %v491 = vunpack.c.l.b16 %v453
      %v492 = vunpack.c.l.b16 %v454
      %v493 = vunpack.c.l.b16 %v455
      %v494 = vunpack.c.l.b16 %v456
      %v495 = vunpack.c.l.b16 %v457
      %v496 = vunpack.c.l.b16 %v458
      %v497 = vunpack.c.l.b16 %v459
      %v498 = vunpack.c.l.b16 %v460
      %v499 = vunpack.c.l.b16 %v461
      %v500 = vpack.c.b16 %v485, %v484
      %v501 = vpack.c.b16 %v487, %v486
      %v502 = vpack.c.b16 %v489, %v488
      %v503 = vpack.c.b16 %v491, %v490
      %v504 = vpack.c.b16 %v493, %v492
      %v505 = vpack.c.b16 %v495, %v494
      %v506 = vpack.c.b16 %v497, %v496
      %v507 = vpack.c.b16 %v499, %v498
      %516 = vmatprep.subr.bf16.mxu0 0
      %517 = vmatpush1.bf16.msra.mxu0 %v500
      %518 = vmatprep.subr.bf16.mxu0 0
      %519 = vmatpush1.bf16.msra.mxu0 %v501
      %520 = vmatprep.subr.bf16.mxu0 0
      %521 = vmatpush1.bf16.msra.mxu0 %v502
      %522 = vmatprep.subr.bf16.mxu0 0
      %523 = vmatpush1.bf16.msra.mxu0 %v503
      %524 = vmatprep.subr.bf16.mxu0 0
      %525 = vmatpush1.bf16.msra.mxu0 %v504
      %526 = vmatprep.subr.bf16.mxu0 0
      %527 = vmatpush1.bf16.msra.mxu0 %v505
      %528 = vmatprep.subr.bf16.mxu0 0
      %529 = vmatpush1.bf16.msra.mxu0 %v506
      %530 = vmatprep.subr.bf16.mxu0 0
      %531 = vmatpush1.bf16.msra.mxu0 %v507
      %532 = vmatprep.subr.bf16.mxu0 0
      %533 = vmatpush1.bf16.msra.mxu0 0
      %534 = vmatprep.subr.bf16.mxu0 0
      %535 = vmatpush1.bf16.msra.mxu0 0
      %536 = vmatprep.subr.bf16.mxu0 0
      %537 = vmatpush1.bf16.msra.mxu0 0
      %538 = vmatprep.subr.bf16.mxu0 0
      %539 = vmatpush1.bf16.msra.mxu0 0
      %540 = vmatprep.subr.bf16.mxu0 0
      %541 = vmatpush1.bf16.msra.mxu0 0
      %542 = vmatprep.subr.bf16.mxu0 0
      %543 = vmatpush1.bf16.msra.mxu0 0
      %544 = vmatprep.subr.bf16.mxu0 0
      %545 = vmatpush1.bf16.msra.mxu0 0
      %546 = vmatprep.subr.bf16.mxu0 0
      %547 = vmatpush1.bf16.msra.mxu0 0
      %548 = vmatprep.mubr.bf16.mxu0 0
      %549 = vmatmul.mubr.bf16.gmra.mrb[0].mxu0 %v466
      %v550 = vpop.f32.mrb[0].mxu0
      %v551 = vadd.f32 0.0, %v550
      %v552 = vpop.f32.mrb[0].mxu0
      %v553 = vpop.f32.mrb[0].mxu0
      %v554 = vadd.f32 0.0, %v553
      %v555 = vpop.f32.mrb[0].mxu0
      %556 = vdwg.mxu0
      %s557 = scalar_lea.vmem %s206, 32
      %558 = vst [vmem:[%s557] sm:$0xff] %v551
      %559 = vst [vmem:[%s557 + $0x8] sm:$0xff] %v554
      %s560 = scalar_lea.vmem %s186, 24
      %v561 = vld [vmem:[%s560] sm:$0xf]
      %v562 = vld [vmem:[%s560 + $0x4] sm:$0xf]
      %s563 = scalar_lea.vmem %s196, 192
      %v564 = vld [vmem:[%s563] sm:$0xf]
      %v565 = vld [vmem:[%s563 + $0x4] sm:$0xf]
      %v566 = vld [vmem:[%s563 + $0x8] sm:$0xf]
      %v567 = vld [vmem:[%s563 + $0xc] sm:$0xf]
      %v568 = vld [vmem:[%s563 + $0x10] sm:$0xf]
      %v569 = vld [vmem:[%s563 + $0x14] sm:$0xf]
      %v570 = vld [vmem:[%s563 + $0x18] sm:$0xf]
      %v571 = vld [vmem:[%s563 + $0x1c] sm:$0xf]
      %v572 = vld [vmem:[%s563 + $0x20] sm:$0xf]
      %v573 = vld [vmem:[%s563 + $0x24] sm:$0xf]
      %v574 = vld [vmem:[%s563 + $0x28] sm:$0xf]
      %v575 = vld [vmem:[%s563 + $0x2c] sm:$0xf]
      %v576 = vld [vmem:[%s563 + $0x30] sm:$0xf]
      %v577 = vld [vmem:[%s563 + $0x34] sm:$0xf]
      %v578 = vld [vmem:[%s563 + $0x38] sm:$0xf]
      %v579 = vld [vmem:[%s563 + $0x3c] sm:$0xf]
      %v582 = vunpack.c.l.b16 %v561
      %v583 = vunpack.c.l.b16 %v562
      %v584 = vpack.c.b16 %v583, %v582
      %v602 = vunpack.c.l.b16 %v564
      %v603 = vunpack.c.l.b16 %v565
      %v604 = vunpack.c.l.b16 %v566
      %v605 = vunpack.c.l.b16 %v567
      %v606 = vunpack.c.l.b16 %v568
      %v607 = vunpack.c.l.b16 %v569
      %v608 = vunpack.c.l.b16 %v570
      %v609 = vunpack.c.l.b16 %v571
      %v610 = vunpack.c.l.b16 %v572
      %v611 = vunpack.c.l.b16 %v573
      %v612 = vunpack.c.l.b16 %v574
      %v613 = vunpack.c.l.b16 %v575
      %v614 = vunpack.c.l.b16 %v576
      %v615 = vunpack.c.l.b16 %v577
      %v616 = vunpack.c.l.b16 %v578
      %v617 = vunpack.c.l.b16 %v579
      %v618 = vpack.c.b16 %v603, %v602
      %v619 = vpack.c.b16 %v605, %v604
      %v620 = vpack.c.b16 %v607, %v606
      %v621 = vpack.c.b16 %v609, %v608
      %v622 = vpack.c.b16 %v611, %v610
      %v623 = vpack.c.b16 %v613, %v612
      %v624 = vpack.c.b16 %v615, %v614
      %v625 = vpack.c.b16 %v617, %v616
      %634 = vmatprep.subr.bf16.mxu0 0
      %635 = vmatpush1.bf16.msra.mxu0 %v618
      %636 = vmatprep.subr.bf16.mxu0 0
      %637 = vmatpush1.bf16.msra.mxu0 %v619
      %638 = vmatprep.subr.bf16.mxu0 0
      %639 = vmatpush1.bf16.msra.mxu0 %v620
      %640 = vmatprep.subr.bf16.mxu0 0
      %641 = vmatpush1.bf16.msra.mxu0 %v621
      %642 = vmatprep.subr.bf16.mxu0 0
      %643 = vmatpush1.bf16.msra.mxu0 %v622
      %644 = vmatprep.subr.bf16.mxu0 0
      %645 = vmatpush1.bf16.msra.mxu0 %v623
      %646 = vmatprep.subr.bf16.mxu0 0
      %647 = vmatpush1.bf16.msra.mxu0 %v624
      %648 = vmatprep.subr.bf16.mxu0 0
      %649 = vmatpush1.bf16.msra.mxu0 %v625
      %650 = vmatprep.subr.bf16.mxu0 0
      %651 = vmatpush1.bf16.msra.mxu0 0
      %652 = vmatprep.subr.bf16.mxu0 0
      %653 = vmatpush1.bf16.msra.mxu0 0
      %654 = vmatprep.subr.bf16.mxu0 0
      %655 = vmatpush1.bf16.msra.mxu0 0
      %656 = vmatprep.subr.bf16.mxu0 0
      %657 = vmatpush1.bf16.msra.mxu0 0
      %658 = vmatprep.subr.bf16.mxu0 0
      %659 = vmatpush1.bf16.msra.mxu0 0
      %660 = vmatprep.subr.bf16.mxu0 0
      %661 = vmatpush1.bf16.msra.mxu0 0
      %662 = vmatprep.subr.bf16.mxu0 0
      %663 = vmatpush1.bf16.msra.mxu0 0
      %664 = vmatprep.subr.bf16.mxu0 0
      %665 = vmatpush1.bf16.msra.mxu0 0
      %666 = vmatprep.mubr.bf16.mxu0 0
      %667 = vmatmul.mubr.bf16.gmra.mrb[0].mxu0 %v584
      %v668 = vpop.f32.mrb[0].mxu0
      %v669 = vadd.f32 0.0, %v668
      %v670 = vpop.f32.mrb[0].mxu0
      %v671 = vpop.f32.mrb[0].mxu0
      %v672 = vadd.f32 0.0, %v671
      %v673 = vpop.f32.mrb[0].mxu0
      %674 = vdwg.mxu0
      %s675 = scalar_lea.vmem %s206, 48
      %676 = vst [vmem:[%s675] sm:$0xff] %v669
      %677 = vst [vmem:[%s675 + $0x8] sm:$0xff] %v672
      %s678 = smul.u32 4, %s17
      %p679 = scmp.lt.s32.totalorder %s678, 7
      %s680 = scalar_select %p679, %s678, 7
      %p681 = scmp.lt.s32.totalorder %s18, 0
      %s682 = scalar_select %p681, %s18, 0
      %s683 = smul.addr %s680, 2
      %s684 = sadd.s32 %s682, %s683
      %s685 = smul.addr %s684, 8
      %s686 = scalar_lea.vmem %s2, %s685
      // Predicated region
      $region29: #{_forward_impl.9} parent=27 // pred_check
        %p687 = pneg %p99
      $region30: #{_forward_impl.9} parent=27 // pred_check_branch
        %689 = sbr.rel (%p687) target = $region32
      $region31: #{_forward_impl.9} parent=27 // pred_region
        %s690 = smul.u32 4, %s17
      $region32: #{_forward_impl.9} parent=27 // pred_fallthru
        _
    $region28: #{_forward_impl.9} parent=5 // pred_fallthru
      _
    %p691 = scmp.le.s32.totalorder 2, %s8
    // Predicated region
    $region33: #{_forward_impl.9} parent=5 // pred_check
      %p692 = pneg %p691
    $region34: #{_forward_impl.9} parent=5 // pred_check_branch
      %694 = sbr.rel (%p692) target = $region36
    $region35: #{_forward_impl.9} parent=5 // pred_region
      %s695 = ssub.s32 %s8, 2
      // Predicated region
      $region37: #{_forward_impl.9} parent=35 // pred_check
        %p696 = pneg %p105
      $region38: #{_forward_impl.9} parent=35 // pred_check_branch
        %698 = sbr.rel (%p696) target = $region40
      $region39: #{_forward_impl.9} parent=35 // pred_region
        %s699 = smul.u32 4, %s19
        %p700 = scmp.lt.s32.totalorder %s699, 7
        %s701 = scalar_select %p700, %s699, 7
        %p702 = scmp.lt.s32.totalorder %s20, 0
        %s703 = scalar_select %p702, %s20, 0
        %s704 = smul.addr %s701, 2
        %s705 = sadd.s32 %s703, %s704
        %s706 = smul.addr %s705, 8
        %s707 = scalar_lea.vmem %s2, %s706
      $region40: #{_forward_impl.9} parent=35 // pred_fallthru
        _
    $region36: #{_forward_impl.9} parent=5 // pred_fallthru
      _
  $region6: #{_forward_impl.9} parent=0 // loop_footer
    %s12 = sadd.s32 1, %s8
  $region7: #{_forward_impl.9} parent=0 // loop_footer_branch
    %7 = sbr.rel target = $region3
  $region8: #{_forward_impl.9} parent=0 // loop_exit
    _

</llo_original>
